<compile_context>
chip_gen: v7x
topology: tpu7x:2x2x1
jax: 0.10.0
libtpu: 0.0.40
codegen_flags: <defaults>
</compile_context>

<pallas_src>
import functools

import jax
import jax.numpy as jnp
import numpy as np
from jax.experimental import pallas as pl
from jax.experimental.pallas import tpu as pltpu


def _round_up(x, m):
    return ((x + m - 1) // m) * m


# ----------------------------- Pallas kernel -------------------------------
def _lstm_kernel(x_ref,        # (S*Bp, Dp)  bf16  time-major embedded input (padded)
                 len_ref,      # (Bp, 1)     int32 per-example valid length (0 for pad rows)
                 wih0_ref,     # (Dp, 4H)    bf16
                 whh0_ref,     # (H, 4H)     bf16
                 b0_ref,       # (1, 4H)     f32   (b_ih0 + b_hh0)
                 wih1_ref,     # (H, 4H)     bf16
                 whh1_ref,     # (H, 4H)     bf16
                 b1_ref,       # (1, 4H)     f32   (b_ih1 + b_hh1)
                 wout_ref,     # (H, Cp)     bf16  lane-padded output weights
                 bout_ref,     # (1, Cp)     f32   lane-padded output bias
                 out_ref,      # (S*Bp, Cp)  f32   lane-dense output
                 h1_scr,       # (S*Bp, H)   f32   VMEM scratch for per-step hidden
                 *, S, Bp, H):
    bf16 = jnp.bfloat16
    f32 = jnp.float32
    G = 4 * H

    # ---- prologue: hoisted layer-0 input projection (one big aligned matmul) ----
    pre0 = jnp.dot(x_ref[...], wih0_ref[...],
                   preferred_element_type=f32) + b0_ref[...]          # (S*Bp, 4H) f32
    whh0 = whh0_ref[...]
    wih1 = wih1_ref[...]
    whh1 = whh1_ref[...]
    b1 = b1_ref[...]

    # hoisted broadcasts / masks (outside the recurrence)
    len_b = jnp.broadcast_to(len_ref[...], (Bp, H))                   # (Bp, H) int32
    lane = jax.lax.broadcasted_iota(jnp.int32, (Bp, G), 1)            # lane ids 0..4H-1
    is_g = (lane >= 2 * H) & (lane < 3 * H)                           # tanh ("g") gate lanes

    def activate(gates):
        # Full-vreg nonlinearity: one EUP sigmoid over all 4 gates.
        # tanh(x) = 2*sigmoid(2x) - 1 on the g lanes, done with VALU pre/post fixups.
        z = jnp.where(is_g, gates + gates, gates)
        s = jax.nn.sigmoid(z)
        a = jnp.where(is_g, s + s - 1.0, s)
        # PyTorch gate order i | f | g | o
        return (a[:, 0 * H:1 * H], a[:, 1 * H:2 * H],
                a[:, 2 * H:3 * H], a[:, 3 * H:4 * H])

    h0 = jnp.zeros((Bp, H), f32)
    c0 = jnp.zeros((Bp, H), f32)
    h1 = jnp.zeros((Bp, H), f32)
    c1 = jnp.zeros((Bp, H), f32)

    # Fully unrolled in-kernel time loop (S is small & static) -> no grid overhead.
    # TODO(synk): switch to lax.fori_loop(unroll=2-4) writing into h1_scr for large S.
    for t in range(S):
        valid = len_b > t                                             # (Bp, H) bool

        # ---- layer 0: only the recurrent matmul remains per step ----
        g0 = pre0[t * Bp:(t + 1) * Bp, :] + jnp.dot(
            h0.astype(bf16), whh0, preferred_element_type=f32)
        i0, f0, gg0, o0 = activate(g0)
        c0n = f0 * c0 + i0 * gg0
        h0n = o0 * jnp.tanh(c0n)
        c0 = jnp.where(valid, c0n, c0)        # packed-seq: freeze state past length
        h0 = jnp.where(valid, h0n, h0)

        # ---- layer 1: two dots (no per-step concat on the critical path) ----
        g1 = (jnp.dot(h0.astype(bf16), wih1, preferred_element_type=f32)
              + jnp.dot(h1.astype(bf16), whh1, preferred_element_type=f32)
              + b1)
        i1, f1, gg1, o1 = activate(g1)
        c1n = f1 * c1 + i1 * gg1
        h1n = o1 * jnp.tanh(c1n)
        c1 = jnp.where(valid, c1n, c1)
        h1 = jnp.where(valid, h1n, h1)

        # pad_packed_sequence -> zeros at padded steps; store to VMEM scratch
        # (Bp-row slice is sublane-aligned, static offset)
        h1_scr[pl.ds(t * Bp, Bp), :] = jnp.where(valid, h1, 0.0)

    # ---- epilogue: single deferred, lane-dense output Linear over all timesteps ----
    out_ref[...] = (jnp.dot(h1_scr[...].astype(bf16), wout_ref[...],
                            preferred_element_type=f32) + bout_ref[...])


def lstm_forward_pallas(emb_tm, lengths, params):
    """emb_tm: (S, B, D) f32 time-major embedded input; lengths: (B,) int.
    Returns (S, B, C) f32 (padded steps hold Linear(0) = bias, like PyTorch)."""
    S, B, D = emb_tm.shape
    H = params["whh0T"].shape[0]
    C = params["woutT"].shape[1]

    Bp = _round_up(B, 16)          # bf16 sublane packing for the h operand
    Dp = _round_up(D, 128)         # aligned K tiles for the prologue matmul
    Cp = _round_up(C, 128)         # lane-dense output store / clean MXU N

    bf16 = jnp.bfloat16
    f32 = jnp.float32

    # pad batch + embedding dim, flatten time into the sublane axis, cast to bf16
    x = jnp.zeros((S, Bp, Dp), f32).at[:, :B, :D].set(emb_tm)
    x2d = x.reshape(S * Bp, Dp).astype(bf16)
    len_col = jnp.zeros((Bp, 1), jnp.int32).at[:B, 0].set(lengths.astype(jnp.int32))

    # zero-pad weights to the aligned shapes (zero rows/lanes cost nothing)
    wih0T = jnp.zeros((Dp, 4 * H), bf16).at[:D].set(params["wih0T"])
    woutT = jnp.zeros((H, Cp), bf16).at[:, :C].set(params["woutT"])
    bout = jnp.zeros((1, Cp), f32).at[:, :C].set(params["bout"])

    kernel = functools.partial(_lstm_kernel, S=S, Bp=Bp, H=H)
    vmem = pl.BlockSpec(memory_space=pltpu.MemorySpace.VMEM)

    out2d = pl.pallas_call(
        kernel,
        out_shape=jax.ShapeDtypeStruct((S * Bp, Cp), f32),
        in_specs=[vmem] * 10,                  # everything resident in VMEM, no grid
        out_specs=vmem,
        scratch_shapes=[pltpu.VMEM((S * Bp, H), f32)],
    )(x2d, len_col,
      wih0T, params["whh0T"], params["b0"],
      params["wih1T"], params["whh1T"], params["b1"],
      woutT, bout)

    # drop batch / lane padding -> (S, B, C)
    return out2d.reshape(S, Bp, Cp)[:, :B, :C]


# ------------------------------ JAX glue ------------------------------------
def model_forward(input_ids, lengths, emb_matrix, params, max_len=None):
    """Reproduces Lstm.forward: returns (B, max_len, n_class).
    `max_len` is a static Python int (pad_packed pads to max(length)); if None,
    all S steps are returned (no device->host sync in the forward path)."""
    B, S = input_ids.shape
    embedded = jnp.take(emb_matrix, input_ids, axis=0)      # (B, S, D) embedding gather
    emb_tm = jnp.transpose(embedded, (1, 0, 2))             # time-major (S, B, D)
    out_sbc = lstm_forward_pallas(emb_tm, lengths, params)  # (S, B, C)
    if max_len is None:
        max_len = S
    return jnp.transpose(out_sbc[:max_len], (1, 0, 2))      # .transpose(0, 1) -> (B, T, C)


def reference_forward(input_ids, lengths, emb_matrix, params, max_len=None):
    """Pure-JAX reference with identical math/precision recipe (correctness check)."""
    B, S = input_ids.shape
    H = params["whh0T"].shape[0]
    bf16 = jnp.bfloat16
    embedded = jnp.take(emb_matrix, input_ids, axis=0)
    emb_tm = jnp.transpose(embedded, (1, 0, 2))

    def cell(inp, h_old, c_old, wihT, whhT, b):
        gates = (jnp.dot(inp.astype(bf16), wihT, preferred_element_type=jnp.float32)
                 + jnp.dot(h_old.astype(bf16), whhT, preferred_element_type=jnp.float32)
                 + b)
        i = jax.nn.sigmoid(gates[:, 0 * H:1 * H])
        f = jax.nn.sigmoid(gates[:, 1 * H:2 * H])
        g = jnp.tanh(gates[:, 2 * H:3 * H])
        o = jax.nn.sigmoid(gates[:, 3 * H:4 * H])
        c = f * c_old + i * g
        return o * jnp.tanh(c), c

    h0 = c0 = h1 = c1 = jnp.zeros((B, H), jnp.float32)
    outs = []
    for t in range(S):
        m = (lengths.astype(jnp.int32) > t)[:, None]        # (B, 1) bool
        hn, cn = cell(emb_tm[t], h0, c0, params["wih0T"], params["whh0T"], params["b0"])
        h0, c0 = jnp.where(m, hn, h0), jnp.where(m, cn, c0)
        hn, cn = cell(h0, h1, c1, params["wih1T"], params["whh1T"], params["b1"])
        h1, c1 = jnp.where(m, hn, h1), jnp.where(m, cn, c1)
        h1m = jnp.where(m, h1, 0.0)
        outs.append(jnp.dot(h1m.astype(bf16), params["woutT"],
                            preferred_element_type=jnp.float32) + params["bout"])
    out_sbc = jnp.stack(outs)
    if max_len is None:
        max_len = S
    return jnp.transpose(out_sbc[:max_len], (1, 0, 2))


def init_params(key, input_dim, hidden_dim, n_class, n_voc):
    """Deterministic synthetic parameters matching the PyTorch module's shapes."""
    ks = jax.random.split(key, 11)
    s = 1.0 / np.sqrt(hidden_dim)
    u = lambda k, shape: jax.random.uniform(k, shape, jnp.float32, -s, s)
    bf16 = jnp.bfloat16

    # embedding table (n_voc, 100), padding_idx=0 row zeroed (frozen / "pretrained")
    emb = 0.1 * jax.random.normal(ks[0], (n_voc, input_dim), jnp.float32)
    emb = emb.at[0].set(0.0)

    params = {
        # weights stored pre-transposed ((K, 4H) / (H, C)); matmul operands in bf16,
        # biases / accumulation / gate math in f32
        "wih0T": u(ks[1], (input_dim, 4 * hidden_dim)).astype(bf16),
        "whh0T": u(ks[2], (hidden_dim, 4 * hidden_dim)).astype(bf16),
        "b0":    u(ks[3], (1, 4 * hidden_dim)) + u(ks[4], (1, 4 * hidden_dim)),  # b_ih + b_hh
        "wih1T": u(ks[5], (hidden_dim, 4 * hidden_dim)).astype(bf16),
        "whh1T": u(ks[6], (hidden_dim, 4 * hidden_dim)).astype(bf16),
        "b1":    u(ks[7], (1, 4 * hidden_dim)) + u(ks[8], (1, 4 * hidden_dim)),
        "woutT": u(ks[9], (hidden_dim, n_class)).astype(bf16),
        "bout":  u(ks[10], (1, n_class)),
    }
    return emb, params


if __name__ == "__main__":
    # Small shapes consistent with the module:
    #   batch = 4 (forced by init_hidden), seq = 8, input_size = 100 (embedding dim),
    #   hidden_size = 32, n_class = 5, n_voc = 50.
    B, S, D, H, C, V = 4, 8, 100, 32, 5, 50

    key = jax.random.PRNGKey(0)
    k_emb, k_ids = jax.random.split(key)
    emb_matrix, params = init_params(k_emb, D, H, C, V)

    input_ids = jax.random.randint(k_ids, (B, S), 1, V, dtype=jnp.int32)
    lengths = jnp.array([8, 6, 4, 3], dtype=jnp.int32)   # max == S (packed semantics)
    # zero out ids past each length (padding tokens -> id 0, the padding row)
    pad_mask = jnp.arange(S)[None, :] < lengths[:, None]
    input_ids = jnp.where(pad_mask, input_ids, 0)

    # pad_packed_sequence pads to max(length); computed once in the harness (static int),
    # no host sync inside the forward path.
    max_len = int(np.asarray(lengths).max())

    out = model_forward(input_ids, lengths, emb_matrix, params, max_len=max_len)
    out = jax.block_until_ready(out)

    ref = reference_forward(input_ids, lengths, emb_matrix, params, max_len=max_len)
    np.testing.assert_allclose(np.asarray(out), np.asarray(ref),
                               rtol=2e-3, atol=2e-3)
    assert out.shape == (B, max_len, C)

    print("KERNEL_OK")
</pallas_src>

<mosaic_0001>
module attributes {stable_mosaic.version = 11 : i64} {
  func.func @_lstm_kernel(%arg0: memref<128x128xbf16, #tpu.memory_space<vmem>>, %arg1: memref<16x1xi32, #tpu.memory_space<vmem>>, %arg2: memref<128x128xbf16, #tpu.memory_space<vmem>>, %arg3: memref<32x128xbf16, #tpu.memory_space<vmem>>, %arg4: memref<1x128xf32, #tpu.memory_space<vmem>>, %arg5: memref<32x128xbf16, #tpu.memory_space<vmem>>, %arg6: memref<32x128xbf16, #tpu.memory_space<vmem>>, %arg7: memref<1x128xf32, #tpu.memory_space<vmem>>, %arg8: memref<32x128xbf16, #tpu.memory_space<vmem>>, %arg9: memref<1x128xf32, #tpu.memory_space<vmem>>, %arg10: memref<128x128xf32, #tpu.memory_space<vmem>>, %arg11: memref<128x32xf32, #tpu.memory_space<vmem>>) attributes {dimension_semantics = [], scalar_prefetch = 0 : i64, scratch_operands = 1 : i64, tpu.core_type = #tpu.core_type<tc>} {
    %c0 = arith.constant 0 : index
    %c0_0 = arith.constant 0 : index
    %0 = vector.load %arg0[%c0, %c0_0] : memref<128x128xbf16, #tpu.memory_space<vmem>>, vector<128x128xbf16>
    %c0_1 = arith.constant 0 : index
    %c0_2 = arith.constant 0 : index
    %1 = vector.load %arg2[%c0_1, %c0_2] : memref<128x128xbf16, #tpu.memory_space<vmem>>, vector<128x128xbf16>
    %cst = arith.constant dense<0.000000e+00> : vector<128x128xf32>
    %2 = tpu.matmul %0, %1, %cst {dimension_numbers = #tpu.dot_dimension_numbers<[1], [0], [0], [1], [0, 0, 1, 1], [], []>} : vector<128x128xbf16>, vector<128x128xbf16>, vector<128x128xf32> -> vector<128x128xf32>
    %c0_3 = arith.constant 0 : index
    %c0_4 = arith.constant 0 : index
    %3 = vector.load %arg4[%c0_3, %c0_4] : memref<1x128xf32, #tpu.memory_space<vmem>>, vector<1x128xf32>
    %4 = vector.broadcast %3 : vector<1x128xf32> to vector<128x128xf32>
    %5 = arith.addf %2, %4 : vector<128x128xf32>
    %c0_5 = arith.constant 0 : index
    %c0_6 = arith.constant 0 : index
    %6 = vector.load %arg3[%c0_5, %c0_6] : memref<32x128xbf16, #tpu.memory_space<vmem>>, vector<32x128xbf16>
    %c0_7 = arith.constant 0 : index
    %c0_8 = arith.constant 0 : index
    %7 = vector.load %arg5[%c0_7, %c0_8] : memref<32x128xbf16, #tpu.memory_space<vmem>>, vector<32x128xbf16>
    %c0_9 = arith.constant 0 : index
    %c0_10 = arith.constant 0 : index
    %8 = vector.load %arg6[%c0_9, %c0_10] : memref<32x128xbf16, #tpu.memory_space<vmem>>, vector<32x128xbf16>
    %c0_11 = arith.constant 0 : index
    %c0_12 = arith.constant 0 : index
    %9 = vector.load %arg7[%c0_11, %c0_12] : memref<1x128xf32, #tpu.memory_space<vmem>>, vector<1x128xf32>
    %c0_13 = arith.constant 0 : index
    %c0_14 = arith.constant 0 : index
    %10 = vector.load %arg1[%c0_13, %c0_14] : memref<16x1xi32, #tpu.memory_space<vmem>>, vector<16x1xi32>
    %11 = vector.shape_cast %10 : vector<16x1xi32> to vector<16x1xi32>
    %12 = vector.broadcast %11 : vector<16x1xi32> to vector<16x32xi32>
    %13 = tpu.iota {dimensions = array<i32: 1>} : vector<16x128xi32>
    %c64_i32 = arith.constant 64 : i32
    %14 = vector.broadcast %c64_i32 : i32 to vector<16x128xi32>
    %15 = arith.cmpi sge, %13, %14 : vector<16x128xi32>
    %c96_i32 = arith.constant 96 : i32
    %16 = vector.broadcast %c96_i32 : i32 to vector<16x128xi32>
    %17 = arith.cmpi slt, %13, %16 : vector<16x128xi32>
    %18 = arith.andi %15, %17 : vector<16x128xi1>
    %cst_15 = arith.constant 0.000000e+00 : f32
    %19 = vector.broadcast %cst_15 : f32 to vector<16x32xf32>
    %cst_16 = arith.constant 0.000000e+00 : f32
    %20 = vector.broadcast %cst_16 : f32 to vector<16x32xf32>
    %cst_17 = arith.constant 0.000000e+00 : f32
    %21 = vector.broadcast %cst_17 : f32 to vector<16x32xf32>
    %cst_18 = arith.constant 0.000000e+00 : f32
    %22 = vector.broadcast %cst_18 : f32 to vector<16x32xf32>
    %c0_i32 = arith.constant 0 : i32
    %23 = vector.broadcast %c0_i32 : i32 to vector<16x32xi32>
    %24 = arith.cmpi sgt, %12, %23 : vector<16x32xi32>
    %25 = vector.extract_strided_slice %5 {offsets = [0, 0], sizes = [16, 128], strides = [1, 1]} : vector<128x128xf32> to vector<16x128xf32>
    %26 = arith.truncf %19 : vector<16x32xf32> to vector<16x32xbf16>
    %cst_19 = arith.constant dense<0.000000e+00> : vector<16x128xf32>
    %27 = tpu.matmul %26, %6, %cst_19 {dimension_numbers = #tpu.dot_dimension_numbers<[1], [0], [0], [1], [0, 0, 1, 1], [], []>} : vector<16x32xbf16>, vector<32x128xbf16>, vector<16x128xf32> -> vector<16x128xf32>
    %28 = arith.addf %25, %27 : vector<16x128xf32>
    %29 = arith.addf %28, %28 : vector<16x128xf32>
    %30 = arith.select %18, %29, %28 : vector<16x128xi1>, vector<16x128xf32>
    %31 = arith.negf %30 : vector<16x128xf32>
    %32 = math.exp %31 : vector<16x128xf32>
    %cst_20 = arith.constant 1.000000e+00 : f32
    %33 = vector.broadcast %cst_20 : f32 to vector<16x128xf32>
    %34 = arith.addf %33, %32 : vector<16x128xf32>
    %35 = arith.divf %33, %34 : vector<16x128xf32>
    %36 = arith.addf %35, %35 : vector<16x128xf32>
    %cst_21 = arith.constant 1.000000e+00 : f32
    %37 = vector.broadcast %cst_21 : f32 to vector<16x128xf32>
    %38 = arith.subf %36, %37 : vector<16x128xf32>
    %39 = arith.select %18, %38, %35 : vector<16x128xi1>, vector<16x128xf32>
    %40 = vector.extract_strided_slice %39 {offsets = [0, 0], sizes = [16, 32], strides = [1, 1]} : vector<16x128xf32> to vector<16x32xf32>
    %41 = vector.extract_strided_slice %39 {offsets = [0, 32], sizes = [16, 32], strides = [1, 1]} : vector<16x128xf32> to vector<16x32xf32>
    %42 = vector.extract_strided_slice %39 {offsets = [0, 64], sizes = [16, 32], strides = [1, 1]} : vector<16x128xf32> to vector<16x32xf32>
    %43 = vector.extract_strided_slice %39 {offsets = [0, 96], sizes = [16, 32], strides = [1, 1]} : vector<16x128xf32> to vector<16x32xf32>
    %44 = arith.mulf %41, %20 : vector<16x32xf32>
    %45 = arith.mulf %40, %42 : vector<16x32xf32>
    %46 = arith.addf %44, %45 : vector<16x32xf32>
    %47 = math.tanh %46 : vector<16x32xf32>
    %48 = arith.mulf %43, %47 : vector<16x32xf32>
    %49 = arith.select %24, %46, %20 : vector<16x32xi1>, vector<16x32xf32>
    %50 = arith.select %24, %48, %19 : vector<16x32xi1>, vector<16x32xf32>
    %51 = arith.truncf %50 : vector<16x32xf32> to vector<16x32xbf16>
    %cst_22 = arith.constant dense<0.000000e+00> : vector<16x128xf32>
    %52 = tpu.matmul %51, %7, %cst_22 {dimension_numbers = #tpu.dot_dimension_numbers<[1], [0], [0], [1], [0, 0, 1, 1], [], []>} : vector<16x32xbf16>, vector<32x128xbf16>, vector<16x128xf32> -> vector<16x128xf32>
    %53 = arith.truncf %21 : vector<16x32xf32> to vector<16x32xbf16>
    %cst_23 = arith.constant dense<0.000000e+00> : vector<16x128xf32>
    %54 = tpu.matmul %53, %8, %cst_23 {dimension_numbers = #tpu.dot_dimension_numbers<[1], [0], [0], [1], [0, 0, 1, 1], [], []>} : vector<16x32xbf16>, vector<32x128xbf16>, vector<16x128xf32> -> vector<16x128xf32>
    %55 = arith.addf %52, %54 : vector<16x128xf32>
    %56 = vector.broadcast %9 : vector<1x128xf32> to vector<16x128xf32>
    %57 = arith.addf %55, %56 : vector<16x128xf32>
    %58 = arith.addf %57, %57 : vector<16x128xf32>
    %59 = arith.select %18, %58, %57 : vector<16x128xi1>, vector<16x128xf32>
    %60 = arith.negf %59 : vector<16x128xf32>
    %61 = math.exp %60 : vector<16x128xf32>
    %cst_24 = arith.constant 1.000000e+00 : f32
    %62 = vector.broadcast %cst_24 : f32 to vector<16x128xf32>
    %63 = arith.addf %62, %61 : vector<16x128xf32>
    %64 = arith.divf %62, %63 : vector<16x128xf32>
    %65 = arith.addf %64, %64 : vector<16x128xf32>
    %cst_25 = arith.constant 1.000000e+00 : f32
    %66 = vector.broadcast %cst_25 : f32 to vector<16x128xf32>
    %67 = arith.subf %65, %66 : vector<16x128xf32>
    %68 = arith.select %18, %67, %64 : vector<16x128xi1>, vector<16x128xf32>
    %69 = vector.extract_strided_slice %68 {offsets = [0, 0], sizes = [16, 32], strides = [1, 1]} : vector<16x128xf32> to vector<16x32xf32>
    %70 = vector.extract_strided_slice %68 {offsets = [0, 32], sizes = [16, 32], strides = [1, 1]} : vector<16x128xf32> to vector<16x32xf32>
    %71 = vector.extract_strided_slice %68 {offsets = [0, 64], sizes = [16, 32], strides = [1, 1]} : vector<16x128xf32> to vector<16x32xf32>
    %72 = vector.extract_strided_slice %68 {offsets = [0, 96], sizes = [16, 32], strides = [1, 1]} : vector<16x128xf32> to vector<16x32xf32>
    %73 = arith.mulf %70, %22 : vector<16x32xf32>
    %74 = arith.mulf %69, %71 : vector<16x32xf32>
    %75 = arith.addf %73, %74 : vector<16x32xf32>
    %76 = math.tanh %75 : vector<16x32xf32>
    %77 = arith.mulf %72, %76 : vector<16x32xf32>
    %78 = arith.select %24, %75, %22 : vector<16x32xi1>, vector<16x32xf32>
    %79 = arith.select %24, %77, %21 : vector<16x32xi1>, vector<16x32xf32>
    %cst_26 = arith.constant 0.000000e+00 : f32
    %80 = vector.broadcast %cst_26 : f32 to vector<16x32xf32>
    %81 = arith.select %24, %79, %80 : vector<16x32xi1>, vector<16x32xf32>
    %c0_27 = arith.constant 0 : index
    %c0_28 = arith.constant 0 : index
    %82 = vector.load %arg11[%c0_27, %c0_28] : memref<128x32xf32, #tpu.memory_space<vmem>>, vector<16x32xf32>
    tpu.vector_store %arg11[%c0_27, %c0_28], %81 {strides = array<i32>} : memref<128x32xf32, #tpu.memory_space<vmem>>, vector<16x32xf32>,
    %c1_i32 = arith.constant 1 : i32
    %83 = vector.broadcast %c1_i32 : i32 to vector<16x32xi32>
    %84 = arith.cmpi sgt, %12, %83 : vector<16x32xi32>
    %85 = vector.extract_strided_slice %5 {offsets = [16, 0], sizes = [16, 128], strides = [1, 1]} : vector<128x128xf32> to vector<16x128xf32>
    %86 = arith.truncf %50 : vector<16x32xf32> to vector<16x32xbf16>
    %cst_29 = arith.constant dense<0.000000e+00> : vector<16x128xf32>
    %87 = tpu.matmul %86, %6, %cst_29 {dimension_numbers = #tpu.dot_dimension_numbers<[1], [0], [0], [1], [0, 0, 1, 1], [], []>} : vector<16x32xbf16>, vector<32x128xbf16>, vector<16x128xf32> -> vector<16x128xf32>
    %88 = arith.addf %85, %87 : vector<16x128xf32>
    %89 = arith.addf %88, %88 : vector<16x128xf32>
    %90 = arith.select %18, %89, %88 : vector<16x128xi1>, vector<16x128xf32>
    %91 = arith.negf %90 : vector<16x128xf32>
    %92 = math.exp %91 : vector<16x128xf32>
    %cst_30 = arith.constant 1.000000e+00 : f32
    %93 = vector.broadcast %cst_30 : f32 to vector<16x128xf32>
    %94 = arith.addf %93, %92 : vector<16x128xf32>
    %95 = arith.divf %93, %94 : vector<16x128xf32>
    %96 = arith.addf %95, %95 : vector<16x128xf32>
    %cst_31 = arith.constant 1.000000e+00 : f32
    %97 = vector.broadcast %cst_31 : f32 to vector<16x128xf32>
    %98 = arith.subf %96, %97 : vector<16x128xf32>
    %99 = arith.select %18, %98, %95 : vector<16x128xi1>, vector<16x128xf32>
    %100 = vector.extract_strided_slice %99 {offsets = [0, 0], sizes = [16, 32], strides = [1, 1]} : vector<16x128xf32> to vector<16x32xf32>
    %101 = vector.extract_strided_slice %99 {offsets = [0, 32], sizes = [16, 32], strides = [1, 1]} : vector<16x128xf32> to vector<16x32xf32>
    %102 = vector.extract_strided_slice %99 {offsets = [0, 64], sizes = [16, 32], strides = [1, 1]} : vector<16x128xf32> to vector<16x32xf32>
    %103 = vector.extract_strided_slice %99 {offsets = [0, 96], sizes = [16, 32], strides = [1, 1]} : vector<16x128xf32> to vector<16x32xf32>
    %104 = arith.mulf %101, %49 : vector<16x32xf32>
    %105 = arith.mulf %100, %102 : vector<16x32xf32>
    %106 = arith.addf %104, %105 : vector<16x32xf32>
    %107 = math.tanh %106 : vector<16x32xf32>
    %108 = arith.mulf %103, %107 : vector<16x32xf32>
    %109 = arith.select %84, %106, %49 : vector<16x32xi1>, vector<16x32xf32>
    %110 = arith.select %84, %108, %50 : vector<16x32xi1>, vector<16x32xf32>
    %111 = arith.truncf %110 : vector<16x32xf32> to vector<16x32xbf16>
    %cst_32 = arith.constant dense<0.000000e+00> : vector<16x128xf32>
    %112 = tpu.matmul %111, %7, %cst_32 {dimension_numbers = #tpu.dot_dimension_numbers<[1], [0], [0], [1], [0, 0, 1, 1], [], []>} : vector<16x32xbf16>, vector<32x128xbf16>, vector<16x128xf32> -> vector<16x128xf32>
    %113 = arith.truncf %79 : vector<16x32xf32> to vector<16x32xbf16>
    %cst_33 = arith.constant dense<0.000000e+00> : vector<16x128xf32>
    %114 = tpu.matmul %113, %8, %cst_33 {dimension_numbers = #tpu.dot_dimension_numbers<[1], [0], [0], [1], [0, 0, 1, 1], [], []>} : vector<16x32xbf16>, vector<32x128xbf16>, vector<16x128xf32> -> vector<16x128xf32>
    %115 = arith.addf %112, %114 : vector<16x128xf32>
    %116 = vector.broadcast %9 : vector<1x128xf32> to vector<16x128xf32>
    %117 = arith.addf %115, %116 : vector<16x128xf32>
    %118 = arith.addf %117, %117 : vector<16x128xf32>
    %119 = arith.select %18, %118, %117 : vector<16x128xi1>, vector<16x128xf32>
    %120 = arith.negf %119 : vector<16x128xf32>
    %121 = math.exp %120 : vector<16x128xf32>
    %cst_34 = arith.constant 1.000000e+00 : f32
    %122 = vector.broadcast %cst_34 : f32 to vector<16x128xf32>
    %123 = arith.addf %122, %121 : vector<16x128xf32>
    %124 = arith.divf %122, %123 : vector<16x128xf32>
    %125 = arith.addf %124, %124 : vector<16x128xf32>
    %cst_35 = arith.constant 1.000000e+00 : f32
    %126 = vector.broadcast %cst_35 : f32 to vector<16x128xf32>
    %127 = arith.subf %125, %126 : vector<16x128xf32>
    %128 = arith.select %18, %127, %124 : vector<16x128xi1>, vector<16x128xf32>
    %129 = vector.extract_strided_slice %128 {offsets = [0, 0], sizes = [16, 32], strides = [1, 1]} : vector<16x128xf32> to vector<16x32xf32>
    %130 = vector.extract_strided_slice %128 {offsets = [0, 32], sizes = [16, 32], strides = [1, 1]} : vector<16x128xf32> to vector<16x32xf32>
    %131 = vector.extract_strided_slice %128 {offsets = [0, 64], sizes = [16, 32], strides = [1, 1]} : vector<16x128xf32> to vector<16x32xf32>
    %132 = vector.extract_strided_slice %128 {offsets = [0, 96], sizes = [16, 32], strides = [1, 1]} : vector<16x128xf32> to vector<16x32xf32>
    %133 = arith.mulf %130, %78 : vector<16x32xf32>
    %134 = arith.mulf %129, %131 : vector<16x32xf32>
    %135 = arith.addf %133, %134 : vector<16x32xf32>
    %136 = math.tanh %135 : vector<16x32xf32>
    %137 = arith.mulf %132, %136 : vector<16x32xf32>
    %138 = arith.select %84, %135, %78 : vector<16x32xi1>, vector<16x32xf32>
    %139 = arith.select %84, %137, %79 : vector<16x32xi1>, vector<16x32xf32>
    %cst_36 = arith.constant 0.000000e+00 : f32
    %140 = vector.broadcast %cst_36 : f32 to vector<16x32xf32>
    %141 = arith.select %84, %139, %140 : vector<16x32xi1>, vector<16x32xf32>
    %c16 = arith.constant 16 : index
    %c0_37 = arith.constant 0 : index
    %142 = vector.load %arg11[%c16, %c0_37] : memref<128x32xf32, #tpu.memory_space<vmem>>, vector<16x32xf32>
    tpu.vector_store %arg11[%c16, %c0_37], %141 {strides = array<i32>} : memref<128x32xf32, #tpu.memory_space<vmem>>, vector<16x32xf32>,
    %c2_i32 = arith.constant 2 : i32
    %143 = vector.broadcast %c2_i32 : i32 to vector<16x32xi32>
    %144 = arith.cmpi sgt, %12, %143 : vector<16x32xi32>
    %145 = vector.extract_strided_slice %5 {offsets = [32, 0], sizes = [16, 128], strides = [1, 1]} : vector<128x128xf32> to vector<16x128xf32>
    %146 = arith.truncf %110 : vector<16x32xf32> to vector<16x32xbf16>
    %cst_38 = arith.constant dense<0.000000e+00> : vector<16x128xf32>
    %147 = tpu.matmul %146, %6, %cst_38 {dimension_numbers = #tpu.dot_dimension_numbers<[1], [0], [0], [1], [0, 0, 1, 1], [], []>} : vector<16x32xbf16>, vector<32x128xbf16>, vector<16x128xf32> -> vector<16x128xf32>
    %148 = arith.addf %145, %147 : vector<16x128xf32>
    %149 = arith.addf %148, %148 : vector<16x128xf32>
    %150 = arith.select %18, %149, %148 : vector<16x128xi1>, vector<16x128xf32>
    %151 = arith.negf %150 : vector<16x128xf32>
    %152 = math.exp %151 : vector<16x128xf32>
    %cst_39 = arith.constant 1.000000e+00 : f32
    %153 = vector.broadcast %cst_39 : f32 to vector<16x128xf32>
    %154 = arith.addf %153, %152 : vector<16x128xf32>
    %155 = arith.divf %153, %154 : vector<16x128xf32>
    %156 = arith.addf %155, %155 : vector<16x128xf32>
    %cst_40 = arith.constant 1.000000e+00 : f32
    %157 = vector.broadcast %cst_40 : f32 to vector<16x128xf32>
    %158 = arith.subf %156, %157 : vector<16x128xf32>
    %159 = arith.select %18, %158, %155 : vector<16x128xi1>, vector<16x128xf32>
    %160 = vector.extract_strided_slice %159 {offsets = [0, 0], sizes = [16, 32], strides = [1, 1]} : vector<16x128xf32> to vector<16x32xf32>
    %161 = vector.extract_strided_slice %159 {offsets = [0, 32], sizes = [16, 32], strides = [1, 1]} : vector<16x128xf32> to vector<16x32xf32>
    %162 = vector.extract_strided_slice %159 {offsets = [0, 64], sizes = [16, 32], strides = [1, 1]} : vector<16x128xf32> to vector<16x32xf32>
    %163 = vector.extract_strided_slice %159 {offsets = [0, 96], sizes = [16, 32], strides = [1, 1]} : vector<16x128xf32> to vector<16x32xf32>
    %164 = arith.mulf %161, %109 : vector<16x32xf32>
    %165 = arith.mulf %160, %162 : vector<16x32xf32>
    %166 = arith.addf %164, %165 : vector<16x32xf32>
    %167 = math.tanh %166 : vector<16x32xf32>
    %168 = arith.mulf %163, %167 : vector<16x32xf32>
    %169 = arith.select %144, %166, %109 : vector<16x32xi1>, vector<16x32xf32>
    %170 = arith.select %144, %168, %110 : vector<16x32xi1>, vector<16x32xf32>
    %171 = arith.truncf %170 : vector<16x32xf32> to vector<16x32xbf16>
    %cst_41 = arith.constant dense<0.000000e+00> : vector<16x128xf32>
    %172 = tpu.matmul %171, %7, %cst_41 {dimension_numbers = #tpu.dot_dimension_numbers<[1], [0], [0], [1], [0, 0, 1, 1], [], []>} : vector<16x32xbf16>, vector<32x128xbf16>, vector<16x128xf32> -> vector<16x128xf32>
    %173 = arith.truncf %139 : vector<16x32xf32> to vector<16x32xbf16>
    %cst_42 = arith.constant dense<0.000000e+00> : vector<16x128xf32>
    %174 = tpu.matmul %173, %8, %cst_42 {dimension_numbers = #tpu.dot_dimension_numbers<[1], [0], [0], [1], [0, 0, 1, 1], [], []>} : vector<16x32xbf16>, vector<32x128xbf16>, vector<16x128xf32> -> vector<16x128xf32>
    %175 = arith.addf %172, %174 : vector<16x128xf32>
    %176 = vector.broadcast %9 : vector<1x128xf32> to vector<16x128xf32>
    %177 = arith.addf %175, %176 : vector<16x128xf32>
    %178 = arith.addf %177, %177 : vector<16x128xf32>
    %179 = arith.select %18, %178, %177 : vector<16x128xi1>, vector<16x128xf32>
    %180 = arith.negf %179 : vector<16x128xf32>
    %181 = math.exp %180 : vector<16x128xf32>
    %cst_43 = arith.constant 1.000000e+00 : f32
    %182 = vector.broadcast %cst_43 : f32 to vector<16x128xf32>
    %183 = arith.addf %182, %181 : vector<16x128xf32>
    %184 = arith.divf %182, %183 : vector<16x128xf32>
    %185 = arith.addf %184, %184 : vector<16x128xf32>
    %cst_44 = arith.constant 1.000000e+00 : f32
    %186 = vector.broadcast %cst_44 : f32 to vector<16x128xf32>
    %187 = arith.subf %185, %186 : vector<16x128xf32>
    %188 = arith.select %18, %187, %184 : vector<16x128xi1>, vector<16x128xf32>
    %189 = vector.extract_strided_slice %188 {offsets = [0, 0], sizes = [16, 32], strides = [1, 1]} : vector<16x128xf32> to vector<16x32xf32>
    %190 = vector.extract_strided_slice %188 {offsets = [0, 32], sizes = [16, 32], strides = [1, 1]} : vector<16x128xf32> to vector<16x32xf32>
    %191 = vector.extract_strided_slice %188 {offsets = [0, 64], sizes = [16, 32], strides = [1, 1]} : vector<16x128xf32> to vector<16x32xf32>
    %192 = vector.extract_strided_slice %188 {offsets = [0, 96], sizes = [16, 32], strides = [1, 1]} : vector<16x128xf32> to vector<16x32xf32>
    %193 = arith.mulf %190, %138 : vector<16x32xf32>
    %194 = arith.mulf %189, %191 : vector<16x32xf32>
    %195 = arith.addf %193, %194 : vector<16x32xf32>
    %196 = math.tanh %195 : vector<16x32xf32>
    %197 = arith.mulf %192, %196 : vector<16x32xf32>
    %198 = arith.select %144, %195, %138 : vector<16x32xi1>, vector<16x32xf32>
    %199 = arith.select %144, %197, %139 : vector<16x32xi1>, vector<16x32xf32>
    %cst_45 = arith.constant 0.000000e+00 : f32
    %200 = vector.broadcast %cst_45 : f32 to vector<16x32xf32>
    %201 = arith.select %144, %199, %200 : vector<16x32xi1>, vector<16x32xf32>
    %c32 = arith.constant 32 : index
    %c0_46 = arith.constant 0 : index
    %202 = vector.load %arg11[%c32, %c0_46] : memref<128x32xf32, #tpu.memory_space<vmem>>, vector<16x32xf32>
    tpu.vector_store %arg11[%c32, %c0_46], %201 {strides = array<i32>} : memref<128x32xf32, #tpu.memory_space<vmem>>, vector<16x32xf32>,
    %c3_i32 = arith.constant 3 : i32
    %203 = vector.broadcast %c3_i32 : i32 to vector<16x32xi32>
    %204 = arith.cmpi sgt, %12, %203 : vector<16x32xi32>
    %205 = vector.extract_strided_slice %5 {offsets = [48, 0], sizes = [16, 128], strides = [1, 1]} : vector<128x128xf32> to vector<16x128xf32>
    %206 = arith.truncf %170 : vector<16x32xf32> to vector<16x32xbf16>
    %cst_47 = arith.constant dense<0.000000e+00> : vector<16x128xf32>
    %207 = tpu.matmul %206, %6, %cst_47 {dimension_numbers = #tpu.dot_dimension_numbers<[1], [0], [0], [1], [0, 0, 1, 1], [], []>} : vector<16x32xbf16>, vector<32x128xbf16>, vector<16x128xf32> -> vector<16x128xf32>
    %208 = arith.addf %205, %207 : vector<16x128xf32>
    %209 = arith.addf %208, %208 : vector<16x128xf32>
    %210 = arith.select %18, %209, %208 : vector<16x128xi1>, vector<16x128xf32>
    %211 = arith.negf %210 : vector<16x128xf32>
    %212 = math.exp %211 : vector<16x128xf32>
    %cst_48 = arith.constant 1.000000e+00 : f32
    %213 = vector.broadcast %cst_48 : f32 to vector<16x128xf32>
    %214 = arith.addf %213, %212 : vector<16x128xf32>
    %215 = arith.divf %213, %214 : vector<16x128xf32>
    %216 = arith.addf %215, %215 : vector<16x128xf32>
    %cst_49 = arith.constant 1.000000e+00 : f32
    %217 = vector.broadcast %cst_49 : f32 to vector<16x128xf32>
    %218 = arith.subf %216, %217 : vector<16x128xf32>
    %219 = arith.select %18, %218, %215 : vector<16x128xi1>, vector<16x128xf32>
    %220 = vector.extract_strided_slice %219 {offsets = [0, 0], sizes = [16, 32], strides = [1, 1]} : vector<16x128xf32> to vector<16x32xf32>
    %221 = vector.extract_strided_slice %219 {offsets = [0, 32], sizes = [16, 32], strides = [1, 1]} : vector<16x128xf32> to vector<16x32xf32>
    %222 = vector.extract_strided_slice %219 {offsets = [0, 64], sizes = [16, 32], strides = [1, 1]} : vector<16x128xf32> to vector<16x32xf32>
    %223 = vector.extract_strided_slice %219 {offsets = [0, 96], sizes = [16, 32], strides = [1, 1]} : vector<16x128xf32> to vector<16x32xf32>
    %224 = arith.mulf %221, %169 : vector<16x32xf32>
    %225 = arith.mulf %220, %222 : vector<16x32xf32>
    %226 = arith.addf %224, %225 : vector<16x32xf32>
    %227 = math.tanh %226 : vector<16x32xf32>
    %228 = arith.mulf %223, %227 : vector<16x32xf32>
    %229 = arith.select %204, %226, %169 : vector<16x32xi1>, vector<16x32xf32>
    %230 = arith.select %204, %228, %170 : vector<16x32xi1>, vector<16x32xf32>
    %231 = arith.truncf %230 : vector<16x32xf32> to vector<16x32xbf16>
    %cst_50 = arith.constant dense<0.000000e+00> : vector<16x128xf32>
    %232 = tpu.matmul %231, %7, %cst_50 {dimension_numbers = #tpu.dot_dimension_numbers<[1], [0], [0], [1], [0, 0, 1, 1], [], []>} : vector<16x32xbf16>, vector<32x128xbf16>, vector<16x128xf32> -> vector<16x128xf32>
    %233 = arith.truncf %199 : vector<16x32xf32> to vector<16x32xbf16>
    %cst_51 = arith.constant dense<0.000000e+00> : vector<16x128xf32>
    %234 = tpu.matmul %233, %8, %cst_51 {dimension_numbers = #tpu.dot_dimension_numbers<[1], [0], [0], [1], [0, 0, 1, 1], [], []>} : vector<16x32xbf16>, vector<32x128xbf16>, vector<16x128xf32> -> vector<16x128xf32>
    %235 = arith.addf %232, %234 : vector<16x128xf32>
    %236 = vector.broadcast %9 : vector<1x128xf32> to vector<16x128xf32>
    %237 = arith.addf %235, %236 : vector<16x128xf32>
    %238 = arith.addf %237, %237 : vector<16x128xf32>
    %239 = arith.select %18, %238, %237 : vector<16x128xi1>, vector<16x128xf32>
    %240 = arith.negf %239 : vector<16x128xf32>
    %241 = math.exp %240 : vector<16x128xf32>
    %cst_52 = arith.constant 1.000000e+00 : f32
    %242 = vector.broadcast %cst_52 : f32 to vector<16x128xf32>
    %243 = arith.addf %242, %241 : vector<16x128xf32>
    %244 = arith.divf %242, %243 : vector<16x128xf32>
    %245 = arith.addf %244, %244 : vector<16x128xf32>
    %cst_53 = arith.constant 1.000000e+00 : f32
    %246 = vector.broadcast %cst_53 : f32 to vector<16x128xf32>
    %247 = arith.subf %245, %246 : vector<16x128xf32>
    %248 = arith.select %18, %247, %244 : vector<16x128xi1>, vector<16x128xf32>
    %249 = vector.extract_strided_slice %248 {offsets = [0, 0], sizes = [16, 32], strides = [1, 1]} : vector<16x128xf32> to vector<16x32xf32>
    %250 = vector.extract_strided_slice %248 {offsets = [0, 32], sizes = [16, 32], strides = [1, 1]} : vector<16x128xf32> to vector<16x32xf32>
    %251 = vector.extract_strided_slice %248 {offsets = [0, 64], sizes = [16, 32], strides = [1, 1]} : vector<16x128xf32> to vector<16x32xf32>
    %252 = vector.extract_strided_slice %248 {offsets = [0, 96], sizes = [16, 32], strides = [1, 1]} : vector<16x128xf32> to vector<16x32xf32>
    %253 = arith.mulf %250, %198 : vector<16x32xf32>
    %254 = arith.mulf %249, %251 : vector<16x32xf32>
    %255 = arith.addf %253, %254 : vector<16x32xf32>
    %256 = math.tanh %255 : vector<16x32xf32>
    %257 = arith.mulf %252, %256 : vector<16x32xf32>
    %258 = arith.select %204, %255, %198 : vector<16x32xi1>, vector<16x32xf32>
    %259 = arith.select %204, %257, %199 : vector<16x32xi1>, vector<16x32xf32>
    %cst_54 = arith.constant 0.000000e+00 : f32
    %260 = vector.broadcast %cst_54 : f32 to vector<16x32xf32>
    %261 = arith.select %204, %259, %260 : vector<16x32xi1>, vector<16x32xf32>
    %c48 = arith.constant 48 : index
    %c0_55 = arith.constant 0 : index
    %262 = vector.load %arg11[%c48, %c0_55] : memref<128x32xf32, #tpu.memory_space<vmem>>, vector<16x32xf32>
    tpu.vector_store %arg11[%c48, %c0_55], %261 {strides = array<i32>} : memref<128x32xf32, #tpu.memory_space<vmem>>, vector<16x32xf32>,
    %c4_i32 = arith.constant 4 : i32
    %263 = vector.broadcast %c4_i32 : i32 to vector<16x32xi32>
    %264 = arith.cmpi sgt, %12, %263 : vector<16x32xi32>
    %265 = vector.extract_strided_slice %5 {offsets = [64, 0], sizes = [16, 128], strides = [1, 1]} : vector<128x128xf32> to vector<16x128xf32>
    %266 = arith.truncf %230 : vector<16x32xf32> to vector<16x32xbf16>
    %cst_56 = arith.constant dense<0.000000e+00> : vector<16x128xf32>
    %267 = tpu.matmul %266, %6, %cst_56 {dimension_numbers = #tpu.dot_dimension_numbers<[1], [0], [0], [1], [0, 0, 1, 1], [], []>} : vector<16x32xbf16>, vector<32x128xbf16>, vector<16x128xf32> -> vector<16x128xf32>
    %268 = arith.addf %265, %267 : vector<16x128xf32>
    %269 = arith.addf %268, %268 : vector<16x128xf32>
    %270 = arith.select %18, %269, %268 : vector<16x128xi1>, vector<16x128xf32>
    %271 = arith.negf %270 : vector<16x128xf32>
    %272 = math.exp %271 : vector<16x128xf32>
    %cst_57 = arith.constant 1.000000e+00 : f32
    %273 = vector.broadcast %cst_57 : f32 to vector<16x128xf32>
    %274 = arith.addf %273, %272 : vector<16x128xf32>
    %275 = arith.divf %273, %274 : vector<16x128xf32>
    %276 = arith.addf %275, %275 : vector<16x128xf32>
    %cst_58 = arith.constant 1.000000e+00 : f32
    %277 = vector.broadcast %cst_58 : f32 to vector<16x128xf32>
    %278 = arith.subf %276, %277 : vector<16x128xf32>
    %279 = arith.select %18, %278, %275 : vector<16x128xi1>, vector<16x128xf32>
    %280 = vector.extract_strided_slice %279 {offsets = [0, 0], sizes = [16, 32], strides = [1, 1]} : vector<16x128xf32> to vector<16x32xf32>
    %281 = vector.extract_strided_slice %279 {offsets = [0, 32], sizes = [16, 32], strides = [1, 1]} : vector<16x128xf32> to vector<16x32xf32>
    %282 = vector.extract_strided_slice %279 {offsets = [0, 64], sizes = [16, 32], strides = [1, 1]} : vector<16x128xf32> to vector<16x32xf32>
    %283 = vector.extract_strided_slice %279 {offsets = [0, 96], sizes = [16, 32], strides = [1, 1]} : vector<16x128xf32> to vector<16x32xf32>
    %284 = arith.mulf %281, %229 : vector<16x32xf32>
    %285 = arith.mulf %280, %282 : vector<16x32xf32>
    %286 = arith.addf %284, %285 : vector<16x32xf32>
    %287 = math.tanh %286 : vector<16x32xf32>
    %288 = arith.mulf %283, %287 : vector<16x32xf32>
    %289 = arith.select %264, %286, %229 : vector<16x32xi1>, vector<16x32xf32>
    %290 = arith.select %264, %288, %230 : vector<16x32xi1>, vector<16x32xf32>
    %291 = arith.truncf %290 : vector<16x32xf32> to vector<16x32xbf16>
    %cst_59 = arith.constant dense<0.000000e+00> : vector<16x128xf32>
    %292 = tpu.matmul %291, %7, %cst_59 {dimension_numbers = #tpu.dot_dimension_numbers<[1], [0], [0], [1], [0, 0, 1, 1], [], []>} : vector<16x32xbf16>, vector<32x128xbf16>, vector<16x128xf32> -> vector<16x128xf32>
    %293 = arith.truncf %259 : vector<16x32xf32> to vector<16x32xbf16>
    %cst_60 = arith.constant dense<0.000000e+00> : vector<16x128xf32>
    %294 = tpu.matmul %293, %8, %cst_60 {dimension_numbers = #tpu.dot_dimension_numbers<[1], [0], [0], [1], [0, 0, 1, 1], [], []>} : vector<16x32xbf16>, vector<32x128xbf16>, vector<16x128xf32> -> vector<16x128xf32>
    %295 = arith.addf %292, %294 : vector<16x128xf32>
    %296 = vector.broadcast %9 : vector<1x128xf32> to vector<16x128xf32>
    %297 = arith.addf %295, %296 : vector<16x128xf32>
    %298 = arith.addf %297, %297 : vector<16x128xf32>
    %299 = arith.select %18, %298, %297 : vector<16x128xi1>, vector<16x128xf32>
    %300 = arith.negf %299 : vector<16x128xf32>
    %301 = math.exp %300 : vector<16x128xf32>
    %cst_61 = arith.constant 1.000000e+00 : f32
    %302 = vector.broadcast %cst_61 : f32 to vector<16x128xf32>
    %303 = arith.addf %302, %301 : vector<16x128xf32>
    %304 = arith.divf %302, %303 : vector<16x128xf32>
    %305 = arith.addf %304, %304 : vector<16x128xf32>
    %cst_62 = arith.constant 1.000000e+00 : f32
    %306 = vector.broadcast %cst_62 : f32 to vector<16x128xf32>
    %307 = arith.subf %305, %306 : vector<16x128xf32>
    %308 = arith.select %18, %307, %304 : vector<16x128xi1>, vector<16x128xf32>
    %309 = vector.extract_strided_slice %308 {offsets = [0, 0], sizes = [16, 32], strides = [1, 1]} : vector<16x128xf32> to vector<16x32xf32>
    %310 = vector.extract_strided_slice %308 {offsets = [0, 32], sizes = [16, 32], strides = [1, 1]} : vector<16x128xf32> to vector<16x32xf32>
    %311 = vector.extract_strided_slice %308 {offsets = [0, 64], sizes = [16, 32], strides = [1, 1]} : vector<16x128xf32> to vector<16x32xf32>
    %312 = vector.extract_strided_slice %308 {offsets = [0, 96], sizes = [16, 32], strides = [1, 1]} : vector<16x128xf32> to vector<16x32xf32>
    %313 = arith.mulf %310, %258 : vector<16x32xf32>
    %314 = arith.mulf %309, %311 : vector<16x32xf32>
    %315 = arith.addf %313, %314 : vector<16x32xf32>
    %316 = math.tanh %315 : vector<16x32xf32>
    %317 = arith.mulf %312, %316 : vector<16x32xf32>
    %318 = arith.select %264, %315, %258 : vector<16x32xi1>, vector<16x32xf32>
    %319 = arith.select %264, %317, %259 : vector<16x32xi1>, vector<16x32xf32>
    %cst_63 = arith.constant 0.000000e+00 : f32
    %320 = vector.broadcast %cst_63 : f32 to vector<16x32xf32>
    %321 = arith.select %264, %319, %320 : vector<16x32xi1>, vector<16x32xf32>
    %c64 = arith.constant 64 : index
    %c0_64 = arith.constant 0 : index
    %322 = vector.load %arg11[%c64, %c0_64] : memref<128x32xf32, #tpu.memory_space<vmem>>, vector<16x32xf32>
    tpu.vector_store %arg11[%c64, %c0_64], %321 {strides = array<i32>} : memref<128x32xf32, #tpu.memory_space<vmem>>, vector<16x32xf32>,
    %c5_i32 = arith.constant 5 : i32
    %323 = vector.broadcast %c5_i32 : i32 to vector<16x32xi32>
    %324 = arith.cmpi sgt, %12, %323 : vector<16x32xi32>
    %325 = vector.extract_strided_slice %5 {offsets = [80, 0], sizes = [16, 128], strides = [1, 1]} : vector<128x128xf32> to vector<16x128xf32>
    %326 = arith.truncf %290 : vector<16x32xf32> to vector<16x32xbf16>
    %cst_65 = arith.constant dense<0.000000e+00> : vector<16x128xf32>
    %327 = tpu.matmul %326, %6, %cst_65 {dimension_numbers = #tpu.dot_dimension_numbers<[1], [0], [0], [1], [0, 0, 1, 1], [], []>} : vector<16x32xbf16>, vector<32x128xbf16>, vector<16x128xf32> -> vector<16x128xf32>
    %328 = arith.addf %325, %327 : vector<16x128xf32>
    %329 = arith.addf %328, %328 : vector<16x128xf32>
    %330 = arith.select %18, %329, %328 : vector<16x128xi1>, vector<16x128xf32>
    %331 = arith.negf %330 : vector<16x128xf32>
    %332 = math.exp %331 : vector<16x128xf32>
    %cst_66 = arith.constant 1.000000e+00 : f32
    %333 = vector.broadcast %cst_66 : f32 to vector<16x128xf32>
    %334 = arith.addf %333, %332 : vector<16x128xf32>
    %335 = arith.divf %333, %334 : vector<16x128xf32>
    %336 = arith.addf %335, %335 : vector<16x128xf32>
    %cst_67 = arith.constant 1.000000e+00 : f32
    %337 = vector.broadcast %cst_67 : f32 to vector<16x128xf32>
    %338 = arith.subf %336, %337 : vector<16x128xf32>
    %339 = arith.select %18, %338, %335 : vector<16x128xi1>, vector<16x128xf32>
    %340 = vector.extract_strided_slice %339 {offsets = [0, 0], sizes = [16, 32], strides = [1, 1]} : vector<16x128xf32> to vector<16x32xf32>
    %341 = vector.extract_strided_slice %339 {offsets = [0, 32], sizes = [16, 32], strides = [1, 1]} : vector<16x128xf32> to vector<16x32xf32>
    %342 = vector.extract_strided_slice %339 {offsets = [0, 64], sizes = [16, 32], strides = [1, 1]} : vector<16x128xf32> to vector<16x32xf32>
    %343 = vector.extract_strided_slice %339 {offsets = [0, 96], sizes = [16, 32], strides = [1, 1]} : vector<16x128xf32> to vector<16x32xf32>
    %344 = arith.mulf %341, %289 : vector<16x32xf32>
    %345 = arith.mulf %340, %342 : vector<16x32xf32>
    %346 = arith.addf %344, %345 : vector<16x32xf32>
    %347 = math.tanh %346 : vector<16x32xf32>
    %348 = arith.mulf %343, %347 : vector<16x32xf32>
    %349 = arith.select %324, %346, %289 : vector<16x32xi1>, vector<16x32xf32>
    %350 = arith.select %324, %348, %290 : vector<16x32xi1>, vector<16x32xf32>
    %351 = arith.truncf %350 : vector<16x32xf32> to vector<16x32xbf16>
    %cst_68 = arith.constant dense<0.000000e+00> : vector<16x128xf32>
    %352 = tpu.matmul %351, %7, %cst_68 {dimension_numbers = #tpu.dot_dimension_numbers<[1], [0], [0], [1], [0, 0, 1, 1], [], []>} : vector<16x32xbf16>, vector<32x128xbf16>, vector<16x128xf32> -> vector<16x128xf32>
    %353 = arith.truncf %319 : vector<16x32xf32> to vector<16x32xbf16>
    %cst_69 = arith.constant dense<0.000000e+00> : vector<16x128xf32>
    %354 = tpu.matmul %353, %8, %cst_69 {dimension_numbers = #tpu.dot_dimension_numbers<[1], [0], [0], [1], [0, 0, 1, 1], [], []>} : vector<16x32xbf16>, vector<32x128xbf16>, vector<16x128xf32> -> vector<16x128xf32>
    %355 = arith.addf %352, %354 : vector<16x128xf32>
    %356 = vector.broadcast %9 : vector<1x128xf32> to vector<16x128xf32>
    %357 = arith.addf %355, %356 : vector<16x128xf32>
    %358 = arith.addf %357, %357 : vector<16x128xf32>
    %359 = arith.select %18, %358, %357 : vector<16x128xi1>, vector<16x128xf32>
    %360 = arith.negf %359 : vector<16x128xf32>
    %361 = math.exp %360 : vector<16x128xf32>
    %cst_70 = arith.constant 1.000000e+00 : f32
    %362 = vector.broadcast %cst_70 : f32 to vector<16x128xf32>
    %363 = arith.addf %362, %361 : vector<16x128xf32>
    %364 = arith.divf %362, %363 : vector<16x128xf32>
    %365 = arith.addf %364, %364 : vector<16x128xf32>
    %cst_71 = arith.constant 1.000000e+00 : f32
    %366 = vector.broadcast %cst_71 : f32 to vector<16x128xf32>
    %367 = arith.subf %365, %366 : vector<16x128xf32>
    %368 = arith.select %18, %367, %364 : vector<16x128xi1>, vector<16x128xf32>
    %369 = vector.extract_strided_slice %368 {offsets = [0, 0], sizes = [16, 32], strides = [1, 1]} : vector<16x128xf32> to vector<16x32xf32>
    %370 = vector.extract_strided_slice %368 {offsets = [0, 32], sizes = [16, 32], strides = [1, 1]} : vector<16x128xf32> to vector<16x32xf32>
    %371 = vector.extract_strided_slice %368 {offsets = [0, 64], sizes = [16, 32], strides = [1, 1]} : vector<16x128xf32> to vector<16x32xf32>
    %372 = vector.extract_strided_slice %368 {offsets = [0, 96], sizes = [16, 32], strides = [1, 1]} : vector<16x128xf32> to vector<16x32xf32>
    %373 = arith.mulf %370, %318 : vector<16x32xf32>
    %374 = arith.mulf %369, %371 : vector<16x32xf32>
    %375 = arith.addf %373, %374 : vector<16x32xf32>
    %376 = math.tanh %375 : vector<16x32xf32>
    %377 = arith.mulf %372, %376 : vector<16x32xf32>
    %378 = arith.select %324, %375, %318 : vector<16x32xi1>, vector<16x32xf32>
    %379 = arith.select %324, %377, %319 : vector<16x32xi1>, vector<16x32xf32>
    %cst_72 = arith.constant 0.000000e+00 : f32
    %380 = vector.broadcast %cst_72 : f32 to vector<16x32xf32>
    %381 = arith.select %324, %379, %380 : vector<16x32xi1>, vector<16x32xf32>
    %c80 = arith.constant 80 : index
    %c0_73 = arith.constant 0 : index
    %382 = vector.load %arg11[%c80, %c0_73] : memref<128x32xf32, #tpu.memory_space<vmem>>, vector<16x32xf32>
    tpu.vector_store %arg11[%c80, %c0_73], %381 {strides = array<i32>} : memref<128x32xf32, #tpu.memory_space<vmem>>, vector<16x32xf32>,
    %c6_i32 = arith.constant 6 : i32
    %383 = vector.broadcast %c6_i32 : i32 to vector<16x32xi32>
    %384 = arith.cmpi sgt, %12, %383 : vector<16x32xi32>
    %385 = vector.extract_strided_slice %5 {offsets = [96, 0], sizes = [16, 128], strides = [1, 1]} : vector<128x128xf32> to vector<16x128xf32>
    %386 = arith.truncf %350 : vector<16x32xf32> to vector<16x32xbf16>
    %cst_74 = arith.constant dense<0.000000e+00> : vector<16x128xf32>
    %387 = tpu.matmul %386, %6, %cst_74 {dimension_numbers = #tpu.dot_dimension_numbers<[1], [0], [0], [1], [0, 0, 1, 1], [], []>} : vector<16x32xbf16>, vector<32x128xbf16>, vector<16x128xf32> -> vector<16x128xf32>
    %388 = arith.addf %385, %387 : vector<16x128xf32>
    %389 = arith.addf %388, %388 : vector<16x128xf32>
    %390 = arith.select %18, %389, %388 : vector<16x128xi1>, vector<16x128xf32>
    %391 = arith.negf %390 : vector<16x128xf32>
    %392 = math.exp %391 : vector<16x128xf32>
    %cst_75 = arith.constant 1.000000e+00 : f32
    %393 = vector.broadcast %cst_75 : f32 to vector<16x128xf32>
    %394 = arith.addf %393, %392 : vector<16x128xf32>
    %395 = arith.divf %393, %394 : vector<16x128xf32>
    %396 = arith.addf %395, %395 : vector<16x128xf32>
    %cst_76 = arith.constant 1.000000e+00 : f32
    %397 = vector.broadcast %cst_76 : f32 to vector<16x128xf32>
    %398 = arith.subf %396, %397 : vector<16x128xf32>
    %399 = arith.select %18, %398, %395 : vector<16x128xi1>, vector<16x128xf32>
    %400 = vector.extract_strided_slice %399 {offsets = [0, 0], sizes = [16, 32], strides = [1, 1]} : vector<16x128xf32> to vector<16x32xf32>
    %401 = vector.extract_strided_slice %399 {offsets = [0, 32], sizes = [16, 32], strides = [1, 1]} : vector<16x128xf32> to vector<16x32xf32>
    %402 = vector.extract_strided_slice %399 {offsets = [0, 64], sizes = [16, 32], strides = [1, 1]} : vector<16x128xf32> to vector<16x32xf32>
    %403 = vector.extract_strided_slice %399 {offsets = [0, 96], sizes = [16, 32], strides = [1, 1]} : vector<16x128xf32> to vector<16x32xf32>
    %404 = arith.mulf %401, %349 : vector<16x32xf32>
    %405 = arith.mulf %400, %402 : vector<16x32xf32>
    %406 = arith.addf %404, %405 : vector<16x32xf32>
    %407 = math.tanh %406 : vector<16x32xf32>
    %408 = arith.mulf %403, %407 : vector<16x32xf32>
    %409 = arith.select %384, %406, %349 : vector<16x32xi1>, vector<16x32xf32>
    %410 = arith.select %384, %408, %350 : vector<16x32xi1>, vector<16x32xf32>
    %411 = arith.truncf %410 : vector<16x32xf32> to vector<16x32xbf16>
    %cst_77 = arith.constant dense<0.000000e+00> : vector<16x128xf32>
    %412 = tpu.matmul %411, %7, %cst_77 {dimension_numbers = #tpu.dot_dimension_numbers<[1], [0], [0], [1], [0, 0, 1, 1], [], []>} : vector<16x32xbf16>, vector<32x128xbf16>, vector<16x128xf32> -> vector<16x128xf32>
    %413 = arith.truncf %379 : vector<16x32xf32> to vector<16x32xbf16>
    %cst_78 = arith.constant dense<0.000000e+00> : vector<16x128xf32>
    %414 = tpu.matmul %413, %8, %cst_78 {dimension_numbers = #tpu.dot_dimension_numbers<[1], [0], [0], [1], [0, 0, 1, 1], [], []>} : vector<16x32xbf16>, vector<32x128xbf16>, vector<16x128xf32> -> vector<16x128xf32>
    %415 = arith.addf %412, %414 : vector<16x128xf32>
    %416 = vector.broadcast %9 : vector<1x128xf32> to vector<16x128xf32>
    %417 = arith.addf %415, %416 : vector<16x128xf32>
    %418 = arith.addf %417, %417 : vector<16x128xf32>
    %419 = arith.select %18, %418, %417 : vector<16x128xi1>, vector<16x128xf32>
    %420 = arith.negf %419 : vector<16x128xf32>
    %421 = math.exp %420 : vector<16x128xf32>
    %cst_79 = arith.constant 1.000000e+00 : f32
    %422 = vector.broadcast %cst_79 : f32 to vector<16x128xf32>
    %423 = arith.addf %422, %421 : vector<16x128xf32>
    %424 = arith.divf %422, %423 : vector<16x128xf32>
    %425 = arith.addf %424, %424 : vector<16x128xf32>
    %cst_80 = arith.constant 1.000000e+00 : f32
    %426 = vector.broadcast %cst_80 : f32 to vector<16x128xf32>
    %427 = arith.subf %425, %426 : vector<16x128xf32>
    %428 = arith.select %18, %427, %424 : vector<16x128xi1>, vector<16x128xf32>
    %429 = vector.extract_strided_slice %428 {offsets = [0, 0], sizes = [16, 32], strides = [1, 1]} : vector<16x128xf32> to vector<16x32xf32>
    %430 = vector.extract_strided_slice %428 {offsets = [0, 32], sizes = [16, 32], strides = [1, 1]} : vector<16x128xf32> to vector<16x32xf32>
    %431 = vector.extract_strided_slice %428 {offsets = [0, 64], sizes = [16, 32], strides = [1, 1]} : vector<16x128xf32> to vector<16x32xf32>
    %432 = vector.extract_strided_slice %428 {offsets = [0, 96], sizes = [16, 32], strides = [1, 1]} : vector<16x128xf32> to vector<16x32xf32>
    %433 = arith.mulf %430, %378 : vector<16x32xf32>
    %434 = arith.mulf %429, %431 : vector<16x32xf32>
    %435 = arith.addf %433, %434 : vector<16x32xf32>
    %436 = math.tanh %435 : vector<16x32xf32>
    %437 = arith.mulf %432, %436 : vector<16x32xf32>
    %438 = arith.select %384, %435, %378 : vector<16x32xi1>, vector<16x32xf32>
    %439 = arith.select %384, %437, %379 : vector<16x32xi1>, vector<16x32xf32>
    %cst_81 = arith.constant 0.000000e+00 : f32
    %440 = vector.broadcast %cst_81 : f32 to vector<16x32xf32>
    %441 = arith.select %384, %439, %440 : vector<16x32xi1>, vector<16x32xf32>
    %c96 = arith.constant 96 : index
    %c0_82 = arith.constant 0 : index
    %442 = vector.load %arg11[%c96, %c0_82] : memref<128x32xf32, #tpu.memory_space<vmem>>, vector<16x32xf32>
    tpu.vector_store %arg11[%c96, %c0_82], %441 {strides = array<i32>} : memref<128x32xf32, #tpu.memory_space<vmem>>, vector<16x32xf32>,
    %c7_i32 = arith.constant 7 : i32
    %443 = vector.broadcast %c7_i32 : i32 to vector<16x32xi32>
    %444 = arith.cmpi sgt, %12, %443 : vector<16x32xi32>
    %445 = vector.extract_strided_slice %5 {offsets = [112, 0], sizes = [16, 128], strides = [1, 1]} : vector<128x128xf32> to vector<16x128xf32>
    %446 = arith.truncf %410 : vector<16x32xf32> to vector<16x32xbf16>
    %cst_83 = arith.constant dense<0.000000e+00> : vector<16x128xf32>
    %447 = tpu.matmul %446, %6, %cst_83 {dimension_numbers = #tpu.dot_dimension_numbers<[1], [0], [0], [1], [0, 0, 1, 1], [], []>} : vector<16x32xbf16>, vector<32x128xbf16>, vector<16x128xf32> -> vector<16x128xf32>
    %448 = arith.addf %445, %447 : vector<16x128xf32>
    %449 = arith.addf %448, %448 : vector<16x128xf32>
    %450 = arith.select %18, %449, %448 : vector<16x128xi1>, vector<16x128xf32>
    %451 = arith.negf %450 : vector<16x128xf32>
    %452 = math.exp %451 : vector<16x128xf32>
    %cst_84 = arith.constant 1.000000e+00 : f32
    %453 = vector.broadcast %cst_84 : f32 to vector<16x128xf32>
    %454 = arith.addf %453, %452 : vector<16x128xf32>
    %455 = arith.divf %453, %454 : vector<16x128xf32>
    %456 = arith.addf %455, %455 : vector<16x128xf32>
    %cst_85 = arith.constant 1.000000e+00 : f32
    %457 = vector.broadcast %cst_85 : f32 to vector<16x128xf32>
    %458 = arith.subf %456, %457 : vector<16x128xf32>
    %459 = arith.select %18, %458, %455 : vector<16x128xi1>, vector<16x128xf32>
    %460 = vector.extract_strided_slice %459 {offsets = [0, 0], sizes = [16, 32], strides = [1, 1]} : vector<16x128xf32> to vector<16x32xf32>
    %461 = vector.extract_strided_slice %459 {offsets = [0, 32], sizes = [16, 32], strides = [1, 1]} : vector<16x128xf32> to vector<16x32xf32>
    %462 = vector.extract_strided_slice %459 {offsets = [0, 64], sizes = [16, 32], strides = [1, 1]} : vector<16x128xf32> to vector<16x32xf32>
    %463 = vector.extract_strided_slice %459 {offsets = [0, 96], sizes = [16, 32], strides = [1, 1]} : vector<16x128xf32> to vector<16x32xf32>
    %464 = arith.mulf %461, %409 : vector<16x32xf32>
    %465 = arith.mulf %460, %462 : vector<16x32xf32>
    %466 = arith.addf %464, %465 : vector<16x32xf32>
    %467 = math.tanh %466 : vector<16x32xf32>
    %468 = arith.mulf %463, %467 : vector<16x32xf32>
    %469 = arith.select %444, %468, %410 : vector<16x32xi1>, vector<16x32xf32>
    %470 = arith.truncf %469 : vector<16x32xf32> to vector<16x32xbf16>
    %cst_86 = arith.constant dense<0.000000e+00> : vector<16x128xf32>
    %471 = tpu.matmul %470, %7, %cst_86 {dimension_numbers = #tpu.dot_dimension_numbers<[1], [0], [0], [1], [0, 0, 1, 1], [], []>} : vector<16x32xbf16>, vector<32x128xbf16>, vector<16x128xf32> -> vector<16x128xf32>
    %472 = arith.truncf %439 : vector<16x32xf32> to vector<16x32xbf16>
    %cst_87 = arith.constant dense<0.000000e+00> : vector<16x128xf32>
    %473 = tpu.matmul %472, %8, %cst_87 {dimension_numbers = #tpu.dot_dimension_numbers<[1], [0], [0], [1], [0, 0, 1, 1], [], []>} : vector<16x32xbf16>, vector<32x128xbf16>, vector<16x128xf32> -> vector<16x128xf32>
    %474 = arith.addf %471, %473 : vector<16x128xf32>
    %475 = vector.broadcast %9 : vector<1x128xf32> to vector<16x128xf32>
    %476 = arith.addf %474, %475 : vector<16x128xf32>
    %477 = arith.addf %476, %476 : vector<16x128xf32>
    %478 = arith.select %18, %477, %476 : vector<16x128xi1>, vector<16x128xf32>
    %479 = arith.negf %478 : vector<16x128xf32>
    %480 = math.exp %479 : vector<16x128xf32>
    %cst_88 = arith.constant 1.000000e+00 : f32
    %481 = vector.broadcast %cst_88 : f32 to vector<16x128xf32>
    %482 = arith.addf %481, %480 : vector<16x128xf32>
    %483 = arith.divf %481, %482 : vector<16x128xf32>
    %484 = arith.addf %483, %483 : vector<16x128xf32>
    %cst_89 = arith.constant 1.000000e+00 : f32
    %485 = vector.broadcast %cst_89 : f32 to vector<16x128xf32>
    %486 = arith.subf %484, %485 : vector<16x128xf32>
    %487 = arith.select %18, %486, %483 : vector<16x128xi1>, vector<16x128xf32>
    %488 = vector.extract_strided_slice %487 {offsets = [0, 0], sizes = [16, 32], strides = [1, 1]} : vector<16x128xf32> to vector<16x32xf32>
    %489 = vector.extract_strided_slice %487 {offsets = [0, 32], sizes = [16, 32], strides = [1, 1]} : vector<16x128xf32> to vector<16x32xf32>
    %490 = vector.extract_strided_slice %487 {offsets = [0, 64], sizes = [16, 32], strides = [1, 1]} : vector<16x128xf32> to vector<16x32xf32>
    %491 = vector.extract_strided_slice %487 {offsets = [0, 96], sizes = [16, 32], strides = [1, 1]} : vector<16x128xf32> to vector<16x32xf32>
    %492 = arith.mulf %489, %438 : vector<16x32xf32>
    %493 = arith.mulf %488, %490 : vector<16x32xf32>
    %494 = arith.addf %492, %493 : vector<16x32xf32>
    %495 = math.tanh %494 : vector<16x32xf32>
    %496 = arith.mulf %491, %495 : vector<16x32xf32>
    %497 = arith.select %444, %496, %439 : vector<16x32xi1>, vector<16x32xf32>
    %cst_90 = arith.constant 0.000000e+00 : f32
    %498 = vector.broadcast %cst_90 : f32 to vector<16x32xf32>
    %499 = arith.select %444, %497, %498 : vector<16x32xi1>, vector<16x32xf32>
    %c112 = arith.constant 112 : index
    %c0_91 = arith.constant 0 : index
    %500 = vector.load %arg11[%c112, %c0_91] : memref<128x32xf32, #tpu.memory_space<vmem>>, vector<16x32xf32>
    tpu.vector_store %arg11[%c112, %c0_91], %499 {strides = array<i32>} : memref<128x32xf32, #tpu.memory_space<vmem>>, vector<16x32xf32>,
    %c0_92 = arith.constant 0 : index
    %c0_93 = arith.constant 0 : index
    %501 = vector.load %arg11[%c0_92, %c0_93] : memref<128x32xf32, #tpu.memory_space<vmem>>, vector<128x32xf32>
    %502 = arith.truncf %501 : vector<128x32xf32> to vector<128x32xbf16>
    %c0_94 = arith.constant 0 : index
    %c0_95 = arith.constant 0 : index
    %503 = vector.load %arg8[%c0_94, %c0_95] : memref<32x128xbf16, #tpu.memory_space<vmem>>, vector<32x128xbf16>
    %cst_96 = arith.constant dense<0.000000e+00> : vector<128x128xf32>
    %504 = tpu.matmul %502, %503, %cst_96 {dimension_numbers = #tpu.dot_dimension_numbers<[1], [0], [0], [1], [0, 0, 1, 1], [], []>} : vector<128x32xbf16>, vector<32x128xbf16>, vector<128x128xf32> -> vector<128x128xf32>
    %c0_97 = arith.constant 0 : index
    %c0_98 = arith.constant 0 : index
    %505 = vector.load %arg9[%c0_97, %c0_98] : memref<1x128xf32, #tpu.memory_space<vmem>>, vector<1x128xf32>
    %506 = vector.broadcast %505 : vector<1x128xf32> to vector<128x128xf32>
    %507 = arith.addf %504, %506 : vector<128x128xf32>
    %c0_99 = arith.constant 0 : index
    %c0_100 = arith.constant 0 : index
    %508 = vector.load %arg10[%c0_99, %c0_100] : memref<128x128xf32, #tpu.memory_space<vmem>>, vector<128x128xf32>
    tpu.vector_store %arg10[%c0_99, %c0_100], %507 {strides = array<i32>} : memref<128x128xf32, #tpu.memory_space<vmem>>, vector<128x128xf32>,
    return
  }
}

</mosaic_0001>

<llo_original>
// kernel: tpu_custom_call.1
$region0: #{tpu_custom_call.1}
  #allocation0 [shape = 'u32[]', space=smem, size = 0x4, offset = 0x4, fixed_abs, tag = 'smem constant byte address 0x4 - core index']
  #allocation1 [shape = 'u32[144,128]{1,0:T(1,128)}', space=vmem, size = 0x12000, scoped, tag = 'internal scratch']
  #allocation2 [shape = 'f32[128,32]{1,0:T(8,128)}', space=vmem, size = 0x10000, scoped, tag = 'scratch operand']
  %s0 = inlined_call_operand.hbm [shape: bf16[128,128], index: 0, kind: input, shape index: {}]
  %s1 = inlined_call_operand.vmem [shape: s32[16,1], index: 1, kind: input, shape index: {}]
  %s2 = inlined_call_operand.hbm [shape: bf16[128,128], index: 2, kind: input, shape index: {}]
  %s3 = inlined_call_operand.vmem [shape: bf16[32,128], index: 3, kind: input, shape index: {}]
  %s4 = inlined_call_operand.hbm [shape: f32[1,128], index: 4, kind: input, shape index: {}]
  %s5 = inlined_call_operand.vmem [shape: bf16[32,128], index: 5, kind: input, shape index: {}]
  %s6 = inlined_call_operand.hbm [shape: bf16[32,128], index: 6, kind: input, shape index: {}]
  %s7 = inlined_call_operand.vmem [shape: f32[1,128], index: 7, kind: input, shape index: {}]
  %s8 = inlined_call_operand.hbm [shape: bf16[32,128], index: 8, kind: input, shape index: {}]
  %s9 = inlined_call_operand.vmem [shape: f32[1,128], index: 9, kind: input, shape index: {}]
  %s10 = inlined_call_operand.hbm [shape: f32[128,128], index: 10, kind: output, shape index: {}]
  %s11 = sld [smem:[#allocation0]]
  $region70: #{tpu_custom_call.1} parent=0
    _
  %s13 = ssub.s32 1, %s11
  %s14 = scalar_select 0, %s13, %s11
  $region1: #{tpu_custom_call.1} parent=0
    #allocation3 [shape = 'u8[32768]{0}', space=vmem, size = 0x8000, scoped, tag = 'input window, operand 0, single buffered']
    #allocation4 [shape = 's32[1]{0}', space=sflag, size = 0x4, scoped, tag = 'scoped memory for tpu_custom_call.1']
    #allocation5 [shape = 's32[1]{0}', space=sflag, size = 0x4, scoped, tag = 'scoped memory for tpu_custom_call.1']
    #allocation6 [shape = 'u8[32768]{0}', space=vmem, size = 0x8000, scoped, tag = 'input window, operand 2, single buffered']
    #allocation7 [shape = 's32[1]{0}', space=sflag, size = 0x4, scoped, tag = 'scoped memory for tpu_custom_call.1']
    #allocation8 [shape = 'u8[512]{0}', space=vmem, size = 0x400, scoped, tag = 'input window, operand 4, single buffered']
    #allocation9 [shape = 'u8[8192]{0}', space=vmem, size = 0x2000, scoped, tag = 'input window, operand 6, single buffered']
    #allocation10 [shape = 's32[1]{0}', space=sflag, size = 0x4, scoped, tag = 'scoped memory for tpu_custom_call.1']
    #allocation11 [shape = 'u8[8192]{0}', space=vmem, size = 0x2000, scoped, tag = 'input window, operand 8, single buffered']
    #allocation12 [shape = 'u8[65536]{0}', space=vmem, size = 0x10000, scoped, tag = 'output window, operand 0, single buffered']
    %15 = vsyncpa [#allocation4], 0
    %16 = vsyncpa [#allocation7], 0
    %17 = vsyncpa [#allocation10], 0
    %18 = vsyncpa [#allocation5], 0
    // Predicated region
    $region2: #{tpu_custom_call.1} parent=1 // pred_check
      _
    $region3: #{tpu_custom_call.1} parent=1 // pred_check_branch
      %20 = sbr.rel (0) target = $region5
    $region4: #{tpu_custom_call.1} parent=1 // pred_region
      %s22 = ssub.s32 1024, 1024
      %23 = vsyncadd [#allocation4], %s22
      %s24 = sshll.u32 [#allocation3], 4
      %s25 = int_to_ptr.vmem [resolvable:$true] %s24
      %30 = dma.hbm_to_vmem [thread:$0]  %s0, 1024, %s25, [#allocation4], 64, 64, 4
    $region5: #{tpu_custom_call.1} parent=1 // pred_fallthru
      _
    // Predicated region
    $region6: #{tpu_custom_call.1} parent=1 // pred_check
      _
    $region7: #{tpu_custom_call.1} parent=1 // pred_check_branch
      %32 = sbr.rel (0) target = $region9
    $region8: #{tpu_custom_call.1} parent=1 // pred_region
      _
    $region9: #{tpu_custom_call.1} parent=1 // pred_fallthru
      _
    // Predicated region
    $region10: #{tpu_custom_call.1} parent=1 // pred_check
      _
    $region11: #{tpu_custom_call.1} parent=1 // pred_check_branch
      %34 = sbr.rel (0) target = $region13
    $region12: #{tpu_custom_call.1} parent=1 // pred_region
      %s36 = ssub.s32 1024, 1024
      %37 = vsyncadd [#allocation7], %s36
      %s38 = sshll.u32 [#allocation6], 4
      %s39 = int_to_ptr.vmem [resolvable:$true] %s38
      %44 = dma.hbm_to_vmem [thread:$0]  %s2, 1024, %s39, [#allocation7], 64, 64, 4
    $region13: #{tpu_custom_call.1} parent=1 // pred_fallthru
      _
    // Predicated region
    $region14: #{tpu_custom_call.1} parent=1 // pred_check
      _
    $region15: #{tpu_custom_call.1} parent=1 // pred_check_branch
      %46 = sbr.rel (0) target = $region17
    $region16: #{tpu_custom_call.1} parent=1 // pred_region
      _
    $region17: #{tpu_custom_call.1} parent=1 // pred_fallthru
      _
    // Predicated region
    $region18: #{tpu_custom_call.1} parent=1 // pred_check
      _
    $region19: #{tpu_custom_call.1} parent=1 // pred_check_branch
      %48 = sbr.rel (0) target = $region21
    $region20: #{tpu_custom_call.1} parent=1 // pred_region
      %s50 = ssub.s32 16, 16
      %51 = vsyncadd [#allocation7], %s50
      %s53 = sshll.u32 [#allocation8], 4
      %s54 = int_to_ptr.vmem [resolvable:$true] %s53
      %56 = dma.hbm_to_vmem [thread:$0]  %s4, 16, %s54, [#allocation7]
    $region21: #{tpu_custom_call.1} parent=1 // pred_fallthru
      _
    // Predicated region
    $region22: #{tpu_custom_call.1} parent=1 // pred_check
      _
    $region23: #{tpu_custom_call.1} parent=1 // pred_check_branch
      %58 = sbr.rel (0) target = $region25
    $region24: #{tpu_custom_call.1} parent=1 // pred_region
      _
    $region25: #{tpu_custom_call.1} parent=1 // pred_fallthru
      _
    // Predicated region
    $region26: #{tpu_custom_call.1} parent=1 // pred_check
      _
    $region27: #{tpu_custom_call.1} parent=1 // pred_check_branch
      %60 = sbr.rel (0) target = $region29
    $region28: #{tpu_custom_call.1} parent=1 // pred_region
      %s62 = ssub.s32 256, 256
      %63 = vsyncadd [#allocation10], %s62
      %s64 = sshll.u32 [#allocation9], 4
      %s65 = int_to_ptr.vmem [resolvable:$true] %s64
      %70 = dma.hbm_to_vmem [thread:$0]  %s6, 256, %s65, [#allocation10], 64, 64, 4
    $region29: #{tpu_custom_call.1} parent=1 // pred_fallthru
      _
    // Predicated region
    $region30: #{tpu_custom_call.1} parent=1 // pred_check
      _
    $region31: #{tpu_custom_call.1} parent=1 // pred_check_branch
      %72 = sbr.rel (0) target = $region33
    $region32: #{tpu_custom_call.1} parent=1 // pred_region
      _
    $region33: #{tpu_custom_call.1} parent=1 // pred_fallthru
      _
    // Predicated region
    $region34: #{tpu_custom_call.1} parent=1 // pred_check
      _
    $region35: #{tpu_custom_call.1} parent=1 // pred_check_branch
      %74 = sbr.rel (0) target = $region37
    $region36: #{tpu_custom_call.1} parent=1 // pred_region
      %s76 = ssub.s32 256, 256
      %77 = vsyncadd [#allocation10], %s76
      %s78 = sshll.u32 [#allocation11], 4
      %s79 = int_to_ptr.vmem [resolvable:$true] %s78
      %84 = dma.hbm_to_vmem [thread:$0]  %s8, 256, %s79, [#allocation10], 64, 64, 4
    $region37: #{tpu_custom_call.1} parent=1 // pred_fallthru
      _
    // Predicated region
    $region38: #{tpu_custom_call.1} parent=1 // pred_check
      _
    $region39: #{tpu_custom_call.1} parent=1 // pred_check_branch
      %86 = sbr.rel (0) target = $region41
    $region40: #{tpu_custom_call.1} parent=1 // pred_region
      _
    $region41: #{tpu_custom_call.1} parent=1 // pred_fallthru
      _
    // Predicated region
    $region42: #{tpu_custom_call.1} parent=1 // pred_check
      _
    $region43: #{tpu_custom_call.1} parent=1 // pred_check_branch
      %88 = sbr.rel (0) target = $region45
    $region44: #{tpu_custom_call.1} parent=1 // pred_region
      %89 = dma.done [#allocation4], 1024
    $region45: #{tpu_custom_call.1} parent=1 // pred_fallthru
      _
    // Predicated region
    $region46: #{tpu_custom_call.1} parent=1 // pred_check
      _
    $region47: #{tpu_custom_call.1} parent=1 // pred_check_branch
      %91 = sbr.rel (0) target = $region49
    $region48: #{tpu_custom_call.1} parent=1 // pred_region
      %92 = dma.done [#allocation7], 1024
    $region49: #{tpu_custom_call.1} parent=1 // pred_fallthru
      _
    // Predicated region
    $region50: #{tpu_custom_call.1} parent=1 // pred_check
      _
    $region51: #{tpu_custom_call.1} parent=1 // pred_check_branch
      %94 = sbr.rel (0) target = $region53
    $region52: #{tpu_custom_call.1} parent=1 // pred_region
      %95 = dma.done [#allocation7], 16
    $region53: #{tpu_custom_call.1} parent=1 // pred_fallthru
      _
    // Predicated region
    $region54: #{tpu_custom_call.1} parent=1 // pred_check
      _
    $region55: #{tpu_custom_call.1} parent=1 // pred_check_branch
      %97 = sbr.rel (0) target = $region57
    $region56: #{tpu_custom_call.1} parent=1 // pred_region
      %98 = dma.done [#allocation10], 256
    $region57: #{tpu_custom_call.1} parent=1 // pred_fallthru
      _
    // Predicated region
    $region58: #{tpu_custom_call.1} parent=1 // pred_check
      _
    $region59: #{tpu_custom_call.1} parent=1 // pred_check_branch
      %100 = sbr.rel (0) target = $region61
    $region60: #{tpu_custom_call.1} parent=1 // pred_region
      %101 = dma.done [#allocation10], 256
    $region61: #{tpu_custom_call.1} parent=1 // pred_fallthru
      _
    %v103 = vld [vmem:[#allocation3] sm:$0xf]
    %v104 = vld [vmem:[#allocation3 + $0x4] sm:$0xf]
    %v105 = vld [vmem:[#allocation3 + $0x8] sm:$0xf]
    %v106 = vld [vmem:[#allocation3 + $0xc] sm:$0xf]
    %v107 = vld [vmem:[#allocation3 + $0x10] sm:$0xf]
    %v108 = vld [vmem:[#allocation3 + $0x14] sm:$0xf]
    %v109 = vld [vmem:[#allocation3 + $0x18] sm:$0xf]
    %v110 = vld [vmem:[#allocation3 + $0x1c] sm:$0xf]
    %v111 = vld [vmem:[#allocation3 + $0x20] sm:$0xf]
    %v112 = vld [vmem:[#allocation3 + $0x24] sm:$0xf]
    %v113 = vld [vmem:[#allocation3 + $0x28] sm:$0xf]
    %v114 = vld [vmem:[#allocation3 + $0x2c] sm:$0xf]
    %v115 = vld [vmem:[#allocation3 + $0x30] sm:$0xf]
    %v116 = vld [vmem:[#allocation3 + $0x34] sm:$0xf]
    %v117 = vld [vmem:[#allocation3 + $0x38] sm:$0xf]
    %v118 = vld [vmem:[#allocation3 + $0x3c] sm:$0xf]
    %v119 = vld [vmem:[#allocation6] sm:$0xf]
    %v120 = vld [vmem:[#allocation6 + $0x4] sm:$0xf]
    %v121 = vld [vmem:[#allocation6 + $0x8] sm:$0xf]
    %v122 = vld [vmem:[#allocation6 + $0xc] sm:$0xf]
    %v123 = vld [vmem:[#allocation6 + $0x10] sm:$0xf]
    %v124 = vld [vmem:[#allocation6 + $0x14] sm:$0xf]
    %v125 = vld [vmem:[#allocation6 + $0x18] sm:$0xf]
    %v126 = vld [vmem:[#allocation6 + $0x1c] sm:$0xf]
    %v127 = vld [vmem:[#allocation6 + $0x20] sm:$0xf]
    %v128 = vld [vmem:[#allocation6 + $0x24] sm:$0xf]
    %v129 = vld [vmem:[#allocation6 + $0x28] sm:$0xf]
    %v130 = vld [vmem:[#allocation6 + $0x2c] sm:$0xf]
    %v131 = vld [vmem:[#allocation6 + $0x30] sm:$0xf]
    %v132 = vld [vmem:[#allocation6 + $0x34] sm:$0xf]
    %v133 = vld [vmem:[#allocation6 + $0x38] sm:$0xf]
    %v134 = vld [vmem:[#allocation6 + $0x3c] sm:$0xf]
    %v135 = vld [vmem:[#allocation8] sm:$0x1]
    %v137 = vlaneseq
    %v138 = vshrl.u32 %v137, 7
    %v139 = vsub.s32 0, %v138
    %v140 = vrot.slane %v135, %v139
    %v158 = vunpack.c.l.b16 %v103
    %v159 = vunpack.c.l.b16 %v104
    %v160 = vunpack.c.l.b16 %v105
    %v161 = vunpack.c.l.b16 %v106
    %v162 = vunpack.c.l.b16 %v107
    %v163 = vunpack.c.l.b16 %v108
    %v164 = vunpack.c.l.b16 %v109
    %v165 = vunpack.c.l.b16 %v110
    %v166 = vunpack.c.l.b16 %v111
    %v167 = vunpack.c.l.b16 %v112
    %v168 = vunpack.c.l.b16 %v113
    %v169 = vunpack.c.l.b16 %v114
    %v170 = vunpack.c.l.b16 %v115
    %v171 = vunpack.c.l.b16 %v116
    %v172 = vunpack.c.l.b16 %v117
    %v173 = vunpack.c.l.b16 %v118
    %v174 = vpack.c.b16 %v159, %v158
    %v175 = vpack.c.b16 %v161, %v160
    %v176 = vpack.c.b16 %v163, %v162
    %v177 = vpack.c.b16 %v165, %v164
    %v178 = vpack.c.b16 %v167, %v166
    %v179 = vpack.c.b16 %v169, %v168
    %v180 = vpack.c.b16 %v171, %v170
    %v181 = vpack.c.b16 %v173, %v172
    %v206 = vunpack.c.l.b16 %v119
    %v207 = vunpack.c.l.b16 %v120
    %v208 = vunpack.c.l.b16 %v121
    %v209 = vunpack.c.l.b16 %v122
    %v210 = vunpack.c.l.b16 %v123
    %v211 = vunpack.c.l.b16 %v124
    %v212 = vunpack.c.l.b16 %v125
    %v213 = vunpack.c.l.b16 %v126
    %v214 = vunpack.c.l.b16 %v127
    %v215 = vunpack.c.l.b16 %v128
    %v216 = vunpack.c.l.b16 %v129
    %v217 = vunpack.c.l.b16 %v130
    %v218 = vunpack.c.l.b16 %v131
    %v219 = vunpack.c.l.b16 %v132
    %v220 = vunpack.c.l.b16 %v133
    %v221 = vunpack.c.l.b16 %v134
    %v222 = vpack.c.b16 %v207, %v206
    %v223 = vpack.c.b16 %v209, %v208
    %v224 = vpack.c.b16 %v211, %v210
    %v225 = vpack.c.b16 %v213, %v212
    %v226 = vpack.c.b16 %v215, %v214
    %v227 = vpack.c.b16 %v217, %v216
    %v228 = vpack.c.b16 %v219, %v218
    %v229 = vpack.c.b16 %v221, %v220
    %238 = vmatprep.subr.bf16.mxu0 0
    %239 = vmatpush1.bf16.msra.mxu0 %v222
    %240 = vmatprep.subr.bf16.mxu0 0
    %241 = vmatpush1.bf16.msra.mxu0 %v223
    %242 = vmatprep.subr.bf16.mxu0 0
    %243 = vmatpush1.bf16.msra.mxu0 %v224
    %244 = vmatprep.subr.bf16.mxu0 0
    %245 = vmatpush1.bf16.msra.mxu0 %v225
    %246 = vmatprep.subr.bf16.mxu0 0
    %247 = vmatpush1.bf16.msra.mxu0 %v226
    %248 = vmatprep.subr.bf16.mxu0 0
    %249 = vmatpush1.bf16.msra.mxu0 %v227
    %250 = vmatprep.subr.bf16.mxu0 0
    %251 = vmatpush1.bf16.msra.mxu0 %v228
    %252 = vmatprep.subr.bf16.mxu0 0
    %253 = vmatpush1.bf16.msra.mxu0 %v229
    %254 = vmatprep.subr.bf16.mxu0 0
    %255 = vmatpush1.bf16.msra.mxu0 0
    %256 = vmatprep.subr.bf16.mxu0 0
    %257 = vmatpush1.bf16.msra.mxu0 0
    %258 = vmatprep.subr.bf16.mxu0 0
    %259 = vmatpush1.bf16.msra.mxu0 0
    %260 = vmatprep.subr.bf16.mxu0 0
    %261 = vmatpush1.bf16.msra.mxu0 0
    %262 = vmatprep.subr.bf16.mxu0 0
    %263 = vmatpush1.bf16.msra.mxu0 0
    %264 = vmatprep.subr.bf16.mxu0 0
    %265 = vmatpush1.bf16.msra.mxu0 0
    %266 = vmatprep.subr.bf16.mxu0 0
    %267 = vmatpush1.bf16.msra.mxu0 0
    %268 = vmatprep.subr.bf16.mxu0 0
    %269 = vmatpush1.bf16.msra.mxu0 0
    %270 = vmatprep.mubr.bf16.mxu0 0
    %271 = vmatmul.mubr.bf16.gmra.mrb[0].mxu0 %v174
    %v272 = vpop.f32.mrb[0].mxu0
    %v273 = vadd.f32 %v140, %v272
    %v274 = vpop.f32.mrb[0].mxu0
    %v275 = vpop.f32.mrb[0].mxu0
    %v276 = vadd.f32 %v140, %v275
    %v277 = vpop.f32.mrb[0].mxu0
    %278 = vmatprep.mubr.bf16.mxu0 0
    %279 = vmatmul.mubr.bf16.gmra.mrb[0].mxu0 %v175
    %v280 = vpop.f32.mrb[0].mxu0
    %v281 = vadd.f32 %v140, %v280
    %v282 = vpop.f32.mrb[0].mxu0
    %v283 = vpop.f32.mrb[0].mxu0
    %v284 = vadd.f32 %v140, %v283
    %v285 = vpop.f32.mrb[0].mxu0
    %286 = vmatprep.mubr.bf16.mxu0 0
    %287 = vmatmul.mubr.bf16.gmra.mrb[0].mxu0 %v176
    %v288 = vpop.f32.mrb[0].mxu0
    %v289 = vadd.f32 %v140, %v288
    %v290 = vpop.f32.mrb[0].mxu0
    %v291 = vpop.f32.mrb[0].mxu0
    %v292 = vadd.f32 %v140, %v291
    %v293 = vpop.f32.mrb[0].mxu0
    %294 = vmatprep.mubr.bf16.mxu0 0
    %295 = vmatmul.mubr.bf16.gmra.mrb[0].mxu0 %v177
    %v296 = vpop.f32.mrb[0].mxu0
    %v297 = vadd.f32 %v140, %v296
    %v298 = vpop.f32.mrb[0].mxu0
    %v299 = vpop.f32.mrb[0].mxu0
    %v300 = vadd.f32 %v140, %v299
    %v301 = vpop.f32.mrb[0].mxu0
    %302 = vmatprep.mubr.bf16.mxu0 0
    %303 = vmatmul.mubr.bf16.gmra.mrb[0].mxu0 %v178
    %v304 = vpop.f32.mrb[0].mxu0
    %v305 = vadd.f32 %v140, %v304
    %v306 = vpop.f32.mrb[0].mxu0
    %v307 = vpop.f32.mrb[0].mxu0
    %v308 = vadd.f32 %v140, %v307
    %v309 = vpop.f32.mrb[0].mxu0
    %310 = vmatprep.mubr.bf16.mxu0 0
    %311 = vmatmul.mubr.bf16.gmra.mrb[0].mxu0 %v179
    %v312 = vpop.f32.mrb[0].mxu0
    %v313 = vadd.f32 %v140, %v312
    %v314 = vpop.f32.mrb[0].mxu0
    %v315 = vpop.f32.mrb[0].mxu0
    %v316 = vadd.f32 %v140, %v315
    %v317 = vpop.f32.mrb[0].mxu0
    %318 = vmatprep.mubr.bf16.mxu0 0
    %319 = vmatmul.mubr.bf16.gmra.mrb[0].mxu0 %v180
    %v320 = vpop.f32.mrb[0].mxu0
    %v321 = vadd.f32 %v140, %v320
    %v322 = vpop.f32.mrb[0].mxu0
    %v323 = vpop.f32.mrb[0].mxu0
    %v324 = vadd.f32 %v140, %v323
    %v325 = vpop.f32.mrb[0].mxu0
    %326 = vmatprep.mubr.bf16.mxu0 0
    %327 = vmatmul.mubr.bf16.gmra.mrb[0].mxu0 %v181
    %v328 = vpop.f32.mrb[0].mxu0
    %v329 = vadd.f32 %v140, %v328
    %v330 = vpop.f32.mrb[0].mxu0
    %v331 = vpop.f32.mrb[0].mxu0
    %v332 = vadd.f32 %v140, %v331
    %v333 = vpop.f32.mrb[0].mxu0
    %334 = vdwg.mxu0
    %v335 = vld [vmem:[%s3] sm:$0xf]
    %v336 = vld [vmem:[%s3 + $0x4] sm:$0xf]
    %v337 = vld [vmem:[%s3 + $0x8] sm:$0xf]
    %v338 = vld [vmem:[%s3 + $0xc] sm:$0xf]
    %v339 = vld [vmem:[%s5] sm:$0xf]
    %v340 = vld [vmem:[%s5 + $0x4] sm:$0xf]
    %v341 = vld [vmem:[%s5 + $0x8] sm:$0xf]
    %v342 = vld [vmem:[%s5 + $0xc] sm:$0xf]
    %v343 = vld [vmem:[#allocation9] sm:$0xf]
    %v344 = vld [vmem:[#allocation9 + $0x4] sm:$0xf]
    %v345 = vld [vmem:[#allocation9 + $0x8] sm:$0xf]
    %v346 = vld [vmem:[#allocation9 + $0xc] sm:$0xf]
    %v347 = vld [vmem:[%s7] sm:$0x1]
    %v348 = vld [vmem:[%s1] sm:$0xff]
    %v349 = vld [vmem:[%s1 + $0x8] sm:$0xff]
    %350 = vset.pattern.permute.xlu0 0
    %351 = vperm.xlu0 %350, %v348
    %v352 = vpop.permute.xlu0 %351
    %353 = vset.pattern.permute.xlu0 0
    %354 = vperm.xlu0 %353, %v349
    %v355 = vpop.permute.xlu0 %354
    %v356 = vlaneseq
    %v357 = vand.u32 %v356, 127
    %vm358 = vcmp.ge.s32.totalorder %v357, 64
    %vm359 = vcmp.lt.s32.totalorder %v357, 96
    %vm360 = vmand %vm358, %vm359
    %vm361 = vcmp.gt.s32.totalorder %v352, 0
    %vm362 = vcmp.gt.s32.totalorder %v355, 0
    %v367 = vunpack.c.l.b16 %v335
    %v368 = vunpack.c.l.b16 %v336
    %v369 = vunpack.c.l.b16 %v337
    %v370 = vunpack.c.l.b16 %v338
    %v371 = vpack.c.b16 %v368, %v367
    %v372 = vpack.c.b16 %v370, %v369
    %vm375 = vcmask 261120
    %v377 = vsel %vm375, 0, 0
    %379 = vmatprep.subr.bf16.mxu0 0
    %380 = vmatpush1.bf16.msra.mxu0 %v371
    %381 = vmatprep.subr.bf16.mxu0 0
    %382 = vmatpush1.bf16.msra.mxu0 %v372
    %383 = vmatprep.subr.bf16.mxu0 0
    %384 = vmatpush1.bf16.msra.mxu0 0
    %385 = vmatprep.subr.bf16.mxu0 0
    %386 = vmatpush1.bf16.msra.mxu0 0
    %387 = vmatprep.subr.bf16.mxu0 0
    %388 = vmatpush1.bf16.msra.mxu0 0
    %389 = vmatprep.subr.bf16.mxu0 0
    %390 = vmatpush1.bf16.msra.mxu0 0
    %391 = vmatprep.subr.bf16.mxu0 0
    %392 = vmatpush1.bf16.msra.mxu0 0
    %393 = vmatprep.subr.bf16.mxu0 0
    %394 = vmatpush1.bf16.msra.mxu0 0
    %395 = vmatprep.subr.bf16.mxu0 0
    %396 = vmatpush1.bf16.msra.mxu0 0
    %397 = vmatprep.subr.bf16.mxu0 0
    %398 = vmatpush1.bf16.msra.mxu0 0
    %399 = vmatprep.subr.bf16.mxu0 0
    %400 = vmatpush1.bf16.msra.mxu0 0
    %401 = vmatprep.subr.bf16.mxu0 0
    %402 = vmatpush1.bf16.msra.mxu0 0
    %403 = vmatprep.subr.bf16.mxu0 0
    %404 = vmatpush1.bf16.msra.mxu0 0
    %405 = vmatprep.subr.bf16.mxu0 0
    %406 = vmatpush1.bf16.msra.mxu0 0
    %407 = vmatprep.subr.bf16.mxu0 0
    %408 = vmatpush1.bf16.msra.mxu0 0
    %409 = vmatprep.subr.bf16.mxu0 0
    %410 = vmatpush1.bf16.msra.mxu0 0
    %411 = vmatprep.mubr.bf16.mxu0 0
    %412 = vmatmul.mubr.bf16.gmra.mrb[0].mxu0 %v377
    %v413 = vpop.f32.mrb[0].mxu0
    %v414 = vadd.f32 0.0, %v413
    %v415 = vpop.f32.mrb[0].mxu0
    %v416 = vpop.f32.mrb[0].mxu0
    %v417 = vadd.f32 0.0, %v416
    %v418 = vpop.f32.mrb[0].mxu0
    %419 = vdwg.mxu0
    %v420 = vadd.f32 %v273, %v414
    %v421 = vadd.f32 %v276, %v417
    %v422 = vadd.f32 %v420, %v420
    %v423 = vadd.f32 %v421, %v421
    %v424 = vsel %vm360, %v422, %v420
    %v425 = vsel %vm360, %v423, %v421
    %v426 = vxor.u32 %v424, 2147483648
    %v427 = vxor.u32 %v425, 2147483648
    %v428 = vmul.f32 %v426, 1.442695
    %v429 = vpow.pop %v428
    %v430 = vmul.f32 %v427, 1.442695
    %v431 = vpow.pop %v430
    %v432 = vadd.f32 %v429, 1.0
    %v433 = vadd.f32 %v431, 1.0
    %v434 = vrcp.pop %v432
    %v435 = vmul.f32 1.0, %v434
    %v436 = vrcp.pop %v433
    %v437 = vmul.f32 1.0, %v436
    %v438 = vadd.f32 %v435, %v435
    %v439 = vadd.f32 %v437, %v437
    %v440 = vsub.f32 %v438, 1.0
    %v441 = vsub.f32 %v439, 1.0
    %v442 = vsel %vm360, %v440, %v435
    %v443 = vsel %vm360, %v441, %v437
    %v444 = vmul.f32 %v442, 0.0
    %v445 = vmul.f32 %v443, 0.0
    %448 = vrot.lane.b32.xlu0 %v442, 64
    %v449 = vpop.permute.xlu0 %448
    %450 = vrot.lane.b32.xlu0 %v443, 64
    %v451 = vpop.permute.xlu0 %450
    %v454 = vmul.f32 %v442, %v449
    %v455 = vmul.f32 %v443, %v451
    %458 = vrot.lane.b32.xlu0 %v454, 32
    %v459 = vpop.permute.xlu0 %458
    %460 = vrot.lane.b32.xlu0 %v455, 32
    %v461 = vpop.permute.xlu0 %460
    %v464 = vadd.f32 %v444, %v459
    %v465 = vadd.f32 %v445, %v461
    %v466 = vtanh.pop %v464
    %v467 = vtanh.pop %v465
    %470 = vrot.lane.b32.xlu0 %v466, 64
    %v471 = vpop.permute.xlu0 %470
    %472 = vrot.lane.b32.xlu0 %v467, 64
    %v473 = vpop.permute.xlu0 %472
    %v476 = vmul.f32 %v442, %v471
    %v477 = vmul.f32 %v443, %v473
    %v478 = vsel %vm361, %v464, 0.0
    %v479 = vsel %vm362, %v465, 0.0
    %v480 = vsel %vm361, %v476, 0.0
    %v481 = vsel %vm362, %v477, 0.0
    %v482 = vpack.c.bf16 %v481, %v480
    %v487 = vunpack.c.l.b16 %v343
    %v488 = vunpack.c.l.b16 %v344
    %v489 = vunpack.c.l.b16 %v345
    %v490 = vunpack.c.l.b16 %v346
    %v491 = vpack.c.b16 %v488, %v487
    %v492 = vpack.c.b16 %v490, %v489
    %495 = vmatprep.subr.bf16.mxu0 0
    %496 = vmatpush1.bf16.msra.mxu0 %v491
    %497 = vmatprep.subr.bf16.mxu0 0
    %498 = vmatpush1.bf16.msra.mxu0 %v492
    %499 = vmatprep.subr.bf16.mxu0 0
    %500 = vmatpush1.bf16.msra.mxu0 0
    %501 = vmatprep.subr.bf16.mxu0 0
    %502 = vmatpush1.bf16.msra.mxu0 0
    %503 = vmatprep.subr.bf16.mxu0 0
    %504 = vmatpush1.bf16.msra.mxu0 0
    %505 = vmatprep.subr.bf16.mxu0 0
    %506 = vmatpush1.bf16.msra.mxu0 0
    %507 = vmatprep.subr.bf16.mxu0 0
    %508 = vmatpush1.bf16.msra.mxu0 0
    %509 = vmatprep.subr.bf16.mxu0 0
    %510 = vmatpush1.bf16.msra.mxu0 0
    %511 = vmatprep.subr.bf16.mxu0 0
    %512 = vmatpush1.bf16.msra.mxu0 0
    %513 = vmatprep.subr.bf16.mxu0 0
    %514 = vmatpush1.bf16.msra.mxu0 0
    %515 = vmatprep.subr.bf16.mxu0 0
    %516 = vmatpush1.bf16.msra.mxu0 0
    %517 = vmatprep.subr.bf16.mxu0 0
    %518 = vmatpush1.bf16.msra.mxu0 0
    %519 = vmatprep.subr.bf16.mxu0 0
    %520 = vmatpush1.bf16.msra.mxu0 0
    %521 = vmatprep.subr.bf16.mxu0 0
    %522 = vmatpush1.bf16.msra.mxu0 0
    %523 = vmatprep.subr.bf16.mxu0 0
    %524 = vmatpush1.bf16.msra.mxu0 0
    %525 = vmatprep.subr.bf16.mxu0 0
    %526 = vmatpush1.bf16.msra.mxu0 0
    %527 = vmatprep.mubr.bf16.mxu0 0
    %528 = vmatmul.mubr.bf16.gmra.mrb[0].mxu0 %v377
    %v529 = vpop.f32.mrb[0].mxu0
    %v530 = vadd.f32 0.0, %v529
    %v531 = vpop.f32.mrb[0].mxu0
    %v532 = vpop.f32.mrb[0].mxu0
    %v533 = vadd.f32 0.0, %v532
    %v534 = vpop.f32.mrb[0].mxu0
    %535 = vdwg.mxu0
    %537 = vrot.lane.b32.xlu0 %v482, 32
    %v538 = vpop.permute.xlu0 %537
    %v543 = vunpack.c.l.b16 %v339
    %v544 = vunpack.c.l.b16 %v340
    %v545 = vunpack.c.l.b16 %v341
    %v546 = vunpack.c.l.b16 %v342
    %v547 = vpack.c.b16 %v544, %v543
    %v548 = vpack.c.b16 %v546, %v545
    %v552 = vsel %vm375, %v538, 0
    %554 = vmatprep.subr.bf16.mxu0 0
    %555 = vmatpush1.bf16.msra.mxu0 %v547
    %556 = vmatprep.subr.bf16.mxu0 0
    %557 = vmatpush1.bf16.msra.mxu0 %v548
    %558 = vmatprep.subr.bf16.mxu0 0
    %559 = vmatpush1.bf16.msra.mxu0 0
    %560 = vmatprep.subr.bf16.mxu0 0
    %561 = vmatpush1.bf16.msra.mxu0 0
    %562 = vmatprep.subr.bf16.mxu0 0
    %563 = vmatpush1.bf16.msra.mxu0 0
    %564 = vmatprep.subr.bf16.mxu0 0
    %565 = vmatpush1.bf16.msra.mxu0 0
    %566 = vmatprep.subr.bf16.mxu0 0
    %567 = vmatpush1.bf16.msra.mxu0 0
    %568 = vmatprep.subr.bf16.mxu0 0
    %569 = vmatpush1.bf16.msra.mxu0 0
    %570 = vmatprep.subr.bf16.mxu0 0
    %571 = vmatpush1.bf16.msra.mxu0 0
    %572 = vmatprep.subr.bf16.mxu0 0
    %573 = vmatpush1.bf16.msra.mxu0 0
    %574 = vmatprep.subr.bf16.mxu0 0
    %575 = vmatpush1.bf16.msra.mxu0 0
    %576 = vmatprep.subr.bf16.mxu0 0
    %577 = vmatpush1.bf16.msra.mxu0 0
    %578 = vmatprep.subr.bf16.mxu0 0
    %579 = vmatpush1.bf16.msra.mxu0 0
    %580 = vmatprep.subr.bf16.mxu0 0
    %581 = vmatpush1.bf16.msra.mxu0 0
    %582 = vmatprep.subr.bf16.mxu0 0
    %583 = vmatpush1.bf16.msra.mxu0 0
    %584 = vmatprep.subr.bf16.mxu0 0
    %585 = vmatpush1.bf16.msra.mxu0 0
    %586 = vmatprep.mubr.bf16.mxu0 0
    %587 = vmatmul.mubr.bf16.gmra.mrb[0].mxu0 %v552
    %v588 = vpop.f32.mrb[0].mxu0
    %v589 = vadd.f32 %v530, %v588
    %v590 = vpop.f32.mrb[0].mxu0
    %v591 = vpop.f32.mrb[0].mxu0
    %v592 = vadd.f32 %v533, %v591
    %v593 = vpop.f32.mrb[0].mxu0
    %594 = vdwg.mxu0
    %v596 = vlaneseq
    %v597 = vshrl.u32 %v596, 7
    %v598 = vsub.s32 0, %v597
    %v599 = vrot.slane %v347, %v598
    %v601 = vadd.f32 %v589, %v599
    %v602 = vadd.f32 %v592, %v599
    %v603 = vadd.f32 %v601, %v601
    %v604 = vadd.f32 %v602, %v602
    %v605 = vsel %vm360, %v603, %v601
    %v606 = vsel %vm360, %v604, %v602
    %v607 = vxor.u32 %v605, 2147483648
    %v608 = vxor.u32 %v606, 2147483648
    %v609 = vmul.f32 %v607, 1.442695
    %v610 = vpow.pop %v609
    %v611 = vmul.f32 %v608, 1.442695
    %v612 = vpow.pop %v611
    %v613 = vadd.f32 %v610, 1.0
    %v614 = vadd.f32 %v612, 1.0
    %v615 = vrcp.pop %v613
    %v616 = vmul.f32 1.0, %v615
    %v617 = vrcp.pop %v614
    %v618 = vmul.f32 1.0, %v617
    %v619 = vadd.f32 %v616, %v616
    %v620 = vadd.f32 %v618, %v618
    %v621 = vsub.f32 %v619, 1.0
    %v622 = vsub.f32 %v620, 1.0
    %v623 = vsel %vm360, %v621, %v616
    %v624 = vsel %vm360, %v622, %v618
    %v625 = vmul.f32 %v623, 0.0
    %v626 = vmul.f32 %v624, 0.0
    %629 = vrot.lane.b32.xlu0 %v623, 64
    %v630 = vpop.permute.xlu0 %629
    %631 = vrot.lane.b32.xlu0 %v624, 64
    %v632 = vpop.permute.xlu0 %631
    %v635 = vmul.f32 %v623, %v630
    %v636 = vmul.f32 %v624, %v632
    %639 = vrot.lane.b32.xlu0 %v635, 32
    %v640 = vpop.permute.xlu0 %639
    %641 = vrot.lane.b32.xlu0 %v636, 32
    %v642 = vpop.permute.xlu0 %641
    %v645 = vadd.f32 %v625, %v640
    %v646 = vadd.f32 %v626, %v642
    %v647 = vtanh.pop %v645
    %v648 = vtanh.pop %v646
    %651 = vrot.lane.b32.xlu0 %v647, 64
    %v652 = vpop.permute.xlu0 %651
    %653 = vrot.lane.b32.xlu0 %v648, 64
    %v654 = vpop.permute.xlu0 %653
    %v657 = vmul.f32 %v623, %v652
    %v658 = vmul.f32 %v624, %v654
    %v659 = vsel %vm361, %v645, 0.0
    %v660 = vsel %vm362, %v646, 0.0
    %v661 = vsel %vm361, %v657, 0.0
    %v662 = vsel %vm362, %v658, 0.0
    %665 = vrot.lane.b32.xlu0 %v661, 32
    %v666 = vpop.permute.xlu0 %665
    %667 = vrot.lane.b32.xlu0 %v662, 32
    %v668 = vpop.permute.xlu0 %667
    %671 = vst.msk [vmem:[#allocation2] sm:$0xff] %vm375, %v666
    %672 = vst.msk [vmem:[#allocation2 + $0x8] sm:$0xff] %vm375, %v668
    %vm673 = vcmp.gt.s32.totalorder %v352, 1
    %vm674 = vcmp.gt.s32.totalorder %v355, 1
    %675 = vmatprep.subr.bf16.mxu0 0
    %676 = vmatpush1.bf16.msra.mxu0 %v371
    %677 = vmatprep.subr.bf16.mxu0 0
    %678 = vmatpush1.bf16.msra.mxu0 %v372
    %679 = vmatprep.subr.bf16.mxu0 0
    %680 = vmatpush1.bf16.msra.mxu0 0
    %681 = vmatprep.subr.bf16.mxu0 0
    %682 = vmatpush1.bf16.msra.mxu0 0
    %683 = vmatprep.subr.bf16.mxu0 0
    %684 = vmatpush1.bf16.msra.mxu0 0
    %685 = vmatprep.subr.bf16.mxu0 0
    %686 = vmatpush1.bf16.msra.mxu0 0
    %687 = vmatprep.subr.bf16.mxu0 0
    %688 = vmatpush1.bf16.msra.mxu0 0
    %689 = vmatprep.subr.bf16.mxu0 0
    %690 = vmatpush1.bf16.msra.mxu0 0
    %691 = vmatprep.subr.bf16.mxu0 0
    %692 = vmatpush1.bf16.msra.mxu0 0
    %693 = vmatprep.subr.bf16.mxu0 0
    %694 = vmatpush1.bf16.msra.mxu0 0
    %695 = vmatprep.subr.bf16.mxu0 0
    %696 = vmatpush1.bf16.msra.mxu0 0
    %697 = vmatprep.subr.bf16.mxu0 0
    %698 = vmatpush1.bf16.msra.mxu0 0
    %699 = vmatprep.subr.bf16.mxu0 0
    %700 = vmatpush1.bf16.msra.mxu0 0
    %701 = vmatprep.subr.bf16.mxu0 0
    %702 = vmatpush1.bf16.msra.mxu0 0
    %703 = vmatprep.subr.bf16.mxu0 0
    %704 = vmatpush1.bf16.msra.mxu0 0
    %705 = vmatprep.subr.bf16.mxu0 0
    %706 = vmatpush1.bf16.msra.mxu0 0
    %707 = vmatprep.mubr.bf16.mxu0 0
    %708 = vmatmul.mubr.bf16.gmra.mrb[0].mxu0 %v552
    %v709 = vpop.f32.mrb[0].mxu0
    %v710 = vadd.f32 0.0, %v709
    %v711 = vpop.f32.mrb[0].mxu0
    %v712 = vpop.f32.mrb[0].mxu0
    %v713 = vadd.f32 0.0, %v712
    %v714 = vpop.f32.mrb[0].mxu0
    %715 = vdwg.mxu0
    %v716 = vadd.f32 %v281, %v710
    %v717 = vadd.f32 %v284, %v713
    %v718 = vadd.f32 %v716, %v716
    %v719 = vadd.f32 %v717, %v717
    %v720 = vsel %vm360, %v718, %v716
    %v721 = vsel %vm360, %v719, %v717
    %v722 = vxor.u32 %v720, 2147483648
    %v723 = vxor.u32 %v721, 2147483648
    %v724 = vmul.f32 %v722, 1.442695
    %v725 = vpow.pop %v724
    %v726 = vmul.f32 %v723, 1.442695
    %v727 = vpow.pop %v726
    %v728 = vadd.f32 %v725, 1.0
    %v729 = vadd.f32 %v727, 1.0
    %v730 = vrcp.pop %v728
    %v731 = vmul.f32 1.0, %v730
    %v732 = vrcp.pop %v729
    %v733 = vmul.f32 1.0, %v732
    %v734 = vadd.f32 %v731, %v731
    %v735 = vadd.f32 %v733, %v733
    %v736 = vsub.f32 %v734, 1.0
    %v737 = vsub.f32 %v735, 1.0
    %v738 = vsel %vm360, %v736, %v731
    %v739 = vsel %vm360, %v737, %v733
    %v740 = vmul.f32 %v738, %v478
    %v741 = vmul.f32 %v739, %v479
    %744 = vrot.lane.b32.xlu0 %v738, 64
    %v745 = vpop.permute.xlu0 %744
    %746 = vrot.lane.b32.xlu0 %v739, 64
    %v747 = vpop.permute.xlu0 %746
    %v750 = vmul.f32 %v738, %v745
    %v751 = vmul.f32 %v739, %v747
    %754 = vrot.lane.b32.xlu0 %v750, 32
    %v755 = vpop.permute.xlu0 %754
    %756 = vrot.lane.b32.xlu0 %v751, 32
    %v757 = vpop.permute.xlu0 %756
    %v760 = vadd.f32 %v740, %v755
    %v761 = vadd.f32 %v741, %v757
    %v762 = vtanh.pop %v760
    %v763 = vtanh.pop %v761
    %766 = vrot.lane.b32.xlu0 %v762, 64
    %v767 = vpop.permute.xlu0 %766
    %768 = vrot.lane.b32.xlu0 %v763, 64
    %v769 = vpop.permute.xlu0 %768
    %v772 = vmul.f32 %v738, %v767
    %v773 = vmul.f32 %v739, %v769
    %v774 = vsel %vm673, %v760, %v478
    %v775 = vsel %vm674, %v761, %v479
    %v776 = vsel %vm673, %v772, %v480
    %v777 = vsel %vm674, %v773, %v481
    %v778 = vpack.c.bf16 %v777, %v776
    %v779 = vpack.c.bf16 %v662, %v661
    %781 = vrot.lane.b32.xlu0 %v779, 32
    %v782 = vpop.permute.xlu0 %781
    %v784 = vsel %vm375, %v782, 0
    %786 = vmatprep.subr.bf16.mxu0 0
    %787 = vmatpush1.bf16.msra.mxu0 %v491
    %788 = vmatprep.subr.bf16.mxu0 0
    %789 = vmatpush1.bf16.msra.mxu0 %v492
    %790 = vmatprep.subr.bf16.mxu0 0
    %791 = vmatpush1.bf16.msra.mxu0 0
    %792 = vmatprep.subr.bf16.mxu0 0
    %793 = vmatpush1.bf16.msra.mxu0 0
    %794 = vmatprep.subr.bf16.mxu0 0
    %795 = vmatpush1.bf16.msra.mxu0 0
    %796 = vmatprep.subr.bf16.mxu0 0
    %797 = vmatpush1.bf16.msra.mxu0 0
    %798 = vmatprep.subr.bf16.mxu0 0
    %799 = vmatpush1.bf16.msra.mxu0 0
    %800 = vmatprep.subr.bf16.mxu0 0
    %801 = vmatpush1.bf16.msra.mxu0 0
    %802 = vmatprep.subr.bf16.mxu0 0
    %803 = vmatpush1.bf16.msra.mxu0 0
    %804 = vmatprep.subr.bf16.mxu0 0
    %805 = vmatpush1.bf16.msra.mxu0 0
    %806 = vmatprep.subr.bf16.mxu0 0
    %807 = vmatpush1.bf16.msra.mxu0 0
    %808 = vmatprep.subr.bf16.mxu0 0
    %809 = vmatpush1.bf16.msra.mxu0 0
    %810 = vmatprep.subr.bf16.mxu0 0
    %811 = vmatpush1.bf16.msra.mxu0 0
    %812 = vmatprep.subr.bf16.mxu0 0
    %813 = vmatpush1.bf16.msra.mxu0 0
    %814 = vmatprep.subr.bf16.mxu0 0
    %815 = vmatpush1.bf16.msra.mxu0 0
    %816 = vmatprep.subr.bf16.mxu0 0
    %817 = vmatpush1.bf16.msra.mxu0 0
    %818 = vmatprep.mubr.bf16.mxu0 0
    %819 = vmatmul.mubr.bf16.gmra.mrb[0].mxu0 %v784
    %v820 = vpop.f32.mrb[0].mxu0
    %v821 = vadd.f32 0.0, %v820
    %v822 = vpop.f32.mrb[0].mxu0
    %v823 = vpop.f32.mrb[0].mxu0
    %v824 = vadd.f32 0.0, %v823
    %v825 = vpop.f32.mrb[0].mxu0
    %826 = vdwg.mxu0
    %828 = vrot.lane.b32.xlu0 %v778, 32
    %v829 = vpop.permute.xlu0 %828
    %v831 = vsel %vm375, %v829, 0
    %833 = vmatprep.subr.bf16.mxu0 0
    %834 = vmatpush1.bf16.msra.mxu0 %v547
    %835 = vmatprep.subr.bf16.mxu0 0
    %836 = vmatpush1.bf16.msra.mxu0 %v548
    %837 = vmatprep.subr.bf16.mxu0 0
    %838 = vmatpush1.bf16.msra.mxu0 0
    %839 = vmatprep.subr.bf16.mxu0 0
    %840 = vmatpush1.bf16.msra.mxu0 0
    %841 = vmatprep.subr.bf16.mxu0 0
    %842 = vmatpush1.bf16.msra.mxu0 0
    %843 = vmatprep.subr.bf16.mxu0 0
    %844 = vmatpush1.bf16.msra.mxu0 0
    %845 = vmatprep.subr.bf16.mxu0 0
    %846 = vmatpush1.bf16.msra.mxu0 0
    %847 = vmatprep.subr.bf16.mxu0 0
    %848 = vmatpush1.bf16.msra.mxu0 0
    %849 = vmatprep.subr.bf16.mxu0 0
    %850 = vmatpush1.bf16.msra.mxu0 0
    %851 = vmatprep.subr.bf16.mxu0 0
    %852 = vmatpush1.bf16.msra.mxu0 0
    %853 = vmatprep.subr.bf16.mxu0 0
    %854 = vmatpush1.bf16.msra.mxu0 0
    %855 = vmatprep.subr.bf16.mxu0 0
    %856 = vmatpush1.bf16.msra.mxu0 0
    %857 = vmatprep.subr.bf16.mxu0 0
    %858 = vmatpush1.bf16.msra.mxu0 0
    %859 = vmatprep.subr.bf16.mxu0 0
    %860 = vmatpush1.bf16.msra.mxu0 0
    %861 = vmatprep.subr.bf16.mxu0 0
    %862 = vmatpush1.bf16.msra.mxu0 0
    %863 = vmatprep.subr.bf16.mxu0 0
    %864 = vmatpush1.bf16.msra.mxu0 0
    %865 = vmatprep.mubr.bf16.mxu0 0
    %866 = vmatmul.mubr.bf16.gmra.mrb[0].mxu0 %v831
    %v867 = vpop.f32.mrb[0].mxu0
    %v868 = vadd.f32 %v821, %v867
    %v869 = vpop.f32.mrb[0].mxu0
    %v870 = vpop.f32.mrb[0].mxu0
    %v871 = vadd.f32 %v824, %v870
    %v872 = vpop.f32.mrb[0].mxu0
    %873 = vdwg.mxu0
    %v874 = vadd.f32 %v868, %v599
    %v875 = vadd.f32 %v871, %v599
    %v876 = vadd.f32 %v874, %v874
    %v877 = vadd.f32 %v875, %v875
    %v878 = vsel %vm360, %v876, %v874
    %v879 = vsel %vm360, %v877, %v875
    %v880 = vxor.u32 %v878, 2147483648
    %v881 = vxor.u32 %v879, 2147483648
    %v882 = vmul.f32 %v880, 1.442695
    %v883 = vpow.pop %v882
    %v884 = vmul.f32 %v881, 1.442695
    %v885 = vpow.pop %v884
    %v886 = vadd.f32 %v883, 1.0
    %v887 = vadd.f32 %v885, 1.0
    %v888 = vrcp.pop %v886
    %v889 = vmul.f32 1.0, %v888
    %v890 = vrcp.pop %v887
    %v891 = vmul.f32 1.0, %v890
    %v892 = vadd.f32 %v889, %v889
    %v893 = vadd.f32 %v891, %v891
    %v894 = vsub.f32 %v892, 1.0
    %v895 = vsub.f32 %v893, 1.0
    %v896 = vsel %vm360, %v894, %v889
    %v897 = vsel %vm360, %v895, %v891
    %v898 = vmul.f32 %v896, %v659
    %v899 = vmul.f32 %v897, %v660
    %902 = vrot.lane.b32.xlu0 %v896, 64
    %v903 = vpop.permute.xlu0 %902
    %904 = vrot.lane.b32.xlu0 %v897, 64
    %v905 = vpop.permute.xlu0 %904
    %v908 = vmul.f32 %v896, %v903
    %v909 = vmul.f32 %v897, %v905
    %912 = vrot.lane.b32.xlu0 %v908, 32
    %v913 = vpop.permute.xlu0 %912
    %914 = vrot.lane.b32.xlu0 %v909, 32
    %v915 = vpop.permute.xlu0 %914
    %v918 = vadd.f32 %v898, %v913
    %v919 = vadd.f32 %v899, %v915
    %v920 = vtanh.pop %v918
    %v921 = vtanh.pop %v919
    %924 = vrot.lane.b32.xlu0 %v920, 64
    %v925 = vpop.permute.xlu0 %924
    %926 = vrot.lane.b32.xlu0 %v921, 64
    %v927 = vpop.permute.xlu0 %926
    %v930 = vmul.f32 %v896, %v925
    %v931 = vmul.f32 %v897, %v927
    %v932 = vsel %vm673, %v918, %v659
    %v933 = vsel %vm674, %v919, %v660
    %v934 = vsel %vm673, %v930, %v661
    %v935 = vsel %vm674, %v931, %v662
    %v936 = vsel %vm673, %v930, 0.0
    %v937 = vsel %vm674, %v931, 0.0
    %940 = vrot.lane.b32.xlu0 %v936, 32
    %v941 = vpop.permute.xlu0 %940
    %942 = vrot.lane.b32.xlu0 %v937, 32
    %v943 = vpop.permute.xlu0 %942
    %946 = vst.msk [vmem:[#allocation2 + $0x10] sm:$0xff] %vm375, %v941
    %947 = vst.msk [vmem:[#allocation2 + $0x18] sm:$0xff] %vm375, %v943
    %vm948 = vcmp.gt.s32.totalorder %v352, 2
    %vm949 = vcmp.gt.s32.totalorder %v355, 2
    %950 = vmatprep.subr.bf16.mxu0 0
    %951 = vmatpush1.bf16.msra.mxu0 %v371
    %952 = vmatprep.subr.bf16.mxu0 0
    %953 = vmatpush1.bf16.msra.mxu0 %v372
    %954 = vmatprep.subr.bf16.mxu0 0
    %955 = vmatpush1.bf16.msra.mxu0 0
    %956 = vmatprep.subr.bf16.mxu0 0
    %957 = vmatpush1.bf16.msra.mxu0 0
    %958 = vmatprep.subr.bf16.mxu0 0
    %959 = vmatpush1.bf16.msra.mxu0 0
    %960 = vmatprep.subr.bf16.mxu0 0
    %961 = vmatpush1.bf16.msra.mxu0 0
    %962 = vmatprep.subr.bf16.mxu0 0
    %963 = vmatpush1.bf16.msra.mxu0 0
    %964 = vmatprep.subr.bf16.mxu0 0
    %965 = vmatpush1.bf16.msra.mxu0 0
    %966 = vmatprep.subr.bf16.mxu0 0
    %967 = vmatpush1.bf16.msra.mxu0 0
    %968 = vmatprep.subr.bf16.mxu0 0
    %969 = vmatpush1.bf16.msra.mxu0 0
    %970 = vmatprep.subr.bf16.mxu0 0
    %971 = vmatpush1.bf16.msra.mxu0 0
    %972 = vmatprep.subr.bf16.mxu0 0
    %973 = vmatpush1.bf16.msra.mxu0 0
    %974 = vmatprep.subr.bf16.mxu0 0
    %975 = vmatpush1.bf16.msra.mxu0 0
    %976 = vmatprep.subr.bf16.mxu0 0
    %977 = vmatpush1.bf16.msra.mxu0 0
    %978 = vmatprep.subr.bf16.mxu0 0
    %979 = vmatpush1.bf16.msra.mxu0 0
    %980 = vmatprep.subr.bf16.mxu0 0
    %981 = vmatpush1.bf16.msra.mxu0 0
    %982 = vmatprep.mubr.bf16.mxu0 0
    %983 = vmatmul.mubr.bf16.gmra.mrb[0].mxu0 %v831
    %v984 = vpop.f32.mrb[0].mxu0
    %v985 = vadd.f32 0.0, %v984
    %v986 = vpop.f32.mrb[0].mxu0
    %v987 = vpop.f32.mrb[0].mxu0
    %v988 = vadd.f32 0.0, %v987
    %v989 = vpop.f32.mrb[0].mxu0
    %990 = vdwg.mxu0
    %v991 = vadd.f32 %v289, %v985
    %v992 = vadd.f32 %v292, %v988
    %v993 = vadd.f32 %v991, %v991
    %v994 = vadd.f32 %v992, %v992
    %v995 = vsel %vm360, %v993, %v991
    %v996 = vsel %vm360, %v994, %v992
    %v997 = vxor.u32 %v995, 2147483648
    %v998 = vxor.u32 %v996, 2147483648
    %v999 = vmul.f32 %v997, 1.442695
    %v1000 = vpow.pop %v999
    %v1001 = vmul.f32 %v998, 1.442695
    %v1002 = vpow.pop %v1001
    %v1003 = vadd.f32 %v1000, 1.0
    %v1004 = vadd.f32 %v1002, 1.0
    %v1005 = vrcp.pop %v1003
    %v1006 = vmul.f32 1.0, %v1005
    %v1007 = vrcp.pop %v1004
    %v1008 = vmul.f32 1.0, %v1007
    %v1009 = vadd.f32 %v1006, %v1006
    %v1010 = vadd.f32 %v1008, %v1008
    %v1011 = vsub.f32 %v1009, 1.0
    %v1012 = vsub.f32 %v1010, 1.0
    %v1013 = vsel %vm360, %v1011, %v1006
    %v1014 = vsel %vm360, %v1012, %v1008
    %v1015 = vmul.f32 %v1013, %v774
    %v1016 = vmul.f32 %v1014, %v775
    %1019 = vrot.lane.b32.xlu0 %v1013, 64
    %v1020 = vpop.permute.xlu0 %1019
    %1021 = vrot.lane.b32.xlu0 %v1014, 64
    %v1022 = vpop.permute.xlu0 %1021
    %v1025 = vmul.f32 %v1013, %v1020
    %v1026 = vmul.f32 %v1014, %v1022
    %1029 = vrot.lane.b32.xlu0 %v1025, 32
    %v1030 = vpop.permute.xlu0 %1029
    %1031 = vrot.lane.b32.xlu0 %v1026, 32
    %v1032 = vpop.permute.xlu0 %1031
    %v1035 = vadd.f32 %v1015, %v1030
    %v1036 = vadd.f32 %v1016, %v1032
    %v1037 = vtanh.pop %v1035
    %v1038 = vtanh.pop %v1036
    %1041 = vrot.lane.b32.xlu0 %v1037, 64
    %v1042 = vpop.permute.xlu0 %1041
    %1043 = vrot.lane.b32.xlu0 %v1038, 64
    %v1044 = vpop.permute.xlu0 %1043
    %v1047 = vmul.f32 %v1013, %v1042
    %v1048 = vmul.f32 %v1014, %v1044
    %v1049 = vsel %vm948, %v1035, %v774
    %v1050 = vsel %vm949, %v1036, %v775
    %v1051 = vsel %vm948, %v1047, %v776
    %v1052 = vsel %vm949, %v1048, %v777
    %v1053 = vpack.c.bf16 %v1052, %v1051
    %v1054 = vpack.c.bf16 %v935, %v934
    %1056 = vrot.lane.b32.xlu0 %v1054, 32
    %v1057 = vpop.permute.xlu0 %1056
    %v1059 = vsel %vm375, %v1057, 0
    %1061 = vmatprep.subr.bf16.mxu0 0
    %1062 = vmatpush1.bf16.msra.mxu0 %v491
    %1063 = vmatprep.subr.bf16.mxu0 0
    %1064 = vmatpush1.bf16.msra.mxu0 %v492
    %1065 = vmatprep.subr.bf16.mxu0 0
    %1066 = vmatpush1.bf16.msra.mxu0 0
    %1067 = vmatprep.subr.bf16.mxu0 0
    %1068 = vmatpush1.bf16.msra.mxu0 0
    %1069 = vmatprep.subr.bf16.mxu0 0
    %1070 = vmatpush1.bf16.msra.mxu0 0
    %1071 = vmatprep.subr.bf16.mxu0 0
    %1072 = vmatpush1.bf16.msra.mxu0 0
    %1073 = vmatprep.subr.bf16.mxu0 0
    %1074 = vmatpush1.bf16.msra.mxu0 0
    %1075 = vmatprep.subr.bf16.mxu0 0
    %1076 = vmatpush1.bf16.msra.mxu0 0
    %1077 = vmatprep.subr.bf16.mxu0 0
    %1078 = vmatpush1.bf16.msra.mxu0 0
    %1079 = vmatprep.subr.bf16.mxu0 0
    %1080 = vmatpush1.bf16.msra.mxu0 0
    %1081 = vmatprep.subr.bf16.mxu0 0
    %1082 = vmatpush1.bf16.msra.mxu0 0
    %1083 = vmatprep.subr.bf16.mxu0 0
    %1084 = vmatpush1.bf16.msra.mxu0 0
    %1085 = vmatprep.subr.bf16.mxu0 0
    %1086 = vmatpush1.bf16.msra.mxu0 0
    %1087 = vmatprep.subr.bf16.mxu0 0
    %1088 = vmatpush1.bf16.msra.mxu0 0
    %1089 = vmatprep.subr.bf16.mxu0 0
    %1090 = vmatpush1.bf16.msra.mxu0 0
    %1091 = vmatprep.subr.bf16.mxu0 0
    %1092 = vmatpush1.bf16.msra.mxu0 0
    %1093 = vmatprep.mubr.bf16.mxu0 0
    %1094 = vmatmul.mubr.bf16.gmra.mrb[0].mxu0 %v1059
    %v1095 = vpop.f32.mrb[0].mxu0
    %v1096 = vadd.f32 0.0, %v1095
    %v1097 = vpop.f32.mrb[0].mxu0
    %v1098 = vpop.f32.mrb[0].mxu0
    %v1099 = vadd.f32 0.0, %v1098
    %v1100 = vpop.f32.mrb[0].mxu0
    %1101 = vdwg.mxu0
    %1103 = vrot.lane.b32.xlu0 %v1053, 32
    %v1104 = vpop.permute.xlu0 %1103
    %v1106 = vsel %vm375, %v1104, 0
    %1108 = vmatprep.subr.bf16.mxu0 0
    %1109 = vmatpush1.bf16.msra.mxu0 %v547
    %1110 = vmatprep.subr.bf16.mxu0 0
    %1111 = vmatpush1.bf16.msra.mxu0 %v548
    %1112 = vmatprep.subr.bf16.mxu0 0
    %1113 = vmatpush1.bf16.msra.mxu0 0
    %1114 = vmatprep.subr.bf16.mxu0 0
    %1115 = vmatpush1.bf16.msra.mxu0 0
    %1116 = vmatprep.subr.bf16.mxu0 0
    %1117 = vmatpush1.bf16.msra.mxu0 0
    %1118 = vmatprep.subr.bf16.mxu0 0
    %1119 = vmatpush1.bf16.msra.mxu0 0
    %1120 = vmatprep.subr.bf16.mxu0 0
    %1121 = vmatpush1.bf16.msra.mxu0 0
    %1122 = vmatprep.subr.bf16.mxu0 0
    %1123 = vmatpush1.bf16.msra.mxu0 0
    %1124 = vmatprep.subr.bf16.mxu0 0
    %1125 = vmatpush1.bf16.msra.mxu0 0
    %1126 = vmatprep.subr.bf16.mxu0 0
    %1127 = vmatpush1.bf16.msra.mxu0 0
    %1128 = vmatprep.subr.bf16.mxu0 0
    %1129 = vmatpush1.bf16.msra.mxu0 0
    %1130 = vmatprep.subr.bf16.mxu0 0
    %1131 = vmatpush1.bf16.msra.mxu0 0
    %1132 = vmatprep.subr.bf16.mxu0 0
    %1133 = vmatpush1.bf16.msra.mxu0 0
    %1134 = vmatprep.subr.bf16.mxu0 0
    %1135 = vmatpush1.bf16.msra.mxu0 0
    %1136 = vmatprep.subr.bf16.mxu0 0
    %1137 = vmatpush1.bf16.msra.mxu0 0
    %1138 = vmatprep.subr.bf16.mxu0 0
    %1139 = vmatpush1.bf16.msra.mxu0 0
    %1140 = vmatprep.mubr.bf16.mxu0 0
    %1141 = vmatmul.mubr.bf16.gmra.mrb[0].mxu0 %v1106
    %v1142 = vpop.f32.mrb[0].mxu0
    %v1143 = vadd.f32 %v1096, %v1142
    %v1144 = vpop.f32.mrb[0].mxu0
    %v1145 = vpop.f32.mrb[0].mxu0
    %v1146 = vadd.f32 %v1099, %v1145
    %v1147 = vpop.f32.mrb[0].mxu0
    %1148 = vdwg.mxu0
    %v1149 = vadd.f32 %v1143, %v599
    %v1150 = vadd.f32 %v1146, %v599
    %v1151 = vadd.f32 %v1149, %v1149
    %v1152 = vadd.f32 %v1150, %v1150
    %v1153 = vsel %vm360, %v1151, %v1149
    %v1154 = vsel %vm360, %v1152, %v1150
    %v1155 = vxor.u32 %v1153, 2147483648
    %v1156 = vxor.u32 %v1154, 2147483648
    %v1157 = vmul.f32 %v1155, 1.442695
    %v1158 = vpow.pop %v1157
    %v1159 = vmul.f32 %v1156, 1.442695
    %v1160 = vpow.pop %v1159
    %v1161 = vadd.f32 %v1158, 1.0
    %v1162 = vadd.f32 %v1160, 1.0
    %v1163 = vrcp.pop %v1161
    %v1164 = vmul.f32 1.0, %v1163
    %v1165 = vrcp.pop %v1162
    %v1166 = vmul.f32 1.0, %v1165
    %v1167 = vadd.f32 %v1164, %v1164
    %v1168 = vadd.f32 %v1166, %v1166
    %v1169 = vsub.f32 %v1167, 1.0
    %v1170 = vsub.f32 %v1168, 1.0
    %v1171 = vsel %vm360, %v1169, %v1164
    %v1172 = vsel %vm360, %v1170, %v1166
    %v1173 = vmul.f32 %v1171, %v932
    %v1174 = vmul.f32 %v1172, %v933
    %1177 = vrot.lane.b32.xlu0 %v1171, 64
    %v1178 = vpop.permute.xlu0 %1177
    %1179 = vrot.lane.b32.xlu0 %v1172, 64
    %v1180 = vpop.permute.xlu0 %1179
    %v1183 = vmul.f32 %v1171, %v1178
    %v1184 = vmul.f32 %v1172, %v1180
    %1187 = vrot.lane.b32.xlu0 %v1183, 32
    %v1188 = vpop.permute.xlu0 %1187
    %1189 = vrot.lane.b32.xlu0 %v1184, 32
    %v1190 = vpop.permute.xlu0 %1189
    %v1193 = vadd.f32 %v1173, %v1188
    %v1194 = vadd.f32 %v1174, %v1190
    %v1195 = vtanh.pop %v1193
    %v1196 = vtanh.pop %v1194
    %1199 = vrot.lane.b32.xlu0 %v1195, 64
    %v1200 = vpop.permute.xlu0 %1199
    %1201 = vrot.lane.b32.xlu0 %v1196, 64
    %v1202 = vpop.permute.xlu0 %1201
    %v1205 = vmul.f32 %v1171, %v1200
    %v1206 = vmul.f32 %v1172, %v1202
    %v1207 = vsel %vm948, %v1193, %v932
    %v1208 = vsel %vm949, %v1194, %v933
    %v1209 = vsel %vm948, %v1205, %v934
    %v1210 = vsel %vm949, %v1206, %v935
    %v1211 = vsel %vm948, %v1205, 0.0
    %v1212 = vsel %vm949, %v1206, 0.0
    %1215 = vrot.lane.b32.xlu0 %v1211, 32
    %v1216 = vpop.permute.xlu0 %1215
    %1217 = vrot.lane.b32.xlu0 %v1212, 32
    %v1218 = vpop.permute.xlu0 %1217
    %1221 = vst.msk [vmem:[#allocation2 + $0x20] sm:$0xff] %vm375, %v1216
    %1222 = vst.msk [vmem:[#allocation2 + $0x28] sm:$0xff] %vm375, %v1218
    %vm1223 = vcmp.gt.s32.totalorder %v352, 3
    %vm1224 = vcmp.gt.s32.totalorder %v355, 3
    %1225 = vmatprep.subr.bf16.mxu0 0
    %1226 = vmatpush1.bf16.msra.mxu0 %v371
    %1227 = vmatprep.subr.bf16.mxu0 0
    %1228 = vmatpush1.bf16.msra.mxu0 %v372
    %1229 = vmatprep.subr.bf16.mxu0 0
    %1230 = vmatpush1.bf16.msra.mxu0 0
    %1231 = vmatprep.subr.bf16.mxu0 0
    %1232 = vmatpush1.bf16.msra.mxu0 0
    %1233 = vmatprep.subr.bf16.mxu0 0
    %1234 = vmatpush1.bf16.msra.mxu0 0
    %1235 = vmatprep.subr.bf16.mxu0 0
    %1236 = vmatpush1.bf16.msra.mxu0 0
    %1237 = vmatprep.subr.bf16.mxu0 0
    %1238 = vmatpush1.bf16.msra.mxu0 0
    %1239 = vmatprep.subr.bf16.mxu0 0
    %1240 = vmatpush1.bf16.msra.mxu0 0
    %1241 = vmatprep.subr.bf16.mxu0 0
    %1242 = vmatpush1.bf16.msra.mxu0 0
    %1243 = vmatprep.subr.bf16.mxu0 0
    %1244 = vmatpush1.bf16.msra.mxu0 0
    %1245 = vmatprep.subr.bf16.mxu0 0
    %1246 = vmatpush1.bf16.msra.mxu0 0
    %1247 = vmatprep.subr.bf16.mxu0 0
    %1248 = vmatpush1.bf16.msra.mxu0 0
    %1249 = vmatprep.subr.bf16.mxu0 0
    %1250 = vmatpush1.bf16.msra.mxu0 0
    %1251 = vmatprep.subr.bf16.mxu0 0
    %1252 = vmatpush1.bf16.msra.mxu0 0
    %1253 = vmatprep.subr.bf16.mxu0 0
    %1254 = vmatpush1.bf16.msra.mxu0 0
    %1255 = vmatprep.subr.bf16.mxu0 0
    %1256 = vmatpush1.bf16.msra.mxu0 0
    %1257 = vmatprep.mubr.bf16.mxu0 0
    %1258 = vmatmul.mubr.bf16.gmra.mrb[0].mxu0 %v1106
    %v1259 = vpop.f32.mrb[0].mxu0
    %v1260 = vadd.f32 0.0, %v1259
    %v1261 = vpop.f32.mrb[0].mxu0
    %v1262 = vpop.f32.mrb[0].mxu0
    %v1263 = vadd.f32 0.0, %v1262
    %v1264 = vpop.f32.mrb[0].mxu0
    %1265 = vdwg.mxu0
    %v1266 = vadd.f32 %v297, %v1260
    %v1267 = vadd.f32 %v300, %v1263
    %v1268 = vadd.f32 %v1266, %v1266
    %v1269 = vadd.f32 %v1267, %v1267
    %v1270 = vsel %vm360, %v1268, %v1266
    %v1271 = vsel %vm360, %v1269, %v1267
    %v1272 = vxor.u32 %v1270, 2147483648
    %v1273 = vxor.u32 %v1271, 2147483648
    %v1274 = vmul.f32 %v1272, 1.442695
    %v1275 = vpow.pop %v1274
    %v1276 = vmul.f32 %v1273, 1.442695
    %v1277 = vpow.pop %v1276
    %v1278 = vadd.f32 %v1275, 1.0
    %v1279 = vadd.f32 %v1277, 1.0
    %v1280 = vrcp.pop %v1278
    %v1281 = vmul.f32 1.0, %v1280
    %v1282 = vrcp.pop %v1279
    %v1283 = vmul.f32 1.0, %v1282
    %v1284 = vadd.f32 %v1281, %v1281
    %v1285 = vadd.f32 %v1283, %v1283
    %v1286 = vsub.f32 %v1284, 1.0
    %v1287 = vsub.f32 %v1285, 1.0
    %v1288 = vsel %vm360, %v1286, %v1281
    %v1289 = vsel %vm360, %v1287, %v1283
    %v1290 = vmul.f32 %v1288, %v1049
    %v1291 = vmul.f32 %v1289, %v1050
    %1294 = vrot.lane.b32.xlu0 %v1288, 64
    %v1295 = vpop.permute.xlu0 %1294
    %1296 = vrot.lane.b32.xlu0 %v1289, 64
    %v1297 = vpop.permute.xlu0 %1296
    %v1300 = vmul.f32 %v1288, %v1295
    %v1301 = vmul.f32 %v1289, %v1297
    %1304 = vrot.lane.b32.xlu0 %v1300, 32
    %v1305 = vpop.permute.xlu0 %1304
    %1306 = vrot.lane.b32.xlu0 %v1301, 32
    %v1307 = vpop.permute.xlu0 %1306
    %v1310 = vadd.f32 %v1290, %v1305
    %v1311 = vadd.f32 %v1291, %v1307
    %v1312 = vtanh.pop %v1310
    %v1313 = vtanh.pop %v1311
    %1316 = vrot.lane.b32.xlu0 %v1312, 64
    %v1317 = vpop.permute.xlu0 %1316
    %1318 = vrot.lane.b32.xlu0 %v1313, 64
    %v1319 = vpop.permute.xlu0 %1318
    %v1322 = vmul.f32 %v1288, %v1317
    %v1323 = vmul.f32 %v1289, %v1319
    %v1324 = vsel %vm1223, %v1310, %v1049
    %v1325 = vsel %vm1224, %v1311, %v1050
    %v1326 = vsel %vm1223, %v1322, %v1051
    %v1327 = vsel %vm1224, %v1323, %v1052
    %v1328 = vpack.c.bf16 %v1327, %v1326
    %v1329 = vpack.c.bf16 %v1210, %v1209
    %1331 = vrot.lane.b32.xlu0 %v1329, 32
    %v1332 = vpop.permute.xlu0 %1331
    %v1334 = vsel %vm375, %v1332, 0
    %1336 = vmatprep.subr.bf16.mxu0 0
    %1337 = vmatpush1.bf16.msra.mxu0 %v491
    %1338 = vmatprep.subr.bf16.mxu0 0
    %1339 = vmatpush1.bf16.msra.mxu0 %v492
    %1340 = vmatprep.subr.bf16.mxu0 0
    %1341 = vmatpush1.bf16.msra.mxu0 0
    %1342 = vmatprep.subr.bf16.mxu0 0
    %1343 = vmatpush1.bf16.msra.mxu0 0
    %1344 = vmatprep.subr.bf16.mxu0 0
    %1345 = vmatpush1.bf16.msra.mxu0 0
    %1346 = vmatprep.subr.bf16.mxu0 0
    %1347 = vmatpush1.bf16.msra.mxu0 0
    %1348 = vmatprep.subr.bf16.mxu0 0
    %1349 = vmatpush1.bf16.msra.mxu0 0
    %1350 = vmatprep.subr.bf16.mxu0 0
    %1351 = vmatpush1.bf16.msra.mxu0 0
    %1352 = vmatprep.subr.bf16.mxu0 0
    %1353 = vmatpush1.bf16.msra.mxu0 0
    %1354 = vmatprep.subr.bf16.mxu0 0
    %1355 = vmatpush1.bf16.msra.mxu0 0
    %1356 = vmatprep.subr.bf16.mxu0 0
    %1357 = vmatpush1.bf16.msra.mxu0 0
    %1358 = vmatprep.subr.bf16.mxu0 0
    %1359 = vmatpush1.bf16.msra.mxu0 0
    %1360 = vmatprep.subr.bf16.mxu0 0
    %1361 = vmatpush1.bf16.msra.mxu0 0
    %1362 = vmatprep.subr.bf16.mxu0 0
    %1363 = vmatpush1.bf16.msra.mxu0 0
    %1364 = vmatprep.subr.bf16.mxu0 0
    %1365 = vmatpush1.bf16.msra.mxu0 0
    %1366 = vmatprep.subr.bf16.mxu0 0
    %1367 = vmatpush1.bf16.msra.mxu0 0
    %1368 = vmatprep.mubr.bf16.mxu0 0
    %1369 = vmatmul.mubr.bf16.gmra.mrb[0].mxu0 %v1334
    %v1370 = vpop.f32.mrb[0].mxu0
    %v1371 = vadd.f32 0.0, %v1370
    %v1372 = vpop.f32.mrb[0].mxu0
    %v1373 = vpop.f32.mrb[0].mxu0
    %v1374 = vadd.f32 0.0, %v1373
    %v1375 = vpop.f32.mrb[0].mxu0
    %1376 = vdwg.mxu0
    %1378 = vrot.lane.b32.xlu0 %v1328, 32
    %v1379 = vpop.permute.xlu0 %1378
    %v1381 = vsel %vm375, %v1379, 0
    %1383 = vmatprep.subr.bf16.mxu0 0
    %1384 = vmatpush1.bf16.msra.mxu0 %v547
    %1385 = vmatprep.subr.bf16.mxu0 0
    %1386 = vmatpush1.bf16.msra.mxu0 %v548
    %1387 = vmatprep.subr.bf16.mxu0 0
    %1388 = vmatpush1.bf16.msra.mxu0 0
    %1389 = vmatprep.subr.bf16.mxu0 0
    %1390 = vmatpush1.bf16.msra.mxu0 0
    %1391 = vmatprep.subr.bf16.mxu0 0
    %1392 = vmatpush1.bf16.msra.mxu0 0
    %1393 = vmatprep.subr.bf16.mxu0 0
    %1394 = vmatpush1.bf16.msra.mxu0 0
    %1395 = vmatprep.subr.bf16.mxu0 0
    %1396 = vmatpush1.bf16.msra.mxu0 0
    %1397 = vmatprep.subr.bf16.mxu0 0
    %1398 = vmatpush1.bf16.msra.mxu0 0
    %1399 = vmatprep.subr.bf16.mxu0 0
    %1400 = vmatpush1.bf16.msra.mxu0 0
    %1401 = vmatprep.subr.bf16.mxu0 0
    %1402 = vmatpush1.bf16.msra.mxu0 0
    %1403 = vmatprep.subr.bf16.mxu0 0
    %1404 = vmatpush1.bf16.msra.mxu0 0
    %1405 = vmatprep.subr.bf16.mxu0 0
    %1406 = vmatpush1.bf16.msra.mxu0 0
    %1407 = vmatprep.subr.bf16.mxu0 0
    %1408 = vmatpush1.bf16.msra.mxu0 0
    %1409 = vmatprep.subr.bf16.mxu0 0
    %1410 = vmatpush1.bf16.msra.mxu0 0
    %1411 = vmatprep.subr.bf16.mxu0 0
    %1412 = vmatpush1.bf16.msra.mxu0 0
    %1413 = vmatprep.subr.bf16.mxu0 0
    %1414 = vmatpush1.bf16.msra.mxu0 0
    %1415 = vmatprep.mubr.bf16.mxu0 0
    %1416 = vmatmul.mubr.bf16.gmra.mrb[0].mxu0 %v1381
    %v1417 = vpop.f32.mrb[0].mxu0
    %v1418 = vadd.f32 %v1371, %v1417
    %v1419 = vpop.f32.mrb[0].mxu0
    %v1420 = vpop.f32.mrb[0].mxu0
    %v1421 = vadd.f32 %v1374, %v1420
    %v1422 = vpop.f32.mrb[0].mxu0
    %1423 = vdwg.mxu0
    %v1424 = vadd.f32 %v1418, %v599
    %v1425 = vadd.f32 %v1421, %v599
    %v1426 = vadd.f32 %v1424, %v1424
    %v1427 = vadd.f32 %v1425, %v1425
    %v1428 = vsel %vm360, %v1426, %v1424
    %v1429 = vsel %vm360, %v1427, %v1425
    %v1430 = vxor.u32 %v1428, 2147483648
    %v1431 = vxor.u32 %v1429, 2147483648
    %v1432 = vmul.f32 %v1430, 1.442695
    %v1433 = vpow.pop %v1432
    %v1434 = vmul.f32 %v1431, 1.442695
    %v1435 = vpow.pop %v1434
    %v1436 = vadd.f32 %v1433, 1.0
    %v1437 = vadd.f32 %v1435, 1.0
    %v1438 = vrcp.pop %v1436
    %v1439 = vmul.f32 1.0, %v1438
    %v1440 = vrcp.pop %v1437
    %v1441 = vmul.f32 1.0, %v1440
    %v1442 = vadd.f32 %v1439, %v1439
    %v1443 = vadd.f32 %v1441, %v1441
    %v1444 = vsub.f32 %v1442, 1.0
    %v1445 = vsub.f32 %v1443, 1.0
    %v1446 = vsel %vm360, %v1444, %v1439
    %v1447 = vsel %vm360, %v1445, %v1441
    %v1448 = vmul.f32 %v1446, %v1207
    %v1449 = vmul.f32 %v1447, %v1208
    %1452 = vrot.lane.b32.xlu0 %v1446, 64
    %v1453 = vpop.permute.xlu0 %1452
    %1454 = vrot.lane.b32.xlu0 %v1447, 64
    %v1455 = vpop.permute.xlu0 %1454
    %v1458 = vmul.f32 %v1446, %v1453
    %v1459 = vmul.f32 %v1447, %v1455
    %1462 = vrot.lane.b32.xlu0 %v1458, 32
    %v1463 = vpop.permute.xlu0 %1462
    %1464 = vrot.lane.b32.xlu0 %v1459, 32
    %v1465 = vpop.permute.xlu0 %1464
    %v1468 = vadd.f32 %v1448, %v1463
    %v1469 = vadd.f32 %v1449, %v1465
    %v1470 = vtanh.pop %v1468
    %v1471 = vtanh.pop %v1469
    %1474 = vrot.lane.b32.xlu0 %v1470, 64
    %v1475 = vpop.permute.xlu0 %1474
    %1476 = vrot.lane.b32.xlu0 %v1471, 64
    %v1477 = vpop.permute.xlu0 %1476
    %v1480 = vmul.f32 %v1446, %v1475
    %v1481 = vmul.f32 %v1447, %v1477
    %v1482 = vsel %vm1223, %v1468, %v1207
    %v1483 = vsel %vm1224, %v1469, %v1208
    %v1484 = vsel %vm1223, %v1480, %v1209
    %v1485 = vsel %vm1224, %v1481, %v1210
    %v1486 = vsel %vm1223, %v1480, 0.0
    %v1487 = vsel %vm1224, %v1481, 0.0
    %1490 = vrot.lane.b32.xlu0 %v1486, 32
    %v1491 = vpop.permute.xlu0 %1490
    %1492 = vrot.lane.b32.xlu0 %v1487, 32
    %v1493 = vpop.permute.xlu0 %1492
    %1496 = vst.msk [vmem:[#allocation2 + $0x30] sm:$0xff] %vm375, %v1491
    %1497 = vst.msk [vmem:[#allocation2 + $0x38] sm:$0xff] %vm375, %v1493
    %vm1498 = vcmp.gt.s32.totalorder %v352, 4
    %vm1499 = vcmp.gt.s32.totalorder %v355, 4
    %1500 = vmatprep.subr.bf16.mxu0 0
    %1501 = vmatpush1.bf16.msra.mxu0 %v371
    %1502 = vmatprep.subr.bf16.mxu0 0
    %1503 = vmatpush1.bf16.msra.mxu0 %v372
    %1504 = vmatprep.subr.bf16.mxu0 0
    %1505 = vmatpush1.bf16.msra.mxu0 0
    %1506 = vmatprep.subr.bf16.mxu0 0
    %1507 = vmatpush1.bf16.msra.mxu0 0
    %1508 = vmatprep.subr.bf16.mxu0 0
    %1509 = vmatpush1.bf16.msra.mxu0 0
    %1510 = vmatprep.subr.bf16.mxu0 0
    %1511 = vmatpush1.bf16.msra.mxu0 0
    %1512 = vmatprep.subr.bf16.mxu0 0
    %1513 = vmatpush1.bf16.msra.mxu0 0
    %1514 = vmatprep.subr.bf16.mxu0 0
    %1515 = vmatpush1.bf16.msra.mxu0 0
    %1516 = vmatprep.subr.bf16.mxu0 0
    %1517 = vmatpush1.bf16.msra.mxu0 0
    %1518 = vmatprep.subr.bf16.mxu0 0
    %1519 = vmatpush1.bf16.msra.mxu0 0
    %1520 = vmatprep.subr.bf16.mxu0 0
    %1521 = vmatpush1.bf16.msra.mxu0 0
    %1522 = vmatprep.subr.bf16.mxu0 0
    %1523 = vmatpush1.bf16.msra.mxu0 0
    %1524 = vmatprep.subr.bf16.mxu0 0
    %1525 = vmatpush1.bf16.msra.mxu0 0
    %1526 = vmatprep.subr.bf16.mxu0 0
    %1527 = vmatpush1.bf16.msra.mxu0 0
    %1528 = vmatprep.subr.bf16.mxu0 0
    %1529 = vmatpush1.bf16.msra.mxu0 0
    %1530 = vmatprep.subr.bf16.mxu0 0
    %1531 = vmatpush1.bf16.msra.mxu0 0
    %1532 = vmatprep.mubr.bf16.mxu0 0
    %1533 = vmatmul.mubr.bf16.gmra.mrb[0].mxu0 %v1381
    %v1534 = vpop.f32.mrb[0].mxu0
    %v1535 = vadd.f32 0.0, %v1534
    %v1536 = vpop.f32.mrb[0].mxu0
    %v1537 = vpop.f32.mrb[0].mxu0
    %v1538 = vadd.f32 0.0, %v1537
    %v1539 = vpop.f32.mrb[0].mxu0
    %1540 = vdwg.mxu0
    %v1541 = vadd.f32 %v305, %v1535
    %v1542 = vadd.f32 %v308, %v1538
    %v1543 = vadd.f32 %v1541, %v1541
    %v1544 = vadd.f32 %v1542, %v1542
    %v1545 = vsel %vm360, %v1543, %v1541
    %v1546 = vsel %vm360, %v1544, %v1542
    %v1547 = vxor.u32 %v1545, 2147483648
    %v1548 = vxor.u32 %v1546, 2147483648
    %v1549 = vmul.f32 %v1547, 1.442695
    %v1550 = vpow.pop %v1549
    %v1551 = vmul.f32 %v1548, 1.442695
    %v1552 = vpow.pop %v1551
    %v1553 = vadd.f32 %v1550, 1.0
    %v1554 = vadd.f32 %v1552, 1.0
    %v1555 = vrcp.pop %v1553
    %v1556 = vmul.f32 1.0, %v1555
    %v1557 = vrcp.pop %v1554
    %v1558 = vmul.f32 1.0, %v1557
    %v1559 = vadd.f32 %v1556, %v1556
    %v1560 = vadd.f32 %v1558, %v1558
    %v1561 = vsub.f32 %v1559, 1.0
    %v1562 = vsub.f32 %v1560, 1.0
    %v1563 = vsel %vm360, %v1561, %v1556
    %v1564 = vsel %vm360, %v1562, %v1558
    %v1565 = vmul.f32 %v1563, %v1324
    %v1566 = vmul.f32 %v1564, %v1325
    %1569 = vrot.lane.b32.xlu0 %v1563, 64
    %v1570 = vpop.permute.xlu0 %1569
    %1571 = vrot.lane.b32.xlu0 %v1564, 64
    %v1572 = vpop.permute.xlu0 %1571
    %v1575 = vmul.f32 %v1563, %v1570
    %v1576 = vmul.f32 %v1564, %v1572
    %1579 = vrot.lane.b32.xlu0 %v1575, 32
    %v1580 = vpop.permute.xlu0 %1579
    %1581 = vrot.lane.b32.xlu0 %v1576, 32
    %v1582 = vpop.permute.xlu0 %1581
    %v1585 = vadd.f32 %v1565, %v1580
    %v1586 = vadd.f32 %v1566, %v1582
    %v1587 = vtanh.pop %v1585
    %v1588 = vtanh.pop %v1586
    %1591 = vrot.lane.b32.xlu0 %v1587, 64
    %v1592 = vpop.permute.xlu0 %1591
    %1593 = vrot.lane.b32.xlu0 %v1588, 64
    %v1594 = vpop.permute.xlu0 %1593
    %v1597 = vmul.f32 %v1563, %v1592
    %v1598 = vmul.f32 %v1564, %v1594
    %v1599 = vsel %vm1498, %v1585, %v1324
    %v1600 = vsel %vm1499, %v1586, %v1325
    %v1601 = vsel %vm1498, %v1597, %v1326
    %v1602 = vsel %vm1499, %v1598, %v1327
    %v1603 = vpack.c.bf16 %v1602, %v1601
    %v1604 = vpack.c.bf16 %v1485, %v1484
    %1606 = vrot.lane.b32.xlu0 %v1604, 32
    %v1607 = vpop.permute.xlu0 %1606
    %v1609 = vsel %vm375, %v1607, 0
    %1611 = vmatprep.subr.bf16.mxu0 0
    %1612 = vmatpush1.bf16.msra.mxu0 %v491
    %1613 = vmatprep.subr.bf16.mxu0 0
    %1614 = vmatpush1.bf16.msra.mxu0 %v492
    %1615 = vmatprep.subr.bf16.mxu0 0
    %1616 = vmatpush1.bf16.msra.mxu0 0
    %1617 = vmatprep.subr.bf16.mxu0 0
    %1618 = vmatpush1.bf16.msra.mxu0 0
    %1619 = vmatprep.subr.bf16.mxu0 0
    %1620 = vmatpush1.bf16.msra.mxu0 0
    %1621 = vmatprep.subr.bf16.mxu0 0
    %1622 = vmatpush1.bf16.msra.mxu0 0
    %1623 = vmatprep.subr.bf16.mxu0 0
    %1624 = vmatpush1.bf16.msra.mxu0 0
    %1625 = vmatprep.subr.bf16.mxu0 0
    %1626 = vmatpush1.bf16.msra.mxu0 0
    %1627 = vmatprep.subr.bf16.mxu0 0
    %1628 = vmatpush1.bf16.msra.mxu0 0
    %1629 = vmatprep.subr.bf16.mxu0 0
    %1630 = vmatpush1.bf16.msra.mxu0 0
    %1631 = vmatprep.subr.bf16.mxu0 0
    %1632 = vmatpush1.bf16.msra.mxu0 0
    %1633 = vmatprep.subr.bf16.mxu0 0
    %1634 = vmatpush1.bf16.msra.mxu0 0
    %1635 = vmatprep.subr.bf16.mxu0 0
    %1636 = vmatpush1.bf16.msra.mxu0 0
    %1637 = vmatprep.subr.bf16.mxu0 0
    %1638 = vmatpush1.bf16.msra.mxu0 0
    %1639 = vmatprep.subr.bf16.mxu0 0
    %1640 = vmatpush1.bf16.msra.mxu0 0
    %1641 = vmatprep.subr.bf16.mxu0 0
    %1642 = vmatpush1.bf16.msra.mxu0 0
    %1643 = vmatprep.mubr.bf16.mxu0 0
    %1644 = vmatmul.mubr.bf16.gmra.mrb[0].mxu0 %v1609
    %v1645 = vpop.f32.mrb[0].mxu0
    %v1646 = vadd.f32 0.0, %v1645
    %v1647 = vpop.f32.mrb[0].mxu0
    %v1648 = vpop.f32.mrb[0].mxu0
    %v1649 = vadd.f32 0.0, %v1648
    %v1650 = vpop.f32.mrb[0].mxu0
    %1651 = vdwg.mxu0
    %1653 = vrot.lane.b32.xlu0 %v1603, 32
    %v1654 = vpop.permute.xlu0 %1653
    %v1656 = vsel %vm375, %v1654, 0
    %1658 = vmatprep.subr.bf16.mxu0 0
    %1659 = vmatpush1.bf16.msra.mxu0 %v547
    %1660 = vmatprep.subr.bf16.mxu0 0
    %1661 = vmatpush1.bf16.msra.mxu0 %v548
    %1662 = vmatprep.subr.bf16.mxu0 0
    %1663 = vmatpush1.bf16.msra.mxu0 0
    %1664 = vmatprep.subr.bf16.mxu0 0
    %1665 = vmatpush1.bf16.msra.mxu0 0
    %1666 = vmatprep.subr.bf16.mxu0 0
    %1667 = vmatpush1.bf16.msra.mxu0 0
    %1668 = vmatprep.subr.bf16.mxu0 0
    %1669 = vmatpush1.bf16.msra.mxu0 0
    %1670 = vmatprep.subr.bf16.mxu0 0
    %1671 = vmatpush1.bf16.msra.mxu0 0
    %1672 = vmatprep.subr.bf16.mxu0 0
    %1673 = vmatpush1.bf16.msra.mxu0 0
    %1674 = vmatprep.subr.bf16.mxu0 0
    %1675 = vmatpush1.bf16.msra.mxu0 0
    %1676 = vmatprep.subr.bf16.mxu0 0
    %1677 = vmatpush1.bf16.msra.mxu0 0
    %1678 = vmatprep.subr.bf16.mxu0 0
    %1679 = vmatpush1.bf16.msra.mxu0 0
    %1680 = vmatprep.subr.bf16.mxu0 0
    %1681 = vmatpush1.bf16.msra.mxu0 0
    %1682 = vmatprep.subr.bf16.mxu0 0
    %1683 = vmatpush1.bf16.msra.mxu0 0
    %1684 = vmatprep.subr.bf16.mxu0 0
    %1685 = vmatpush1.bf16.msra.mxu0 0
    %1686 = vmatprep.subr.bf16.mxu0 0
    %1687 = vmatpush1.bf16.msra.mxu0 0
    %1688 = vmatprep.subr.bf16.mxu0 0
    %1689 = vmatpush1.bf16.msra.mxu0 0
    %1690 = vmatprep.mubr.bf16.mxu0 0
    %1691 = vmatmul.mubr.bf16.gmra.mrb[0].mxu0 %v1656
    %v1692 = vpop.f32.mrb[0].mxu0
    %v1693 = vadd.f32 %v1646, %v1692
    %v1694 = vpop.f32.mrb[0].mxu0
    %v1695 = vpop.f32.mrb[0].mxu0
    %v1696 = vadd.f32 %v1649, %v1695
    %v1697 = vpop.f32.mrb[0].mxu0
    %1698 = vdwg.mxu0
    %v1699 = vadd.f32 %v1693, %v599
    %v1700 = vadd.f32 %v1696, %v599
    %v1701 = vadd.f32 %v1699, %v1699
    %v1702 = vadd.f32 %v1700, %v1700
    %v1703 = vsel %vm360, %v1701, %v1699
    %v1704 = vsel %vm360, %v1702, %v1700
    %v1705 = vxor.u32 %v1703, 2147483648
    %v1706 = vxor.u32 %v1704, 2147483648
    %v1707 = vmul.f32 %v1705, 1.442695
    %v1708 = vpow.pop %v1707
    %v1709 = vmul.f32 %v1706, 1.442695
    %v1710 = vpow.pop %v1709
    %v1711 = vadd.f32 %v1708, 1.0
    %v1712 = vadd.f32 %v1710, 1.0
    %v1713 = vrcp.pop %v1711
    %v1714 = vmul.f32 1.0, %v1713
    %v1715 = vrcp.pop %v1712
    %v1716 = vmul.f32 1.0, %v1715
    %v1717 = vadd.f32 %v1714, %v1714
    %v1718 = vadd.f32 %v1716, %v1716
    %v1719 = vsub.f32 %v1717, 1.0
    %v1720 = vsub.f32 %v1718, 1.0
    %v1721 = vsel %vm360, %v1719, %v1714
    %v1722 = vsel %vm360, %v1720, %v1716
    %v1723 = vmul.f32 %v1721, %v1482
    %v1724 = vmul.f32 %v1722, %v1483
    %1727 = vrot.lane.b32.xlu0 %v1721, 64
    %v1728 = vpop.permute.xlu0 %1727
    %1729 = vrot.lane.b32.xlu0 %v1722, 64
    %v1730 = vpop.permute.xlu0 %1729
    %v1733 = vmul.f32 %v1721, %v1728
    %v1734 = vmul.f32 %v1722, %v1730
    %1737 = vrot.lane.b32.xlu0 %v1733, 32
    %v1738 = vpop.permute.xlu0 %1737
    %1739 = vrot.lane.b32.xlu0 %v1734, 32
    %v1740 = vpop.permute.xlu0 %1739
    %v1743 = vadd.f32 %v1723, %v1738
    %v1744 = vadd.f32 %v1724, %v1740
    %v1745 = vtanh.pop %v1743
    %v1746 = vtanh.pop %v1744
    %1749 = vrot.lane.b32.xlu0 %v1745, 64
    %v1750 = vpop.permute.xlu0 %1749
    %1751 = vrot.lane.b32.xlu0 %v1746, 64
    %v1752 = vpop.permute.xlu0 %1751
    %v1755 = vmul.f32 %v1721, %v1750
    %v1756 = vmul.f32 %v1722, %v1752
    %v1757 = vsel %vm1498, %v1743, %v1482
    %v1758 = vsel %vm1499, %v1744, %v1483
    %v1759 = vsel %vm1498, %v1755, %v1484
    %v1760 = vsel %vm1499, %v1756, %v1485
    %v1761 = vsel %vm1498, %v1755, 0.0
    %v1762 = vsel %vm1499, %v1756, 0.0
    %1765 = vrot.lane.b32.xlu0 %v1761, 32
    %v1766 = vpop.permute.xlu0 %1765
    %1767 = vrot.lane.b32.xlu0 %v1762, 32
    %v1768 = vpop.permute.xlu0 %1767
    %1771 = vst.msk [vmem:[#allocation2 + $0x40] sm:$0xff] %vm375, %v1766
    %1772 = vst.msk [vmem:[#allocation2 + $0x48] sm:$0xff] %vm375, %v1768
    %vm1773 = vcmp.gt.s32.totalorder %v352, 5
    %vm1774 = vcmp.gt.s32.totalorder %v355, 5
    %1775 = vmatprep.subr.bf16.mxu0 0
    %1776 = vmatpush1.bf16.msra.mxu0 %v371
    %1777 = vmatprep.subr.bf16.mxu0 0
    %1778 = vmatpush1.bf16.msra.mxu0 %v372
    %1779 = vmatprep.subr.bf16.mxu0 0
    %1780 = vmatpush1.bf16.msra.mxu0 0
    %1781 = vmatprep.subr.bf16.mxu0 0
    %1782 = vmatpush1.bf16.msra.mxu0 0
    %1783 = vmatprep.subr.bf16.mxu0 0
    %1784 = vmatpush1.bf16.msra.mxu0 0
    %1785 = vmatprep.subr.bf16.mxu0 0
    %1786 = vmatpush1.bf16.msra.mxu0 0
    %1787 = vmatprep.subr.bf16.mxu0 0
    %1788 = vmatpush1.bf16.msra.mxu0 0
    %1789 = vmatprep.subr.bf16.mxu0 0
    %1790 = vmatpush1.bf16.msra.mxu0 0
    %1791 = vmatprep.subr.bf16.mxu0 0
    %1792 = vmatpush1.bf16.msra.mxu0 0
    %1793 = vmatprep.subr.bf16.mxu0 0
    %1794 = vmatpush1.bf16.msra.mxu0 0
    %1795 = vmatprep.subr.bf16.mxu0 0
    %1796 = vmatpush1.bf16.msra.mxu0 0
    %1797 = vmatprep.subr.bf16.mxu0 0
    %1798 = vmatpush1.bf16.msra.mxu0 0
    %1799 = vmatprep.subr.bf16.mxu0 0
    %1800 = vmatpush1.bf16.msra.mxu0 0
    %1801 = vmatprep.subr.bf16.mxu0 0
    %1802 = vmatpush1.bf16.msra.mxu0 0
    %1803 = vmatprep.subr.bf16.mxu0 0
    %1804 = vmatpush1.bf16.msra.mxu0 0
    %1805 = vmatprep.subr.bf16.mxu0 0
    %1806 = vmatpush1.bf16.msra.mxu0 0
    %1807 = vmatprep.mubr.bf16.mxu0 0
    %1808 = vmatmul.mubr.bf16.gmra.mrb[0].mxu0 %v1656
    %v1809 = vpop.f32.mrb[0].mxu0
    %v1810 = vadd.f32 0.0, %v1809
    %v1811 = vpop.f32.mrb[0].mxu0
    %v1812 = vpop.f32.mrb[0].mxu0
    %v1813 = vadd.f32 0.0, %v1812
    %v1814 = vpop.f32.mrb[0].mxu0
    %1815 = vdwg.mxu0
    %v1816 = vadd.f32 %v313, %v1810
    %v1817 = vadd.f32 %v316, %v1813
    %v1818 = vadd.f32 %v1816, %v1816
    %v1819 = vadd.f32 %v1817, %v1817
    %v1820 = vsel %vm360, %v1818, %v1816
    %v1821 = vsel %vm360, %v1819, %v1817
    %v1822 = vxor.u32 %v1820, 2147483648
    %v1823 = vxor.u32 %v1821, 2147483648
    %v1824 = vmul.f32 %v1822, 1.442695
    %v1825 = vpow.pop %v1824
    %v1826 = vmul.f32 %v1823, 1.442695
    %v1827 = vpow.pop %v1826
    %v1828 = vadd.f32 %v1825, 1.0
    %v1829 = vadd.f32 %v1827, 1.0
    %v1830 = vrcp.pop %v1828
    %v1831 = vmul.f32 1.0, %v1830
    %v1832 = vrcp.pop %v1829
    %v1833 = vmul.f32 1.0, %v1832
    %v1834 = vadd.f32 %v1831, %v1831
    %v1835 = vadd.f32 %v1833, %v1833
    %v1836 = vsub.f32 %v1834, 1.0
    %v1837 = vsub.f32 %v1835, 1.0
    %v1838 = vsel %vm360, %v1836, %v1831
    %v1839 = vsel %vm360, %v1837, %v1833
    %v1840 = vmul.f32 %v1838, %v1599
    %v1841 = vmul.f32 %v1839, %v1600
    %1844 = vrot.lane.b32.xlu0 %v1838, 64
    %v1845 = vpop.permute.xlu0 %1844
    %1846 = vrot.lane.b32.xlu0 %v1839, 64
    %v1847 = vpop.permute.xlu0 %1846
    %v1850 = vmul.f32 %v1838, %v1845
    %v1851 = vmul.f32 %v1839, %v1847
    %1854 = vrot.lane.b32.xlu0 %v1850, 32
    %v1855 = vpop.permute.xlu0 %1854
    %1856 = vrot.lane.b32.xlu0 %v1851, 32
    %v1857 = vpop.permute.xlu0 %1856
    %v1860 = vadd.f32 %v1840, %v1855
    %v1861 = vadd.f32 %v1841, %v1857
    %v1862 = vtanh.pop %v1860
    %v1863 = vtanh.pop %v1861
    %1866 = vrot.lane.b32.xlu0 %v1862, 64
    %v1867 = vpop.permute.xlu0 %1866
    %1868 = vrot.lane.b32.xlu0 %v1863, 64
    %v1869 = vpop.permute.xlu0 %1868
    %v1872 = vmul.f32 %v1838, %v1867
    %v1873 = vmul.f32 %v1839, %v1869
    %v1874 = vsel %vm1773, %v1860, %v1599
    %v1875 = vsel %vm1774, %v1861, %v1600
    %v1876 = vsel %vm1773, %v1872, %v1601
    %v1877 = vsel %vm1774, %v1873, %v1602
    %v1878 = vpack.c.bf16 %v1877, %v1876
    %v1879 = vpack.c.bf16 %v1760, %v1759
    %1881 = vrot.lane.b32.xlu0 %v1879, 32
    %v1882 = vpop.permute.xlu0 %1881
    %v1884 = vsel %vm375, %v1882, 0
    %1886 = vmatprep.subr.bf16.mxu0 0
    %1887 = vmatpush1.bf16.msra.mxu0 %v491
    %1888 = vmatprep.subr.bf16.mxu0 0
    %1889 = vmatpush1.bf16.msra.mxu0 %v492
    %1890 = vmatprep.subr.bf16.mxu0 0
    %1891 = vmatpush1.bf16.msra.mxu0 0
    %1892 = vmatprep.subr.bf16.mxu0 0
    %1893 = vmatpush1.bf16.msra.mxu0 0
    %1894 = vmatprep.subr.bf16.mxu0 0
    %1895 = vmatpush1.bf16.msra.mxu0 0
    %1896 = vmatprep.subr.bf16.mxu0 0
    %1897 = vmatpush1.bf16.msra.mxu0 0
    %1898 = vmatprep.subr.bf16.mxu0 0
    %1899 = vmatpush1.bf16.msra.mxu0 0
    %1900 = vmatprep.subr.bf16.mxu0 0
    %1901 = vmatpush1.bf16.msra.mxu0 0
    %1902 = vmatprep.subr.bf16.mxu0 0
    %1903 = vmatpush1.bf16.msra.mxu0 0
    %1904 = vmatprep.subr.bf16.mxu0 0
    %1905 = vmatpush1.bf16.msra.mxu0 0
    %1906 = vmatprep.subr.bf16.mxu0 0
    %1907 = vmatpush1.bf16.msra.mxu0 0
    %1908 = vmatprep.subr.bf16.mxu0 0
    %1909 = vmatpush1.bf16.msra.mxu0 0
    %1910 = vmatprep.subr.bf16.mxu0 0
    %1911 = vmatpush1.bf16.msra.mxu0 0
    %1912 = vmatprep.subr.bf16.mxu0 0
    %1913 = vmatpush1.bf16.msra.mxu0 0
    %1914 = vmatprep.subr.bf16.mxu0 0
    %1915 = vmatpush1.bf16.msra.mxu0 0
    %1916 = vmatprep.subr.bf16.mxu0 0
    %1917 = vmatpush1.bf16.msra.mxu0 0
    %1918 = vmatprep.mubr.bf16.mxu0 0
    %1919 = vmatmul.mubr.bf16.gmra.mrb[0].mxu0 %v1884
    %v1920 = vpop.f32.mrb[0].mxu0
    %v1921 = vadd.f32 0.0, %v1920
    %v1922 = vpop.f32.mrb[0].mxu0
    %v1923 = vpop.f32.mrb[0].mxu0
    %v1924 = vadd.f32 0.0, %v1923
    %v1925 = vpop.f32.mrb[0].mxu0
    %1926 = vdwg.mxu0
    %1928 = vrot.lane.b32.xlu0 %v1878, 32
    %v1929 = vpop.permute.xlu0 %1928
    %v1931 = vsel %vm375, %v1929, 0
    %1933 = vmatprep.subr.bf16.mxu0 0
    %1934 = vmatpush1.bf16.msra.mxu0 %v547
    %1935 = vmatprep.subr.bf16.mxu0 0
    %1936 = vmatpush1.bf16.msra.mxu0 %v548
    %1937 = vmatprep.subr.bf16.mxu0 0
    %1938 = vmatpush1.bf16.msra.mxu0 0
    %1939 = vmatprep.subr.bf16.mxu0 0
    %1940 = vmatpush1.bf16.msra.mxu0 0
    %1941 = vmatprep.subr.bf16.mxu0 0
    %1942 = vmatpush1.bf16.msra.mxu0 0
    %1943 = vmatprep.subr.bf16.mxu0 0
    %1944 = vmatpush1.bf16.msra.mxu0 0
    %1945 = vmatprep.subr.bf16.mxu0 0
    %1946 = vmatpush1.bf16.msra.mxu0 0
    %1947 = vmatprep.subr.bf16.mxu0 0
    %1948 = vmatpush1.bf16.msra.mxu0 0
    %1949 = vmatprep.subr.bf16.mxu0 0
    %1950 = vmatpush1.bf16.msra.mxu0 0
    %1951 = vmatprep.subr.bf16.mxu0 0
    %1952 = vmatpush1.bf16.msra.mxu0 0
    %1953 = vmatprep.subr.bf16.mxu0 0
    %1954 = vmatpush1.bf16.msra.mxu0 0
    %1955 = vmatprep.subr.bf16.mxu0 0
    %1956 = vmatpush1.bf16.msra.mxu0 0
    %1957 = vmatprep.subr.bf16.mxu0 0
    %1958 = vmatpush1.bf16.msra.mxu0 0
    %1959 = vmatprep.subr.bf16.mxu0 0
    %1960 = vmatpush1.bf16.msra.mxu0 0
    %1961 = vmatprep.subr.bf16.mxu0 0
    %1962 = vmatpush1.bf16.msra.mxu0 0
    %1963 = vmatprep.subr.bf16.mxu0 0
    %1964 = vmatpush1.bf16.msra.mxu0 0
    %1965 = vmatprep.mubr.bf16.mxu0 0
    %1966 = vmatmul.mubr.bf16.gmra.mrb[0].mxu0 %v1931
    %v1967 = vpop.f32.mrb[0].mxu0
    %v1968 = vadd.f32 %v1921, %v1967
    %v1969 = vpop.f32.mrb[0].mxu0
    %v1970 = vpop.f32.mrb[0].mxu0
    %v1971 = vadd.f32 %v1924, %v1970
    %v1972 = vpop.f32.mrb[0].mxu0
    %1973 = vdwg.mxu0
    %v1974 = vadd.f32 %v1968, %v599
    %v1975 = vadd.f32 %v1971, %v599
    %v1976 = vadd.f32 %v1974, %v1974
    %v1977 = vadd.f32 %v1975, %v1975
    %v1978 = vsel %vm360, %v1976, %v1974
    %v1979 = vsel %vm360, %v1977, %v1975
    %v1980 = vxor.u32 %v1978, 2147483648
    %v1981 = vxor.u32 %v1979, 2147483648
    %v1982 = vmul.f32 %v1980, 1.442695
    %v1983 = vpow.pop %v1982
    %v1984 = vmul.f32 %v1981, 1.442695
    %v1985 = vpow.pop %v1984
    %v1986 = vadd.f32 %v1983, 1.0
    %v1987 = vadd.f32 %v1985, 1.0
    %v1988 = vrcp.pop %v1986
    %v1989 = vmul.f32 1.0, %v1988
    %v1990 = vrcp.pop %v1987
    %v1991 = vmul.f32 1.0, %v1990
    %v1992 = vadd.f32 %v1989, %v1989
    %v1993 = vadd.f32 %v1991, %v1991
    %v1994 = vsub.f32 %v1992, 1.0
    %v1995 = vsub.f32 %v1993, 1.0
    %v1996 = vsel %vm360, %v1994, %v1989
    %v1997 = vsel %vm360, %v1995, %v1991
    %v1998 = vmul.f32 %v1996, %v1757
    %v1999 = vmul.f32 %v1997, %v1758
    %2002 = vrot.lane.b32.xlu0 %v1996, 64
    %v2003 = vpop.permute.xlu0 %2002
    %2004 = vrot.lane.b32.xlu0 %v1997, 64
    %v2005 = vpop.permute.xlu0 %2004
    %v2008 = vmul.f32 %v1996, %v2003
    %v2009 = vmul.f32 %v1997, %v2005
    %2012 = vrot.lane.b32.xlu0 %v2008, 32
    %v2013 = vpop.permute.xlu0 %2012
    %2014 = vrot.lane.b32.xlu0 %v2009, 32
    %v2015 = vpop.permute.xlu0 %2014
    %v2018 = vadd.f32 %v1998, %v2013
    %v2019 = vadd.f32 %v1999, %v2015
    %v2020 = vtanh.pop %v2018
    %v2021 = vtanh.pop %v2019
    %2024 = vrot.lane.b32.xlu0 %v2020, 64
    %v2025 = vpop.permute.xlu0 %2024
    %2026 = vrot.lane.b32.xlu0 %v2021, 64
    %v2027 = vpop.permute.xlu0 %2026
    %v2030 = vmul.f32 %v1996, %v2025
    %v2031 = vmul.f32 %v1997, %v2027
    %v2032 = vsel %vm1773, %v2018, %v1757
    %v2033 = vsel %vm1774, %v2019, %v1758
    %v2034 = vsel %vm1773, %v2030, %v1759
    %v2035 = vsel %vm1774, %v2031, %v1760
    %v2036 = vsel %vm1773, %v2030, 0.0
    %v2037 = vsel %vm1774, %v2031, 0.0
    %2040 = vrot.lane.b32.xlu0 %v2036, 32
    %v2041 = vpop.permute.xlu0 %2040
    %2042 = vrot.lane.b32.xlu0 %v2037, 32
    %v2043 = vpop.permute.xlu0 %2042
    %2046 = vst.msk [vmem:[#allocation2 + $0x50] sm:$0xff] %vm375, %v2041
    %2047 = vst.msk [vmem:[#allocation2 + $0x58] sm:$0xff] %vm375, %v2043
    %vm2048 = vcmp.gt.s32.totalorder %v352, 6
    %vm2049 = vcmp.gt.s32.totalorder %v355, 6
    %2050 = vmatprep.subr.bf16.mxu0 0
    %2051 = vmatpush1.bf16.msra.mxu0 %v371
    %2052 = vmatprep.subr.bf16.mxu0 0
    %2053 = vmatpush1.bf16.msra.mxu0 %v372
    %2054 = vmatprep.subr.bf16.mxu0 0
    %2055 = vmatpush1.bf16.msra.mxu0 0
    %2056 = vmatprep.subr.bf16.mxu0 0
    %2057 = vmatpush1.bf16.msra.mxu0 0
    %2058 = vmatprep.subr.bf16.mxu0 0
    %2059 = vmatpush1.bf16.msra.mxu0 0
    %2060 = vmatprep.subr.bf16.mxu0 0
    %2061 = vmatpush1.bf16.msra.mxu0 0
    %2062 = vmatprep.subr.bf16.mxu0 0
    %2063 = vmatpush1.bf16.msra.mxu0 0
    %2064 = vmatprep.subr.bf16.mxu0 0
    %2065 = vmatpush1.bf16.msra.mxu0 0
    %2066 = vmatprep.subr.bf16.mxu0 0
    %2067 = vmatpush1.bf16.msra.mxu0 0
    %2068 = vmatprep.subr.bf16.mxu0 0
    %2069 = vmatpush1.bf16.msra.mxu0 0
    %2070 = vmatprep.subr.bf16.mxu0 0
    %2071 = vmatpush1.bf16.msra.mxu0 0
    %2072 = vmatprep.subr.bf16.mxu0 0
    %2073 = vmatpush1.bf16.msra.mxu0 0
    %2074 = vmatprep.subr.bf16.mxu0 0
    %2075 = vmatpush1.bf16.msra.mxu0 0
    %2076 = vmatprep.subr.bf16.mxu0 0
    %2077 = vmatpush1.bf16.msra.mxu0 0
    %2078 = vmatprep.subr.bf16.mxu0 0
    %2079 = vmatpush1.bf16.msra.mxu0 0
    %2080 = vmatprep.subr.bf16.mxu0 0
    %2081 = vmatpush1.bf16.msra.mxu0 0
    %2082 = vmatprep.mubr.bf16.mxu0 0
    %2083 = vmatmul.mubr.bf16.gmra.mrb[0].mxu0 %v1931
    %v2084 = vpop.f32.mrb[0].mxu0
    %v2085 = vadd.f32 0.0, %v2084
    %v2086 = vpop.f32.mrb[0].mxu0
    %v2087 = vpop.f32.mrb[0].mxu0
    %v2088 = vadd.f32 0.0, %v2087
    %v2089 = vpop.f32.mrb[0].mxu0
    %2090 = vdwg.mxu0
    %v2091 = vadd.f32 %v321, %v2085
    %v2092 = vadd.f32 %v324, %v2088
    %v2093 = vadd.f32 %v2091, %v2091
    %v2094 = vadd.f32 %v2092, %v2092
    %v2095 = vsel %vm360, %v2093, %v2091
    %v2096 = vsel %vm360, %v2094, %v2092
    %v2097 = vxor.u32 %v2095, 2147483648
    %v2098 = vxor.u32 %v2096, 2147483648
    %v2099 = vmul.f32 %v2097, 1.442695
    %v2100 = vpow.pop %v2099
    %v2101 = vmul.f32 %v2098, 1.442695
    %v2102 = vpow.pop %v2101
    %v2103 = vadd.f32 %v2100, 1.0
    %v2104 = vadd.f32 %v2102, 1.0
    %v2105 = vrcp.pop %v2103
    %v2106 = vmul.f32 1.0, %v2105
    %v2107 = vrcp.pop %v2104
    %v2108 = vmul.f32 1.0, %v2107
    %v2109 = vadd.f32 %v2106, %v2106
    %v2110 = vadd.f32 %v2108, %v2108
    %v2111 = vsub.f32 %v2109, 1.0
    %v2112 = vsub.f32 %v2110, 1.0
    %v2113 = vsel %vm360, %v2111, %v2106
    %v2114 = vsel %vm360, %v2112, %v2108
    %v2115 = vmul.f32 %v2113, %v1874
    %v2116 = vmul.f32 %v2114, %v1875
    %2119 = vrot.lane.b32.xlu0 %v2113, 64
    %v2120 = vpop.permute.xlu0 %2119
    %2121 = vrot.lane.b32.xlu0 %v2114, 64
    %v2122 = vpop.permute.xlu0 %2121
    %v2125 = vmul.f32 %v2113, %v2120
    %v2126 = vmul.f32 %v2114, %v2122
    %2129 = vrot.lane.b32.xlu0 %v2125, 32
    %v2130 = vpop.permute.xlu0 %2129
    %2131 = vrot.lane.b32.xlu0 %v2126, 32
    %v2132 = vpop.permute.xlu0 %2131
    %v2135 = vadd.f32 %v2115, %v2130
    %v2136 = vadd.f32 %v2116, %v2132
    %v2137 = vtanh.pop %v2135
    %v2138 = vtanh.pop %v2136
    %2141 = vrot.lane.b32.xlu0 %v2137, 64
    %v2142 = vpop.permute.xlu0 %2141
    %2143 = vrot.lane.b32.xlu0 %v2138, 64
    %v2144 = vpop.permute.xlu0 %2143
    %v2147 = vmul.f32 %v2113, %v2142
    %v2148 = vmul.f32 %v2114, %v2144
    %v2149 = vsel %vm2048, %v2135, %v1874
    %v2150 = vsel %vm2049, %v2136, %v1875
    %v2151 = vsel %vm2048, %v2147, %v1876
    %v2152 = vsel %vm2049, %v2148, %v1877
    %v2153 = vpack.c.bf16 %v2152, %v2151
    %v2154 = vpack.c.bf16 %v2035, %v2034
    %2156 = vrot.lane.b32.xlu0 %v2154, 32
    %v2157 = vpop.permute.xlu0 %2156
    %v2159 = vsel %vm375, %v2157, 0
    %2161 = vmatprep.subr.bf16.mxu0 0
    %2162 = vmatpush1.bf16.msra.mxu0 %v491
    %2163 = vmatprep.subr.bf16.mxu0 0
    %2164 = vmatpush1.bf16.msra.mxu0 %v492
    %2165 = vmatprep.subr.bf16.mxu0 0
    %2166 = vmatpush1.bf16.msra.mxu0 0
    %2167 = vmatprep.subr.bf16.mxu0 0
    %2168 = vmatpush1.bf16.msra.mxu0 0
    %2169 = vmatprep.subr.bf16.mxu0 0
    %2170 = vmatpush1.bf16.msra.mxu0 0
    %2171 = vmatprep.subr.bf16.mxu0 0
    %2172 = vmatpush1.bf16.msra.mxu0 0
    %2173 = vmatprep.subr.bf16.mxu0 0
    %2174 = vmatpush1.bf16.msra.mxu0 0
    %2175 = vmatprep.subr.bf16.mxu0 0
    %2176 = vmatpush1.bf16.msra.mxu0 0
    %2177 = vmatprep.subr.bf16.mxu0 0
    %2178 = vmatpush1.bf16.msra.mxu0 0
    %2179 = vmatprep.subr.bf16.mxu0 0
    %2180 = vmatpush1.bf16.msra.mxu0 0
    %2181 = vmatprep.subr.bf16.mxu0 0
    %2182 = vmatpush1.bf16.msra.mxu0 0
    %2183 = vmatprep.subr.bf16.mxu0 0
    %2184 = vmatpush1.bf16.msra.mxu0 0
    %2185 = vmatprep.subr.bf16.mxu0 0
    %2186 = vmatpush1.bf16.msra.mxu0 0
    %2187 = vmatprep.subr.bf16.mxu0 0
    %2188 = vmatpush1.bf16.msra.mxu0 0
    %2189 = vmatprep.subr.bf16.mxu0 0
    %2190 = vmatpush1.bf16.msra.mxu0 0
    %2191 = vmatprep.subr.bf16.mxu0 0
    %2192 = vmatpush1.bf16.msra.mxu0 0
    %2193 = vmatprep.mubr.bf16.mxu0 0
    %2194 = vmatmul.mubr.bf16.gmra.mrb[0].mxu0 %v2159
    %v2195 = vpop.f32.mrb[0].mxu0
    %v2196 = vadd.f32 0.0, %v2195
    %v2197 = vpop.f32.mrb[0].mxu0
    %v2198 = vpop.f32.mrb[0].mxu0
    %v2199 = vadd.f32 0.0, %v2198
    %v2200 = vpop.f32.mrb[0].mxu0
    %2201 = vdwg.mxu0
    %2203 = vrot.lane.b32.xlu0 %v2153, 32
    %v2204 = vpop.permute.xlu0 %2203
    %v2206 = vsel %vm375, %v2204, 0
    %2208 = vmatprep.subr.bf16.mxu0 0
    %2209 = vmatpush1.bf16.msra.mxu0 %v547
    %2210 = vmatprep.subr.bf16.mxu0 0
    %2211 = vmatpush1.bf16.msra.mxu0 %v548
    %2212 = vmatprep.subr.bf16.mxu0 0
    %2213 = vmatpush1.bf16.msra.mxu0 0
    %2214 = vmatprep.subr.bf16.mxu0 0
    %2215 = vmatpush1.bf16.msra.mxu0 0
    %2216 = vmatprep.subr.bf16.mxu0 0
    %2217 = vmatpush1.bf16.msra.mxu0 0
    %2218 = vmatprep.subr.bf16.mxu0 0
    %2219 = vmatpush1.bf16.msra.mxu0 0
    %2220 = vmatprep.subr.bf16.mxu0 0
    %2221 = vmatpush1.bf16.msra.mxu0 0
    %2222 = vmatprep.subr.bf16.mxu0 0
    %2223 = vmatpush1.bf16.msra.mxu0 0
    %2224 = vmatprep.subr.bf16.mxu0 0
    %2225 = vmatpush1.bf16.msra.mxu0 0
    %2226 = vmatprep.subr.bf16.mxu0 0
    %2227 = vmatpush1.bf16.msra.mxu0 0
    %2228 = vmatprep.subr.bf16.mxu0 0
    %2229 = vmatpush1.bf16.msra.mxu0 0
    %2230 = vmatprep.subr.bf16.mxu0 0
    %2231 = vmatpush1.bf16.msra.mxu0 0
    %2232 = vmatprep.subr.bf16.mxu0 0
    %2233 = vmatpush1.bf16.msra.mxu0 0
    %2234 = vmatprep.subr.bf16.mxu0 0
    %2235 = vmatpush1.bf16.msra.mxu0 0
    %2236 = vmatprep.subr.bf16.mxu0 0
    %2237 = vmatpush1.bf16.msra.mxu0 0
    %2238 = vmatprep.subr.bf16.mxu0 0
    %2239 = vmatpush1.bf16.msra.mxu0 0
    %2240 = vmatprep.mubr.bf16.mxu0 0
    %2241 = vmatmul.mubr.bf16.gmra.mrb[0].mxu0 %v2206
    %v2242 = vpop.f32.mrb[0].mxu0
    %v2243 = vadd.f32 %v2196, %v2242
    %v2244 = vpop.f32.mrb[0].mxu0
    %v2245 = vpop.f32.mrb[0].mxu0
    %v2246 = vadd.f32 %v2199, %v2245
    %v2247 = vpop.f32.mrb[0].mxu0
    %2248 = vdwg.mxu0
    %v2249 = vadd.f32 %v2243, %v599
    %v2250 = vadd.f32 %v2246, %v599
    %v2251 = vadd.f32 %v2249, %v2249
    %v2252 = vadd.f32 %v2250, %v2250
    %v2253 = vsel %vm360, %v2251, %v2249
    %v2254 = vsel %vm360, %v2252, %v2250
    %v2255 = vxor.u32 %v2253, 2147483648
    %v2256 = vxor.u32 %v2254, 2147483648
    %v2257 = vmul.f32 %v2255, 1.442695
    %v2258 = vpow.pop %v2257
    %v2259 = vmul.f32 %v2256, 1.442695
    %v2260 = vpow.pop %v2259
    %v2261 = vadd.f32 %v2258, 1.0
    %v2262 = vadd.f32 %v2260, 1.0
    %v2263 = vrcp.pop %v2261
    %v2264 = vmul.f32 1.0, %v2263
    %v2265 = vrcp.pop %v2262
    %v2266 = vmul.f32 1.0, %v2265
    %v2267 = vadd.f32 %v2264, %v2264
    %v2268 = vadd.f32 %v2266, %v2266
    %v2269 = vsub.f32 %v2267, 1.0
    %v2270 = vsub.f32 %v2268, 1.0
    %v2271 = vsel %vm360, %v2269, %v2264
    %v2272 = vsel %vm360, %v2270, %v2266
    %v2273 = vmul.f32 %v2271, %v2032
    %v2274 = vmul.f32 %v2272, %v2033
    %2277 = vrot.lane.b32.xlu0 %v2271, 64
    %v2278 = vpop.permute.xlu0 %2277
    %2279 = vrot.lane.b32.xlu0 %v2272, 64
    %v2280 = vpop.permute.xlu0 %2279
    %v2283 = vmul.f32 %v2271, %v2278
    %v2284 = vmul.f32 %v2272, %v2280
    %2287 = vrot.lane.b32.xlu0 %v2283, 32
    %v2288 = vpop.permute.xlu0 %2287
    %2289 = vrot.lane.b32.xlu0 %v2284, 32
    %v2290 = vpop.permute.xlu0 %2289
    %v2293 = vadd.f32 %v2273, %v2288
    %v2294 = vadd.f32 %v2274, %v2290
    %v2295 = vtanh.pop %v2293
    %v2296 = vtanh.pop %v2294
    %2299 = vrot.lane.b32.xlu0 %v2295, 64
    %v2300 = vpop.permute.xlu0 %2299
    %2301 = vrot.lane.b32.xlu0 %v2296, 64
    %v2302 = vpop.permute.xlu0 %2301
    %v2305 = vmul.f32 %v2271, %v2300
    %v2306 = vmul.f32 %v2272, %v2302
    %v2307 = vsel %vm2048, %v2293, %v2032
    %v2308 = vsel %vm2049, %v2294, %v2033
    %v2309 = vsel %vm2048, %v2305, %v2034
    %v2310 = vsel %vm2049, %v2306, %v2035
    %v2311 = vsel %vm2048, %v2305, 0.0
    %v2312 = vsel %vm2049, %v2306, 0.0
    %2315 = vrot.lane.b32.xlu0 %v2311, 32
    %v2316 = vpop.permute.xlu0 %2315
    %2317 = vrot.lane.b32.xlu0 %v2312, 32
    %v2318 = vpop.permute.xlu0 %2317
    %2321 = vst.msk [vmem:[#allocation2 + $0x60] sm:$0xff] %vm375, %v2316
    %2322 = vst.msk [vmem:[#allocation2 + $0x68] sm:$0xff] %vm375, %v2318
    %vm2323 = vcmp.gt.s32.totalorder %v352, 7
    %vm2324 = vcmp.gt.s32.totalorder %v355, 7
    %2325 = vmatprep.subr.bf16.mxu0 0
    %2326 = vmatpush1.bf16.msra.mxu0 %v371
    %2327 = vmatprep.subr.bf16.mxu0 0
    %2328 = vmatpush1.bf16.msra.mxu0 %v372
    %2329 = vmatprep.subr.bf16.mxu0 0
    %2330 = vmatpush1.bf16.msra.mxu0 0
    %2331 = vmatprep.subr.bf16.mxu0 0
    %2332 = vmatpush1.bf16.msra.mxu0 0
    %2333 = vmatprep.subr.bf16.mxu0 0
    %2334 = vmatpush1.bf16.msra.mxu0 0
    %2335 = vmatprep.subr.bf16.mxu0 0
    %2336 = vmatpush1.bf16.msra.mxu0 0
    %2337 = vmatprep.subr.bf16.mxu0 0
    %2338 = vmatpush1.bf16.msra.mxu0 0
    %2339 = vmatprep.subr.bf16.mxu0 0
    %2340 = vmatpush1.bf16.msra.mxu0 0
    %2341 = vmatprep.subr.bf16.mxu0 0
    %2342 = vmatpush1.bf16.msra.mxu0 0
    %2343 = vmatprep.subr.bf16.mxu0 0
    %2344 = vmatpush1.bf16.msra.mxu0 0
    %2345 = vmatprep.subr.bf16.mxu0 0
    %2346 = vmatpush1.bf16.msra.mxu0 0
    %2347 = vmatprep.subr.bf16.mxu0 0
    %2348 = vmatpush1.bf16.msra.mxu0 0
    %2349 = vmatprep.subr.bf16.mxu0 0
    %2350 = vmatpush1.bf16.msra.mxu0 0
    %2351 = vmatprep.subr.bf16.mxu0 0
    %2352 = vmatpush1.bf16.msra.mxu0 0
    %2353 = vmatprep.subr.bf16.mxu0 0
    %2354 = vmatpush1.bf16.msra.mxu0 0
    %2355 = vmatprep.subr.bf16.mxu0 0
    %2356 = vmatpush1.bf16.msra.mxu0 0
    %2357 = vmatprep.mubr.bf16.mxu0 0
    %2358 = vmatmul.mubr.bf16.gmra.mrb[0].mxu0 %v2206
    %v2359 = vpop.f32.mrb[0].mxu0
    %v2360 = vadd.f32 0.0, %v2359
    %v2361 = vpop.f32.mrb[0].mxu0
    %v2362 = vpop.f32.mrb[0].mxu0
    %v2363 = vadd.f32 0.0, %v2362
    %v2364 = vpop.f32.mrb[0].mxu0
    %2365 = vdwg.mxu0
    %v2366 = vadd.f32 %v329, %v2360
    %v2367 = vadd.f32 %v332, %v2363
    %v2368 = vadd.f32 %v2366, %v2366
    %v2369 = vadd.f32 %v2367, %v2367
    %v2370 = vsel %vm360, %v2368, %v2366
    %v2371 = vsel %vm360, %v2369, %v2367
    %v2372 = vxor.u32 %v2370, 2147483648
    %v2373 = vxor.u32 %v2371, 2147483648
    %v2374 = vmul.f32 %v2372, 1.442695
    %v2375 = vpow.pop %v2374
    %v2376 = vmul.f32 %v2373, 1.442695
    %v2377 = vpow.pop %v2376
    %v2378 = vadd.f32 %v2375, 1.0
    %v2379 = vadd.f32 %v2377, 1.0
    %v2380 = vrcp.pop %v2378
    %v2381 = vmul.f32 1.0, %v2380
    %v2382 = vrcp.pop %v2379
    %v2383 = vmul.f32 1.0, %v2382
    %v2384 = vadd.f32 %v2381, %v2381
    %v2385 = vadd.f32 %v2383, %v2383
    %v2386 = vsub.f32 %v2384, 1.0
    %v2387 = vsub.f32 %v2385, 1.0
    %v2388 = vsel %vm360, %v2386, %v2381
    %v2389 = vsel %vm360, %v2387, %v2383
    %v2390 = vmul.f32 %v2388, %v2149
    %v2391 = vmul.f32 %v2389, %v2150
    %2394 = vrot.lane.b32.xlu0 %v2388, 64
    %v2395 = vpop.permute.xlu0 %2394
    %2396 = vrot.lane.b32.xlu0 %v2389, 64
    %v2397 = vpop.permute.xlu0 %2396
    %v2400 = vmul.f32 %v2388, %v2395
    %v2401 = vmul.f32 %v2389, %v2397
    %2404 = vrot.lane.b32.xlu0 %v2400, 32
    %v2405 = vpop.permute.xlu0 %2404
    %2406 = vrot.lane.b32.xlu0 %v2401, 32
    %v2407 = vpop.permute.xlu0 %2406
    %v2410 = vadd.f32 %v2390, %v2405
    %v2411 = vadd.f32 %v2391, %v2407
    %v2412 = vtanh.pop %v2410
    %v2413 = vtanh.pop %v2411
    %2416 = vrot.lane.b32.xlu0 %v2412, 64
    %v2417 = vpop.permute.xlu0 %2416
    %2418 = vrot.lane.b32.xlu0 %v2413, 64
    %v2419 = vpop.permute.xlu0 %2418
    %v2422 = vmul.f32 %v2388, %v2417
    %v2423 = vmul.f32 %v2389, %v2419
    %v2424 = vsel %vm2323, %v2422, %v2151
    %v2425 = vsel %vm2324, %v2423, %v2152
    %v2426 = vpack.c.bf16 %v2425, %v2424
    %v2427 = vpack.c.bf16 %v2310, %v2309
    %2429 = vrot.lane.b32.xlu0 %v2427, 32
    %v2430 = vpop.permute.xlu0 %2429
    %v2432 = vsel %vm375, %v2430, 0
    %2434 = vmatprep.subr.bf16.mxu0 0
    %2435 = vmatpush1.bf16.msra.mxu0 %v491
    %2436 = vmatprep.subr.bf16.mxu0 0
    %2437 = vmatpush1.bf16.msra.mxu0 %v492
    %2438 = vmatprep.subr.bf16.mxu0 0
    %2439 = vmatpush1.bf16.msra.mxu0 0
    %2440 = vmatprep.subr.bf16.mxu0 0
    %2441 = vmatpush1.bf16.msra.mxu0 0
    %2442 = vmatprep.subr.bf16.mxu0 0
    %2443 = vmatpush1.bf16.msra.mxu0 0
    %2444 = vmatprep.subr.bf16.mxu0 0
    %2445 = vmatpush1.bf16.msra.mxu0 0
    %2446 = vmatprep.subr.bf16.mxu0 0
    %2447 = vmatpush1.bf16.msra.mxu0 0
    %2448 = vmatprep.subr.bf16.mxu0 0
    %2449 = vmatpush1.bf16.msra.mxu0 0
    %2450 = vmatprep.subr.bf16.mxu0 0
    %2451 = vmatpush1.bf16.msra.mxu0 0
    %2452 = vmatprep.subr.bf16.mxu0 0
    %2453 = vmatpush1.bf16.msra.mxu0 0
    %2454 = vmatprep.subr.bf16.mxu0 0
    %2455 = vmatpush1.bf16.msra.mxu0 0
    %2456 = vmatprep.subr.bf16.mxu0 0
    %2457 = vmatpush1.bf16.msra.mxu0 0
    %2458 = vmatprep.subr.bf16.mxu0 0
    %2459 = vmatpush1.bf16.msra.mxu0 0
    %2460 = vmatprep.subr.bf16.mxu0 0
    %2461 = vmatpush1.bf16.msra.mxu0 0
    %2462 = vmatprep.subr.bf16.mxu0 0
    %2463 = vmatpush1.bf16.msra.mxu0 0
    %2464 = vmatprep.subr.bf16.mxu0 0
    %2465 = vmatpush1.bf16.msra.mxu0 0
    %2466 = vmatprep.mubr.bf16.mxu0 0
    %2467 = vmatmul.mubr.bf16.gmra.mrb[0].mxu0 %v2432
    %v2468 = vpop.f32.mrb[0].mxu0
    %v2469 = vadd.f32 0.0, %v2468
    %v2470 = vpop.f32.mrb[0].mxu0
    %v2471 = vpop.f32.mrb[0].mxu0
    %v2472 = vadd.f32 0.0, %v2471
    %v2473 = vpop.f32.mrb[0].mxu0
    %2474 = vdwg.mxu0
    %2476 = vrot.lane.b32.xlu0 %v2426, 32
    %v2477 = vpop.permute.xlu0 %2476
    %v2479 = vsel %vm375, %v2477, 0
    %2481 = vmatprep.subr.bf16.mxu0 0
    %2482 = vmatpush1.bf16.msra.mxu0 %v547
    %2483 = vmatprep.subr.bf16.mxu0 0
    %2484 = vmatpush1.bf16.msra.mxu0 %v548
    %2485 = vmatprep.subr.bf16.mxu0 0
    %2486 = vmatpush1.bf16.msra.mxu0 0
    %2487 = vmatprep.subr.bf16.mxu0 0
    %2488 = vmatpush1.bf16.msra.mxu0 0
    %2489 = vmatprep.subr.bf16.mxu0 0
    %2490 = vmatpush1.bf16.msra.mxu0 0
    %2491 = vmatprep.subr.bf16.mxu0 0
    %2492 = vmatpush1.bf16.msra.mxu0 0
    %2493 = vmatprep.subr.bf16.mxu0 0
    %2494 = vmatpush1.bf16.msra.mxu0 0
    %2495 = vmatprep.subr.bf16.mxu0 0
    %2496 = vmatpush1.bf16.msra.mxu0 0
    %2497 = vmatprep.subr.bf16.mxu0 0
    %2498 = vmatpush1.bf16.msra.mxu0 0
    %2499 = vmatprep.subr.bf16.mxu0 0
    %2500 = vmatpush1.bf16.msra.mxu0 0
    %2501 = vmatprep.subr.bf16.mxu0 0
    %2502 = vmatpush1.bf16.msra.mxu0 0
    %2503 = vmatprep.subr.bf16.mxu0 0
    %2504 = vmatpush1.bf16.msra.mxu0 0
    %2505 = vmatprep.subr.bf16.mxu0 0
    %2506 = vmatpush1.bf16.msra.mxu0 0
    %2507 = vmatprep.subr.bf16.mxu0 0
    %2508 = vmatpush1.bf16.msra.mxu0 0
    %2509 = vmatprep.subr.bf16.mxu0 0
    %2510 = vmatpush1.bf16.msra.mxu0 0
    %2511 = vmatprep.subr.bf16.mxu0 0
    %2512 = vmatpush1.bf16.msra.mxu0 0
    %2513 = vmatprep.mubr.bf16.mxu0 0
    %2514 = vmatmul.mubr.bf16.gmra.mrb[0].mxu0 %v2479
    %v2515 = vpop.f32.mrb[0].mxu0
    %v2516 = vadd.f32 %v2469, %v2515
    %v2517 = vpop.f32.mrb[0].mxu0
    %v2518 = vpop.f32.mrb[0].mxu0
    %v2519 = vadd.f32 %v2472, %v2518
    %v2520 = vpop.f32.mrb[0].mxu0
    %2521 = vdwg.mxu0
    %v2522 = vadd.f32 %v2516, %v599
    %v2523 = vadd.f32 %v2519, %v599
    %v2524 = vadd.f32 %v2522, %v2522
    %v2525 = vadd.f32 %v2523, %v2523
    %v2526 = vsel %vm360, %v2524, %v2522
    %v2527 = vsel %vm360, %v2525, %v2523
    %v2528 = vxor.u32 %v2526, 2147483648
    %v2529 = vxor.u32 %v2527, 2147483648
    %v2530 = vmul.f32 %v2528, 1.442695
    %v2531 = vpow.pop %v2530
    %v2532 = vmul.f32 %v2529, 1.442695
    %v2533 = vpow.pop %v2532
    %v2534 = vadd.f32 %v2531, 1.0
    %v2535 = vadd.f32 %v2533, 1.0
    %v2536 = vrcp.pop %v2534
    %v2537 = vmul.f32 1.0, %v2536
    %v2538 = vrcp.pop %v2535
    %v2539 = vmul.f32 1.0, %v2538
    %v2540 = vadd.f32 %v2537, %v2537
    %v2541 = vadd.f32 %v2539, %v2539
    %v2542 = vsub.f32 %v2540, 1.0
    %v2543 = vsub.f32 %v2541, 1.0
    %v2544 = vsel %vm360, %v2542, %v2537
    %v2545 = vsel %vm360, %v2543, %v2539
    %v2546 = vmul.f32 %v2544, %v2307
    %v2547 = vmul.f32 %v2545, %v2308
    %2550 = vrot.lane.b32.xlu0 %v2544, 64
    %v2551 = vpop.permute.xlu0 %2550
    %2552 = vrot.lane.b32.xlu0 %v2545, 64
    %v2553 = vpop.permute.xlu0 %2552
    %v2556 = vmul.f32 %v2544, %v2551
    %v2557 = vmul.f32 %v2545, %v2553
    %2560 = vrot.lane.b32.xlu0 %v2556, 32
    %v2561 = vpop.permute.xlu0 %2560
    %2562 = vrot.lane.b32.xlu0 %v2557, 32
    %v2563 = vpop.permute.xlu0 %2562
    %v2566 = vadd.f32 %v2546, %v2561
    %v2567 = vadd.f32 %v2547, %v2563
    %v2568 = vtanh.pop %v2566
    %v2569 = vtanh.pop %v2567
    %2572 = vrot.lane.b32.xlu0 %v2568, 64
    %v2573 = vpop.permute.xlu0 %2572
    %2574 = vrot.lane.b32.xlu0 %v2569, 64
    %v2575 = vpop.permute.xlu0 %2574
    %v2578 = vmul.f32 %v2544, %v2573
    %v2579 = vmul.f32 %v2545, %v2575
    %v2580 = vsel %vm2323, %v2578, 0.0
    %v2581 = vsel %vm2324, %v2579, 0.0
    %2584 = vrot.lane.b32.xlu0 %v2580, 32
    %v2585 = vpop.permute.xlu0 %2584
    %2586 = vrot.lane.b32.xlu0 %v2581, 32
    %v2587 = vpop.permute.xlu0 %2586
    %2590 = vst.msk [vmem:[#allocation2 + $0x70] sm:$0xff] %vm375, %v2585
    %2591 = vst.msk [vmem:[#allocation2 + $0x78] sm:$0xff] %vm375, %v2587
    %v2592 = vld [vmem:[#allocation2] sm:$0xff]
    %v2593 = vld [vmem:[#allocation2 + $0x8] sm:$0xff]
    %v2594 = vld [vmem:[#allocation2 + $0x10] sm:$0xff]
    %v2595 = vld [vmem:[#allocation2 + $0x18] sm:$0xff]
    %v2596 = vld [vmem:[#allocation2 + $0x20] sm:$0xff]
    %v2597 = vld [vmem:[#allocation2 + $0x28] sm:$0xff]
    %v2598 = vld [vmem:[#allocation2 + $0x30] sm:$0xff]
    %v2599 = vld [vmem:[#allocation2 + $0x38] sm:$0xff]
    %v2600 = vld [vmem:[#allocation2 + $0x40] sm:$0xff]
    %v2601 = vld [vmem:[#allocation2 + $0x48] sm:$0xff]
    %v2602 = vld [vmem:[#allocation2 + $0x50] sm:$0xff]
    %v2603 = vld [vmem:[#allocation2 + $0x58] sm:$0xff]
    %v2604 = vld [vmem:[#allocation2 + $0x60] sm:$0xff]
    %v2605 = vld [vmem:[#allocation2 + $0x68] sm:$0xff]
    %v2606 = vld [vmem:[#allocation2 + $0x70] sm:$0xff]
    %v2607 = vld [vmem:[#allocation2 + $0x78] sm:$0xff]
    %v2608 = vpack.c.bf16 %v2593, %v2592
    %v2609 = vpack.c.bf16 %v2595, %v2594
    %v2610 = vpack.c.bf16 %v2597, %v2596
    %v2611 = vpack.c.bf16 %v2599, %v2598
    %v2612 = vpack.c.bf16 %v2601, %v2600
    %v2613 = vpack.c.bf16 %v2603, %v2602
    %v2614 = vpack.c.bf16 %v2605, %v2604
    %v2615 = vpack.c.bf16 %v2607, %v2606
    %v2616 = vld [vmem:[#allocation11] sm:$0xf]
    %v2617 = vld [vmem:[#allocation11 + $0x4] sm:$0xf]
    %v2618 = vld [vmem:[#allocation11 + $0x8] sm:$0xf]
    %v2619 = vld [vmem:[#allocation11 + $0xc] sm:$0xf]
    %v2620 = vld [vmem:[%s9] sm:$0x1]
    %v2622 = vlaneseq
    %v2623 = vshrl.u32 %v2622, 7
    %v2624 = vsub.s32 0, %v2623
    %v2625 = vrot.slane %v2620, %v2624
    %v2631 = vunpack.c.l.b16 %v2616
    %v2632 = vunpack.c.l.b16 %v2617
    %v2633 = vunpack.c.l.b16 %v2618
    %v2634 = vunpack.c.l.b16 %v2619
    %v2635 = vpack.c.b16 %v2632, %v2631
    %v2636 = vpack.c.b16 %v2634, %v2633
    %v2640 = vsel %vm375, %v2608, 0
    %v2643 = vsel %vm375, %v2609, 0
    %v2646 = vsel %vm375, %v2610, 0
    %v2649 = vsel %vm375, %v2611, 0
    %v2652 = vsel %vm375, %v2612, 0
    %v2655 = vsel %vm375, %v2613, 0
    %v2658 = vsel %vm375, %v2614, 0
    %v2661 = vsel %vm375, %v2615, 0
    %2663 = vmatprep.subr.bf16.mxu0 0
    %2664 = vmatpush1.bf16.msra.mxu0 %v2635
    %2665 = vmatprep.subr.bf16.mxu0 0
    %2666 = vmatpush1.bf16.msra.mxu0 %v2636
    %2667 = vmatprep.subr.bf16.mxu0 0
    %2668 = vmatpush1.bf16.msra.mxu0 0
    %2669 = vmatprep.subr.bf16.mxu0 0
    %2670 = vmatpush1.bf16.msra.mxu0 0
    %2671 = vmatprep.subr.bf16.mxu0 0
    %2672 = vmatpush1.bf16.msra.mxu0 0
    %2673 = vmatprep.subr.bf16.mxu0 0
    %2674 = vmatpush1.bf16.msra.mxu0 0
    %2675 = vmatprep.subr.bf16.mxu0 0
    %2676 = vmatpush1.bf16.msra.mxu0 0
    %2677 = vmatprep.subr.bf16.mxu0 0
    %2678 = vmatpush1.bf16.msra.mxu0 0
    %2679 = vmatprep.subr.bf16.mxu0 0
    %2680 = vmatpush1.bf16.msra.mxu0 0
    %2681 = vmatprep.subr.bf16.mxu0 0
    %2682 = vmatpush1.bf16.msra.mxu0 0
    %2683 = vmatprep.subr.bf16.mxu0 0
    %2684 = vmatpush1.bf16.msra.mxu0 0
    %2685 = vmatprep.subr.bf16.mxu0 0
    %2686 = vmatpush1.bf16.msra.mxu0 0
    %2687 = vmatprep.subr.bf16.mxu0 0
    %2688 = vmatpush1.bf16.msra.mxu0 0
    %2689 = vmatprep.subr.bf16.mxu0 0
    %2690 = vmatpush1.bf16.msra.mxu0 0
    %2691 = vmatprep.subr.bf16.mxu0 0
    %2692 = vmatpush1.bf16.msra.mxu0 0
    %2693 = vmatprep.subr.bf16.mxu0 0
    %2694 = vmatpush1.bf16.msra.mxu0 0
    %2695 = vmatprep.mubr.bf16.mxu0 0
    %2696 = vmatmul.mubr.bf16.gmra.mrb[0].mxu0 %v2640
    %v2697 = vpop.f32.mrb[0].mxu0
    %v2698 = vadd.f32 %v2625, %v2697
    %v2699 = vpop.f32.mrb[0].mxu0
    %v2700 = vpop.f32.mrb[0].mxu0
    %v2701 = vadd.f32 %v2625, %v2700
    %v2702 = vpop.f32.mrb[0].mxu0
    %2703 = vmatprep.mubr.bf16.mxu0 0
    %2704 = vmatmul.mubr.bf16.gmra.mrb[0].mxu0 %v2643
    %v2705 = vpop.f32.mrb[0].mxu0
    %v2706 = vadd.f32 %v2625, %v2705
    %v2707 = vpop.f32.mrb[0].mxu0
    %v2708 = vpop.f32.mrb[0].mxu0
    %v2709 = vadd.f32 %v2625, %v2708
    %v2710 = vpop.f32.mrb[0].mxu0
    %2711 = vmatprep.mubr.bf16.mxu0 0
    %2712 = vmatmul.mubr.bf16.gmra.mrb[0].mxu0 %v2646
    %v2713 = vpop.f32.mrb[0].mxu0
    %v2714 = vadd.f32 %v2625, %v2713
    %v2715 = vpop.f32.mrb[0].mxu0
    %v2716 = vpop.f32.mrb[0].mxu0
    %v2717 = vadd.f32 %v2625, %v2716
    %v2718 = vpop.f32.mrb[0].mxu0
    %2719 = vmatprep.mubr.bf16.mxu0 0
    %2720 = vmatmul.mubr.bf16.gmra.mrb[0].mxu0 %v2649
    %v2721 = vpop.f32.mrb[0].mxu0
    %v2722 = vadd.f32 %v2625, %v2721
    %v2723 = vpop.f32.mrb[0].mxu0
    %v2724 = vpop.f32.mrb[0].mxu0
    %v2725 = vadd.f32 %v2625, %v2724
    %v2726 = vpop.f32.mrb[0].mxu0
    %2727 = vmatprep.mubr.bf16.mxu0 0
    %2728 = vmatmul.mubr.bf16.gmra.mrb[0].mxu0 %v2652
    %v2729 = vpop.f32.mrb[0].mxu0
    %v2730 = vadd.f32 %v2625, %v2729
    %v2731 = vpop.f32.mrb[0].mxu0
    %v2732 = vpop.f32.mrb[0].mxu0
    %v2733 = vadd.f32 %v2625, %v2732
    %v2734 = vpop.f32.mrb[0].mxu0
    %2735 = vmatprep.mubr.bf16.mxu0 0
    %2736 = vmatmul.mubr.bf16.gmra.mrb[0].mxu0 %v2655
    %v2737 = vpop.f32.mrb[0].mxu0
    %v2738 = vadd.f32 %v2625, %v2737
    %v2739 = vpop.f32.mrb[0].mxu0
    %v2740 = vpop.f32.mrb[0].mxu0
    %v2741 = vadd.f32 %v2625, %v2740
    %v2742 = vpop.f32.mrb[0].mxu0
    %2743 = vmatprep.mubr.bf16.mxu0 0
    %2744 = vmatmul.mubr.bf16.gmra.mrb[0].mxu0 %v2658
    %v2745 = vpop.f32.mrb[0].mxu0
    %v2746 = vadd.f32 %v2625, %v2745
    %v2747 = vpop.f32.mrb[0].mxu0
    %v2748 = vpop.f32.mrb[0].mxu0
    %v2749 = vadd.f32 %v2625, %v2748
    %v2750 = vpop.f32.mrb[0].mxu0
    %2751 = vmatprep.mubr.bf16.mxu0 0
    %2752 = vmatmul.mubr.bf16.gmra.mrb[0].mxu0 %v2661
    %v2753 = vpop.f32.mrb[0].mxu0
    %v2754 = vadd.f32 %v2625, %v2753
    %v2755 = vpop.f32.mrb[0].mxu0
    %v2756 = vpop.f32.mrb[0].mxu0
    %v2757 = vadd.f32 %v2625, %v2756
    %v2758 = vpop.f32.mrb[0].mxu0
    %2759 = vdwg.mxu0
    %2760 = vst [vmem:[#allocation12] sm:$0xff] %v2698
    %2761 = vst [vmem:[#allocation12 + $0x8] sm:$0xff] %v2701
    %2762 = vst [vmem:[#allocation12 + $0x10] sm:$0xff] %v2706
    %2763 = vst [vmem:[#allocation12 + $0x18] sm:$0xff] %v2709
    %2764 = vst [vmem:[#allocation12 + $0x20] sm:$0xff] %v2714
    %2765 = vst [vmem:[#allocation12 + $0x28] sm:$0xff] %v2717
    %2766 = vst [vmem:[#allocation12 + $0x30] sm:$0xff] %v2722
    %2767 = vst [vmem:[#allocation12 + $0x38] sm:$0xff] %v2725
    %2768 = vst [vmem:[#allocation12 + $0x40] sm:$0xff] %v2730
    %2769 = vst [vmem:[#allocation12 + $0x48] sm:$0xff] %v2733
    %2770 = vst [vmem:[#allocation12 + $0x50] sm:$0xff] %v2738
    %2771 = vst [vmem:[#allocation12 + $0x58] sm:$0xff] %v2741
    %2772 = vst [vmem:[#allocation12 + $0x60] sm:$0xff] %v2746
    %2773 = vst [vmem:[#allocation12 + $0x68] sm:$0xff] %v2749
    %2774 = vst [vmem:[#allocation12 + $0x70] sm:$0xff] %v2754
    %2775 = vst [vmem:[#allocation12 + $0x78] sm:$0xff] %v2757
    // Predicated region
    $region62: #{tpu_custom_call.1} parent=1 // pred_check
      _
    $region63: #{tpu_custom_call.1} parent=1 // pred_check_branch
      %2777 = sbr.rel (0) target = $region65
    $region64: #{tpu_custom_call.1} parent=1 // pred_region
      %s2779 = ssub.s32 2048, 2048
      %2780 = vsyncadd [#allocation5], %s2779
      %s2781 = sshll.u32 [#allocation12], 4
      %s2782 = int_to_ptr.vmem [resolvable:$true] %s2781
      %2787 = dma.vmem_to_hbm [thread:$0]  %s2782, 2048, %s10, [#allocation5], 128, 128, 8
    $region65: #{tpu_custom_call.1} parent=1 // pred_fallthru
      _
    // Predicated region
    $region66: #{tpu_custom_call.1} parent=1 // pred_check
      _
    $region67: #{tpu_custom_call.1} parent=1 // pred_check_branch
      %2789 = sbr.rel (0) target = $region69
    $region68: #{tpu_custom_call.1} parent=1 // pred_region
      %2790 = dma.done [#allocation5], 2048
    $region69: #{tpu_custom_call.1} parent=1 // pred_fallthru
      _
    %2791 = vsyncpa [#allocation4], 1
    %2792 = vsyncpa [#allocation7], 1
    %2793 = vsyncpa [#allocation10], 1
    %2794 = vsyncpa [#allocation5], 1

</llo_original>
